<compile_context>
chip_gen: v5e
topology: v5e:2x2
jax: 0.10.0
libtpu: 0.0.40
codegen_flags: <defaults>
</compile_context>

<pallas_src>
import math
import functools

import jax
import jax.numpy as jnp
from jax.experimental import pallas as pl
from jax.experimental.pallas import tpu as pltpu

LN_EPS = 1e-5
LANE = 128
SUBLANE = 8


def _round_up(x, m):
    return ((x + m - 1) // m) * m


def _gelu(x):
    # tanh-approximation GELU — identical to the module's custom GELU class.
    c = math.sqrt(2.0 / math.pi)
    return 0.5 * x * (1.0 + jnp.tanh(c * (x + 0.044715 * x * x * x)))


def _layernorm(x, w, b, eps=LN_EPS):
    mu = jnp.mean(x, axis=-1, keepdims=True)
    var = jnp.mean((x - mu) ** 2, axis=-1, keepdims=True)
    return (x - mu) * jax.lax.rsqrt(var + eps) * w + b


def _mm(a, b, dtype):
    # Matmul with optionally down-cast (bf16) operands and f32 accumulation.
    return jnp.dot(a.astype(dtype), b.astype(dtype),
                   preferred_element_type=jnp.float32)


def mixer_kernel(patches_ref,
                 emb_w_ref, emb_b_ref, norm_w_ref, norm_b_ref,
                 ln1_w_ref, ln1_b_ref, tok_w1_ref, tok_b1_ref,
                 tok_w2_ref, tok_b2_ref, ln2_w_ref, ln2_b_ref,
                 ch_w1_ref, ch_b1_ref, ch_w2_ref, ch_b2_ref,
                 ln0_w_ref, ln0_b_ref, out_w_ref, out_b_ref,
                 pool_ref, out_ref,
                 *, depth, b_blk, n_patches, dim, mm_dtype):
    N, D = n_patches, dim

    # (b_blk*N, pdim_pad) — already flattened & lane-padded by the wrapper.
    p = patches_ref[...]

    # Patch embedding + pre-norm (rows are independent -> one big matmul).
    x = _mm(p, emb_w_ref[...], mm_dtype) + emb_b_ref[...]
    x = _layernorm(x, norm_w_ref[...], norm_b_ref[...])          # (b_blk*N, D)

    # depth is small & static -> unrolled.
    # TODO(synk): at production depth/dim, move the layer index onto a trailing
    # "arbitrary" grid axis with per-layer weight BlockSpecs and keep x in a
    # VMEM scratch accumulator so weights stream (needed for v7x's 64 MiB VMEM).
    for d in range(depth):
        # ---- token-mixing MLP (mixes across patches) ----
        y = _layernorm(x, ln1_w_ref[d], ln1_b_ref[d])            # (b*N, D)
        # Single batched minor-dim transpose over the whole tile.
        yt = jnp.swapaxes(y.reshape(b_blk, N, D), 1, 2).reshape(b_blk * D, N)
        z = _gelu(_mm(yt, tok_w1_ref[d], mm_dtype) + tok_b1_ref[d])
        t = _mm(z, tok_w2_ref[d], mm_dtype) + tok_b2_ref[d]      # (b*D, N)
        x = x + jnp.swapaxes(t.reshape(b_blk, D, N), 1, 2).reshape(b_blk * N, D)

        # ---- channel-mixing MLP (mixes across dim; row-independent) ----
        y = _layernorm(x, ln2_w_ref[d], ln2_b_ref[d])
        y = _gelu(_mm(y, ch_w1_ref[d], mm_dtype) + ch_b1_ref[d])
        y = _mm(y, ch_w2_ref[d], mm_dtype) + ch_b2_ref[d]
        x = x + y                                                # residual

    # Final norm, per-image mean pool (tiny f32 matmul against a constant
    # pooling matrix -> no unaligned reductions), classifier head + sigmoid.
    x = _layernorm(x, ln0_w_ref[...], ln0_b_ref[...])
    pooled = jnp.dot(pool_ref[...], x, preferred_element_type=jnp.float32)
    logits = _mm(pooled, out_w_ref[...], mm_dtype) + out_b_ref[...]
    out_ref[...] = jax.nn.sigmoid(logits)                        # (b_blk, C_pad)


_PARAM_ORDER = ["emb_w", "emb_b", "norm_w", "norm_b",
                "ln1_w", "ln1_b", "tok_w1", "tok_b1", "tok_w2", "tok_b2",
                "ln2_w", "ln2_b", "ch_w1", "ch_b1", "ch_w2", "ch_b2",
                "ln0_w", "ln0_b", "out_w", "out_b"]

_MATMUL_WEIGHTS = ("emb_w", "tok_w1", "tok_w2", "ch_w1", "ch_w2", "out_w")


def _extract_patches(x_nchw, patch_size):
    # Mirrors torch: unfold(2,p,p).unfold(3,p,p) -> view -> permute -> view
    B, C, H, W = x_nchw.shape
    p = patch_size
    x = x_nchw.reshape(B, C, H // p, p, W // p, p)   # (b, c, hi, ph, wi, pw)
    x = x.transpose(0, 2, 4, 3, 5, 1)                # (b, hi, wi, ph, pw, c)
    return x.reshape(B, (H // p) * (W // p), p * p * C)


def mlp_mixer_forward(x_nchw, params, *, patch_size, depth,
                      b_blk=None, matmul_dtype=jnp.bfloat16):
    patches = _extract_patches(x_nchw, patch_size)
    B, N, patch_dim = patches.shape
    dim = params["emb_w"].shape[1]
    num_classes = params["out_w"].shape[1]

    # ---- wrapper-side layout prep (pure data movement / zero padding) ----
    pdim_pad = _round_up(patch_dim, LANE)   # 48 -> 128 : lane-dense emb matmul
    c_pad = _round_up(num_classes, LANE)    # 10 -> 128 : unmasked output store

    patches = jnp.pad(patches, ((0, 0), (0, 0), (0, pdim_pad - patch_dim)))

    prep = dict(params)
    prep["emb_w"] = jnp.pad(params["emb_w"], ((0, pdim_pad - patch_dim), (0, 0)))
    prep["out_w"] = jnp.pad(params["out_w"], ((0, 0), (0, c_pad - num_classes)))
    prep["out_b"] = jnp.pad(params["out_b"], ((0, 0), (0, c_pad - num_classes)))
    if matmul_dtype != jnp.float32:
        # bf16 matmul operands, f32 accumulate; LN/bias/elementwise stay f32.
        for k in _MATMUL_WEIGHTS:
            prep[k] = prep[k].astype(matmul_dtype)

    # ---- batch tiling ----
    # Multiple of 8 sublanes; 16 fills the 256-wide MXU on v6e/v7x while
    # keeping >=2 grid steps for the "parallel" axis (v7x megacore) when the
    # batch allows; 8 already saturates v5e's 128-wide MXU.
    if b_blk is None:
        b_blk = 16 if B >= 32 else 8
    b_blk = min(b_blk, _round_up(B, SUBLANE))   # never overshoot B by > 1 tile
    b_pad = pl.cdiv(B, b_blk) * b_blk
    if b_pad != B:
        patches = jnp.pad(patches, ((0, b_pad - B), (0, 0), (0, 0)))

    # Flat (B*N, pdim_pad) slab -> clean (8,128)-tiled pipelined input block.
    patches_flat = patches.reshape(b_pad * N, pdim_pad)

    # Constant per-tile mean-pool matrix: row b averages the patches of image b.
    pool_mat = jnp.repeat(jnp.eye(b_blk, dtype=jnp.float32), N, axis=1) / N

    weights = [prep[k] for k in _PARAM_ORDER] + [pool_mat]

    # Weights / pooling matrix: whole array resident in VMEM once — no
    # per-grid-step DMA, no double buffering of grid-invariant operands.
    wspec = pl.BlockSpec(memory_space=pltpu.MemorySpace.VMEM)
    in_specs = [pl.BlockSpec((b_blk * N, pdim_pad), lambda b: (b, 0))]
    in_specs += [wspec] * len(weights)

    # Generation-aware VMEM cap: leave headroom under physical VMEM
    # (v7x: 64 MiB -> request 48 MiB; v5e/v6e: 128 MiB -> request 100 MiB).
    try:
        vmem_cap = pltpu.get_tpu_info().vmem_capacity_bytes
    except Exception:
        vmem_cap = 64 * 1024 * 1024
    vmem_limit = int(max(32 << 20, min(vmem_cap - (16 << 20), 100 << 20)))

    kern = functools.partial(mixer_kernel, depth=depth, b_blk=b_blk,
                             n_patches=N, dim=dim, mm_dtype=matmul_dtype)

    out = pl.pallas_call(
        kern,
        out_shape=jax.ShapeDtypeStruct((b_pad, c_pad), jnp.float32),
        grid=(b_pad // b_blk,),
        in_specs=in_specs,
        out_specs=pl.BlockSpec((b_blk, c_pad), lambda b: (b, 0)),
        compiler_params=pltpu.CompilerParams(
            dimension_semantics=("parallel",),
            vmem_limit_bytes=vmem_limit),
    )(patches_flat, *weights)

    return out[:B, :num_classes]


def init_params(key, *, num_patches, patch_dim, dim, depth, hidden, num_classes):
    ks = jax.random.split(key, 20)

    def nrm(k, shape):
        return 0.02 * jax.random.normal(k, shape, dtype=jnp.float32)

    return dict(
        emb_w=nrm(ks[0], (patch_dim, dim)),
        emb_b=nrm(ks[1], (1, dim)),
        norm_w=1.0 + nrm(ks[2], (1, dim)),
        norm_b=nrm(ks[3], (1, dim)),
        ln1_w=1.0 + nrm(ks[4], (depth, 1, dim)),
        ln1_b=nrm(ks[5], (depth, 1, dim)),
        tok_w1=nrm(ks[6], (depth, num_patches, hidden)),
        tok_b1=nrm(ks[7], (depth, 1, hidden)),
        tok_w2=nrm(ks[8], (depth, hidden, num_patches)),
        tok_b2=nrm(ks[9], (depth, 1, num_patches)),
        ln2_w=1.0 + nrm(ks[10], (depth, 1, dim)),
        ln2_b=nrm(ks[11], (depth, 1, dim)),
        ch_w1=nrm(ks[12], (depth, dim, hidden)),
        ch_b1=nrm(ks[13], (depth, 1, hidden)),
        ch_w2=nrm(ks[14], (depth, hidden, dim)),
        ch_b2=nrm(ks[15], (depth, 1, dim)),
        ln0_w=1.0 + nrm(ks[16], (1, dim)),
        ln0_b=nrm(ks[17], (1, dim)),
        out_w=nrm(ks[18], (dim, num_classes)),
        out_b=nrm(ks[19], (1, num_classes)),
    )


def reference_forward(x_nchw, params, *, patch_size, depth):
    # Pure-JAX reference (same math as the PyTorch module, dropout=0 / eval).
    x = _extract_patches(x_nchw, patch_size)
    x = x @ params["emb_w"] + params["emb_b"]
    x = _layernorm(x, params["norm_w"], params["norm_b"])
    for d in range(depth):
        y = _layernorm(x, params["ln1_w"][d], params["ln1_b"][d])
        y = jnp.swapaxes(y, -1, -2)
        y = _gelu(y @ params["tok_w1"][d] + params["tok_b1"][d])
        y = y @ params["tok_w2"][d] + params["tok_b2"][d]
        x = x + jnp.swapaxes(y, -1, -2)
        y = _layernorm(x, params["ln2_w"][d], params["ln2_b"][d])
        y = _gelu(y @ params["ch_w1"][d] + params["ch_b1"][d])
        y = y @ params["ch_w2"][d] + params["ch_b2"][d]
        x = x + y
    x = _layernorm(x, params["ln0_w"], params["ln0_b"])
    x = x.mean(axis=1)
    return jax.nn.sigmoid(x @ params["out_w"] + params["out_b"])


if __name__ == "__main__":
    # Small config consistent with the module: image 16x16, RGB, patch 4,
    # dim 32, depth 2, expansion 4, 10 classes.
    B, C, IMAGE, PATCH = 2, 3, 16, 4
    DIM, DEPTH, EXP, NUM_CLASSES = 32, 2, 4, 10
    NUM_PATCHES = (IMAGE // PATCH) ** 2           # 16
    PATCH_DIM = PATCH * PATCH * C                 # 48
    HIDDEN = DIM * EXP                            # 128

    key = jax.random.PRNGKey(0)
    k_in, k_par = jax.random.split(key)
    x = jax.random.normal(k_in, (B, C, IMAGE, IMAGE), dtype=jnp.float32)
    params = init_params(k_par, num_patches=NUM_PATCHES, patch_dim=PATCH_DIM,
                         dim=DIM, depth=DEPTH, hidden=HIDDEN,
                         num_classes=NUM_CLASSES)

    ref = reference_forward(x, params, patch_size=PATCH, depth=DEPTH)

    # f32 matmuls: must match the pure-JAX / PyTorch math tightly.
    out_f32 = jax.block_until_ready(
        mlp_mixer_forward(x, params, patch_size=PATCH, depth=DEPTH,
                          matmul_dtype=jnp.float32))
    assert out_f32.shape == (B, NUM_CLASSES)
    assert jnp.allclose(out_f32, ref, atol=1e-5, rtol=1e-5), "f32 kernel mismatch"

    # Default path: bf16 matmul operands with f32 accumulation (MXU fast path).
    out_bf16 = jax.block_until_ready(
        mlp_mixer_forward(x, params, patch_size=PATCH, depth=DEPTH))
    assert out_bf16.shape == (B, NUM_CLASSES)
    assert jnp.allclose(out_bf16, ref, atol=3e-2, rtol=3e-2), "bf16 kernel mismatch"

    print("KERNEL_OK")
</pallas_src>

<mosaic_0001>
module attributes {stable_mosaic.version = 11 : i64} {
  func.func @mixer_kernel(%arg0: i32, %arg1: memref<128x128xf32, #tpu.memory_space<vmem>>, %arg2: memref<128x32xf32, #tpu.memory_space<vmem>>, %arg3: memref<1x32xf32, #tpu.memory_space<vmem>>, %arg4: memref<1x32xf32, #tpu.memory_space<vmem>>, %arg5: memref<1x32xf32, #tpu.memory_space<vmem>>, %arg6: memref<2x1x32xf32, #tpu.memory_space<vmem>>, %arg7: memref<2x1x32xf32, #tpu.memory_space<vmem>>, %arg8: memref<2x16x128xf32, #tpu.memory_space<vmem>>, %arg9: memref<2x1x128xf32, #tpu.memory_space<vmem>>, %arg10: memref<2x128x16xf32, #tpu.memory_space<vmem>>, %arg11: memref<2x1x16xf32, #tpu.memory_space<vmem>>, %arg12: memref<2x1x32xf32, #tpu.memory_space<vmem>>, %arg13: memref<2x1x32xf32, #tpu.memory_space<vmem>>, %arg14: memref<2x32x128xf32, #tpu.memory_space<vmem>>, %arg15: memref<2x1x128xf32, #tpu.memory_space<vmem>>, %arg16: memref<2x128x32xf32, #tpu.memory_space<vmem>>, %arg17: memref<2x1x32xf32, #tpu.memory_space<vmem>>, %arg18: memref<1x32xf32, #tpu.memory_space<vmem>>, %arg19: memref<1x32xf32, #tpu.memory_space<vmem>>, %arg20: memref<32x128xf32, #tpu.memory_space<vmem>>, %arg21: memref<1x128xf32, #tpu.memory_space<vmem>>, %arg22: memref<8x128xf32, #tpu.memory_space<vmem>>, %arg23: memref<8x128xf32, #tpu.memory_space<vmem>>) attributes {dimension_semantics = [#tpu.dimension_semantics<parallel>], iteration_bounds = array<i64: 1>, scalar_prefetch = 0 : i64, scratch_operands = 0 : i64, tpu.core_type = #tpu.core_type<tc>, window_params = [{transform_indices = @transform_0, window_bounds = array<i64: 128, 128>}, {pipeline_mode = #tpu.pipeline_mode<synchronous>, transform_indices = @transform_1, window_bounds = array<i64: 128, 32>}, {pipeline_mode = #tpu.pipeline_mode<synchronous>, transform_indices = @transform_2, window_bounds = array<i64: 1, 32>}, {pipeline_mode = #tpu.pipeline_mode<synchronous>, transform_indices = @transform_3, window_bounds = array<i64: 1, 32>}, {pipeline_mode = #tpu.pipeline_mode<synchronous>, transform_indices = @transform_4, window_bounds = array<i64: 1, 32>}, {pipeline_mode = #tpu.pipeline_mode<synchronous>, transform_indices = @transform_5, window_bounds = array<i64: 2, 1, 32>}, {pipeline_mode = #tpu.pipeline_mode<synchronous>, transform_indices = @transform_6, window_bounds = array<i64: 2, 1, 32>}, {pipeline_mode = #tpu.pipeline_mode<synchronous>, transform_indices = @transform_7, window_bounds = array<i64: 2, 16, 128>}, {pipeline_mode = #tpu.pipeline_mode<synchronous>, transform_indices = @transform_8, window_bounds = array<i64: 2, 1, 128>}, {pipeline_mode = #tpu.pipeline_mode<synchronous>, transform_indices = @transform_9, window_bounds = array<i64: 2, 128, 16>}, {pipeline_mode = #tpu.pipeline_mode<synchronous>, transform_indices = @transform_10, window_bounds = array<i64: 2, 1, 16>}, {pipeline_mode = #tpu.pipeline_mode<synchronous>, transform_indices = @transform_11, window_bounds = array<i64: 2, 1, 32>}, {pipeline_mode = #tpu.pipeline_mode<synchronous>, transform_indices = @transform_12, window_bounds = array<i64: 2, 1, 32>}, {pipeline_mode = #tpu.pipeline_mode<synchronous>, transform_indices = @transform_13, window_bounds = array<i64: 2, 32, 128>}, {pipeline_mode = #tpu.pipeline_mode<synchronous>, transform_indices = @transform_14, window_bounds = array<i64: 2, 1, 128>}, {pipeline_mode = #tpu.pipeline_mode<synchronous>, transform_indices = @transform_15, window_bounds = array<i64: 2, 128, 32>}, {pipeline_mode = #tpu.pipeline_mode<synchronous>, transform_indices = @transform_16, window_bounds = array<i64: 2, 1, 32>}, {pipeline_mode = #tpu.pipeline_mode<synchronous>, transform_indices = @transform_17, window_bounds = array<i64: 1, 32>}, {pipeline_mode = #tpu.pipeline_mode<synchronous>, transform_indices = @transform_18, window_bounds = array<i64: 1, 32>}, {pipeline_mode = #tpu.pipeline_mode<synchronous>, transform_indices = @transform_19, window_bounds = array<i64: 32, 128>}, {pipeline_mode = #tpu.pipeline_mode<synchronous>, transform_indices = @transform_20, window_bounds = array<i64: 1, 128>}, {pipeline_mode = #tpu.pipeline_mode<synchronous>, transform_indices = @transform_21, window_bounds = array<i64: 8, 128>}, {transform_indices = @transform_22, window_bounds = array<i64: 8, 128>}]} {
    %c0 = arith.constant 0 : index
    %c0_0 = arith.constant 0 : index
    %0 = vector.load %arg1[%c0, %c0_0] : memref<128x128xf32, #tpu.memory_space<vmem>>, vector<128x128xf32>
    %c0_1 = arith.constant 0 : index
    %c0_2 = arith.constant 0 : index
    %1 = vector.load %arg2[%c0_1, %c0_2] : memref<128x32xf32, #tpu.memory_space<vmem>>, vector<128x32xf32>
    %cst = arith.constant dense<0.000000e+00> : vector<128x32xf32>
    %2 = tpu.matmul %0, %1, %cst {dimension_numbers = #tpu.dot_dimension_numbers<[1], [0], [0], [1], [0, 0, 1, 1], [], []>} : vector<128x128xf32>, vector<128x32xf32>, vector<128x32xf32> -> vector<128x32xf32>
    %c0_3 = arith.constant 0 : index
    %c0_4 = arith.constant 0 : index
    %3 = vector.load %arg3[%c0_3, %c0_4] : memref<1x32xf32, #tpu.memory_space<vmem>>, vector<1x32xf32>
    %4 = vector.broadcast %3 : vector<1x32xf32> to vector<128x32xf32>
    %5 = arith.addf %2, %4 : vector<128x32xf32>
    %c0_5 = arith.constant 0 : index
    %c0_6 = arith.constant 0 : index
    %6 = vector.load %arg4[%c0_5, %c0_6] : memref<1x32xf32, #tpu.memory_space<vmem>>, vector<1x32xf32>
    %c0_7 = arith.constant 0 : index
    %c0_8 = arith.constant 0 : index
    %7 = vector.load %arg5[%c0_7, %c0_8] : memref<1x32xf32, #tpu.memory_space<vmem>>, vector<1x32xf32>
    %cst_9 = arith.constant dense<0.000000e+00> : vector<128xf32>
    %8 = vector.multi_reduction <add>, %5, %cst_9 [1] : vector<128x32xf32> to vector<128xf32>
    %9 = vector.shape_cast %8 : vector<128xf32> to vector<128x1xf32>
    %cst_10 = arith.constant 3.200000e+01 : f32
    %10 = vector.broadcast %cst_10 : f32 to vector<128x1xf32>
    %11 = arith.divf %9, %10 : vector<128x1xf32>
    %12 = vector.broadcast %11 : vector<128x1xf32> to vector<128x32xf32>
    %13 = arith.subf %5, %12 : vector<128x32xf32>
    %14 = arith.mulf %13, %13 : vector<128x32xf32>
    %cst_11 = arith.constant dense<0.000000e+00> : vector<128xf32>
    %15 = vector.multi_reduction <add>, %14, %cst_11 [1] : vector<128x32xf32> to vector<128xf32>
    %16 = vector.shape_cast %15 : vector<128xf32> to vector<128x1xf32>
    %cst_12 = arith.constant 3.200000e+01 : f32
    %17 = vector.broadcast %cst_12 : f32 to vector<128x1xf32>
    %18 = arith.divf %16, %17 : vector<128x1xf32>
    %19 = vector.broadcast %11 : vector<128x1xf32> to vector<128x32xf32>
    %20 = arith.subf %5, %19 : vector<128x32xf32>
    %cst_13 = arith.constant 9.99999974E-6 : f32
    %21 = vector.broadcast %cst_13 : f32 to vector<128x1xf32>
    %22 = arith.addf %18, %21 : vector<128x1xf32>
    %23 = math.rsqrt %22 : vector<128x1xf32>
    %24 = vector.broadcast %23 : vector<128x1xf32> to vector<128x32xf32>
    %25 = arith.mulf %20, %24 : vector<128x32xf32>
    %26 = vector.broadcast %6 : vector<1x32xf32> to vector<128x32xf32>
    %27 = arith.mulf %25, %26 : vector<128x32xf32>
    %28 = vector.broadcast %7 : vector<1x32xf32> to vector<128x32xf32>
    %29 = arith.addf %27, %28 : vector<128x32xf32>
    %c0_14 = arith.constant 0 : index
    %c0_15 = arith.constant 0 : index
    %c0_16 = arith.constant 0 : index
    %30 = vector.load %arg6[%c0_14, %c0_15, %c0_16] : memref<2x1x32xf32, #tpu.memory_space<vmem>>, vector<1x1x32xf32>
    %31 = vector.shape_cast %30 : vector<1x1x32xf32> to vector<1x32xf32>
    %c0_17 = arith.constant 0 : index
    %c0_18 = arith.constant 0 : index
    %c0_19 = arith.constant 0 : index
    %32 = vector.load %arg7[%c0_17, %c0_18, %c0_19] : memref<2x1x32xf32, #tpu.memory_space<vmem>>, vector<1x1x32xf32>
    %33 = vector.shape_cast %32 : vector<1x1x32xf32> to vector<1x32xf32>
    %cst_20 = arith.constant dense<0.000000e+00> : vector<128xf32>
    %34 = vector.multi_reduction <add>, %29, %cst_20 [1] : vector<128x32xf32> to vector<128xf32>
    %35 = vector.shape_cast %34 : vector<128xf32> to vector<128x1xf32>
    %cst_21 = arith.constant 3.200000e+01 : f32
    %36 = vector.broadcast %cst_21 : f32 to vector<128x1xf32>
    %37 = arith.divf %35, %36 : vector<128x1xf32>
    %38 = vector.broadcast %37 : vector<128x1xf32> to vector<128x32xf32>
    %39 = arith.subf %29, %38 : vector<128x32xf32>
    %40 = arith.mulf %39, %39 : vector<128x32xf32>
    %cst_22 = arith.constant dense<0.000000e+00> : vector<128xf32>
    %41 = vector.multi_reduction <add>, %40, %cst_22 [1] : vector<128x32xf32> to vector<128xf32>
    %42 = vector.shape_cast %41 : vector<128xf32> to vector<128x1xf32>
    %cst_23 = arith.constant 3.200000e+01 : f32
    %43 = vector.broadcast %cst_23 : f32 to vector<128x1xf32>
    %44 = arith.divf %42, %43 : vector<128x1xf32>
    %45 = vector.broadcast %37 : vector<128x1xf32> to vector<128x32xf32>
    %46 = arith.subf %29, %45 : vector<128x32xf32>
    %cst_24 = arith.constant 9.99999974E-6 : f32
    %47 = vector.broadcast %cst_24 : f32 to vector<128x1xf32>
    %48 = arith.addf %44, %47 : vector<128x1xf32>
    %49 = math.rsqrt %48 : vector<128x1xf32>
    %50 = vector.broadcast %49 : vector<128x1xf32> to vector<128x32xf32>
    %51 = arith.mulf %46, %50 : vector<128x32xf32>
    %52 = vector.broadcast %31 : vector<1x32xf32> to vector<128x32xf32>
    %53 = arith.mulf %51, %52 : vector<128x32xf32>
    %54 = vector.broadcast %33 : vector<1x32xf32> to vector<128x32xf32>
    %55 = arith.addf %53, %54 : vector<128x32xf32>
    %56 = vector.shape_cast %55 : vector<128x32xf32> to vector<8x16x32xf32>
    %57 = tpu.transpose %56, [0, 2, 1] : vector<8x16x32xf32> -> vector<8x32x16xf32>
    %58 = vector.shape_cast %57 : vector<8x32x16xf32> to vector<256x16xf32>
    %c0_25 = arith.constant 0 : index
    %c0_26 = arith.constant 0 : index
    %c0_27 = arith.constant 0 : index
    %59 = vector.load %arg8[%c0_25, %c0_26, %c0_27] : memref<2x16x128xf32, #tpu.memory_space<vmem>>, vector<1x16x128xf32>
    %60 = vector.shape_cast %59 : vector<1x16x128xf32> to vector<16x128xf32>
    %cst_28 = arith.constant dense<0.000000e+00> : vector<256x128xf32>
    %61 = tpu.matmul %58, %60, %cst_28 {dimension_numbers = #tpu.dot_dimension_numbers<[1], [0], [0], [1], [0, 0, 1, 1], [], []>} : vector<256x16xf32>, vector<16x128xf32>, vector<256x128xf32> -> vector<256x128xf32>
    %c0_29 = arith.constant 0 : index
    %c0_30 = arith.constant 0 : index
    %c0_31 = arith.constant 0 : index
    %62 = vector.load %arg9[%c0_29, %c0_30, %c0_31] : memref<2x1x128xf32, #tpu.memory_space<vmem>>, vector<1x1x128xf32>
    %63 = vector.shape_cast %62 : vector<1x1x128xf32> to vector<1x128xf32>
    %64 = vector.broadcast %63 : vector<1x128xf32> to vector<256x128xf32>
    %65 = arith.addf %61, %64 : vector<256x128xf32>
    %cst_32 = arith.constant 5.000000e-01 : f32
    %66 = vector.broadcast %cst_32 : f32 to vector<256x128xf32>
    %67 = arith.mulf %66, %65 : vector<256x128xf32>
    %cst_33 = arith.constant 4.471500e-02 : f32
    %68 = vector.broadcast %cst_33 : f32 to vector<256x128xf32>
    %69 = arith.mulf %68, %65 : vector<256x128xf32>
    %70 = arith.mulf %69, %65 : vector<256x128xf32>
    %71 = arith.mulf %70, %65 : vector<256x128xf32>
    %72 = arith.addf %65, %71 : vector<256x128xf32>
    %cst_34 = arith.constant 0.797884583 : f32
    %73 = vector.broadcast %cst_34 : f32 to vector<256x128xf32>
    %74 = arith.mulf %73, %72 : vector<256x128xf32>
    %75 = math.tanh %74 : vector<256x128xf32>
    %cst_35 = arith.constant 1.000000e+00 : f32
    %76 = vector.broadcast %cst_35 : f32 to vector<256x128xf32>
    %77 = arith.addf %76, %75 : vector<256x128xf32>
    %78 = arith.mulf %67, %77 : vector<256x128xf32>
    %c0_36 = arith.constant 0 : index
    %c0_37 = arith.constant 0 : index
    %c0_38 = arith.constant 0 : index
    %79 = vector.load %arg10[%c0_36, %c0_37, %c0_38] : memref<2x128x16xf32, #tpu.memory_space<vmem>>, vector<1x128x16xf32>
    %80 = vector.shape_cast %79 : vector<1x128x16xf32> to vector<128x16xf32>
    %cst_39 = arith.constant dense<0.000000e+00> : vector<256x16xf32>
    %81 = tpu.matmul %78, %80, %cst_39 {dimension_numbers = #tpu.dot_dimension_numbers<[1], [0], [0], [1], [0, 0, 1, 1], [], []>} : vector<256x128xf32>, vector<128x16xf32>, vector<256x16xf32> -> vector<256x16xf32>
    %c0_40 = arith.constant 0 : index
    %c0_41 = arith.constant 0 : index
    %c0_42 = arith.constant 0 : index
    %82 = vector.load %arg11[%c0_40, %c0_41, %c0_42] : memref<2x1x16xf32, #tpu.memory_space<vmem>>, vector<1x1x16xf32>
    %83 = vector.shape_cast %82 : vector<1x1x16xf32> to vector<1x16xf32>
    %84 = vector.broadcast %83 : vector<1x16xf32> to vector<256x16xf32>
    %85 = arith.addf %81, %84 : vector<256x16xf32>
    %86 = vector.shape_cast %85 : vector<256x16xf32> to vector<8x32x16xf32>
    %87 = tpu.transpose %86, [0, 2, 1] : vector<8x32x16xf32> -> vector<8x16x32xf32>
    %88 = vector.shape_cast %87 : vector<8x16x32xf32> to vector<128x32xf32>
    %89 = arith.addf %29, %88 : vector<128x32xf32>
    %c0_43 = arith.constant 0 : index
    %c0_44 = arith.constant 0 : index
    %c0_45 = arith.constant 0 : index
    %90 = vector.load %arg12[%c0_43, %c0_44, %c0_45] : memref<2x1x32xf32, #tpu.memory_space<vmem>>, vector<1x1x32xf32>
    %91 = vector.shape_cast %90 : vector<1x1x32xf32> to vector<1x32xf32>
    %c0_46 = arith.constant 0 : index
    %c0_47 = arith.constant 0 : index
    %c0_48 = arith.constant 0 : index
    %92 = vector.load %arg13[%c0_46, %c0_47, %c0_48] : memref<2x1x32xf32, #tpu.memory_space<vmem>>, vector<1x1x32xf32>
    %93 = vector.shape_cast %92 : vector<1x1x32xf32> to vector<1x32xf32>
    %cst_49 = arith.constant dense<0.000000e+00> : vector<128xf32>
    %94 = vector.multi_reduction <add>, %89, %cst_49 [1] : vector<128x32xf32> to vector<128xf32>
    %95 = vector.shape_cast %94 : vector<128xf32> to vector<128x1xf32>
    %cst_50 = arith.constant 3.200000e+01 : f32
    %96 = vector.broadcast %cst_50 : f32 to vector<128x1xf32>
    %97 = arith.divf %95, %96 : vector<128x1xf32>
    %98 = vector.broadcast %97 : vector<128x1xf32> to vector<128x32xf32>
    %99 = arith.subf %89, %98 : vector<128x32xf32>
    %100 = arith.mulf %99, %99 : vector<128x32xf32>
    %cst_51 = arith.constant dense<0.000000e+00> : vector<128xf32>
    %101 = vector.multi_reduction <add>, %100, %cst_51 [1] : vector<128x32xf32> to vector<128xf32>
    %102 = vector.shape_cast %101 : vector<128xf32> to vector<128x1xf32>
    %cst_52 = arith.constant 3.200000e+01 : f32
    %103 = vector.broadcast %cst_52 : f32 to vector<128x1xf32>
    %104 = arith.divf %102, %103 : vector<128x1xf32>
    %105 = vector.broadcast %97 : vector<128x1xf32> to vector<128x32xf32>
    %106 = arith.subf %89, %105 : vector<128x32xf32>
    %cst_53 = arith.constant 9.99999974E-6 : f32
    %107 = vector.broadcast %cst_53 : f32 to vector<128x1xf32>
    %108 = arith.addf %104, %107 : vector<128x1xf32>
    %109 = math.rsqrt %108 : vector<128x1xf32>
    %110 = vector.broadcast %109 : vector<128x1xf32> to vector<128x32xf32>
    %111 = arith.mulf %106, %110 : vector<128x32xf32>
    %112 = vector.broadcast %91 : vector<1x32xf32> to vector<128x32xf32>
    %113 = arith.mulf %111, %112 : vector<128x32xf32>
    %114 = vector.broadcast %93 : vector<1x32xf32> to vector<128x32xf32>
    %115 = arith.addf %113, %114 : vector<128x32xf32>
    %c0_54 = arith.constant 0 : index
    %c0_55 = arith.constant 0 : index
    %c0_56 = arith.constant 0 : index
    %116 = vector.load %arg14[%c0_54, %c0_55, %c0_56] : memref<2x32x128xf32, #tpu.memory_space<vmem>>, vector<1x32x128xf32>
    %117 = vector.shape_cast %116 : vector<1x32x128xf32> to vector<32x128xf32>
    %cst_57 = arith.constant dense<0.000000e+00> : vector<128x128xf32>
    %118 = tpu.matmul %115, %117, %cst_57 {dimension_numbers = #tpu.dot_dimension_numbers<[1], [0], [0], [1], [0, 0, 1, 1], [], []>} : vector<128x32xf32>, vector<32x128xf32>, vector<128x128xf32> -> vector<128x128xf32>
    %c0_58 = arith.constant 0 : index
    %c0_59 = arith.constant 0 : index
    %c0_60 = arith.constant 0 : index
    %119 = vector.load %arg15[%c0_58, %c0_59, %c0_60] : memref<2x1x128xf32, #tpu.memory_space<vmem>>, vector<1x1x128xf32>
    %120 = vector.shape_cast %119 : vector<1x1x128xf32> to vector<1x128xf32>
    %121 = vector.broadcast %120 : vector<1x128xf32> to vector<128x128xf32>
    %122 = arith.addf %118, %121 : vector<128x128xf32>
    %cst_61 = arith.constant 5.000000e-01 : f32
    %123 = vector.broadcast %cst_61 : f32 to vector<128x128xf32>
    %124 = arith.mulf %123, %122 : vector<128x128xf32>
    %cst_62 = arith.constant 4.471500e-02 : f32
    %125 = vector.broadcast %cst_62 : f32 to vector<128x128xf32>
    %126 = arith.mulf %125, %122 : vector<128x128xf32>
    %127 = arith.mulf %126, %122 : vector<128x128xf32>
    %128 = arith.mulf %127, %122 : vector<128x128xf32>
    %129 = arith.addf %122, %128 : vector<128x128xf32>
    %cst_63 = arith.constant 0.797884583 : f32
    %130 = vector.broadcast %cst_63 : f32 to vector<128x128xf32>
    %131 = arith.mulf %130, %129 : vector<128x128xf32>
    %132 = math.tanh %131 : vector<128x128xf32>
    %cst_64 = arith.constant 1.000000e+00 : f32
    %133 = vector.broadcast %cst_64 : f32 to vector<128x128xf32>
    %134 = arith.addf %133, %132 : vector<128x128xf32>
    %135 = arith.mulf %124, %134 : vector<128x128xf32>
    %c0_65 = arith.constant 0 : index
    %c0_66 = arith.constant 0 : index
    %c0_67 = arith.constant 0 : index
    %136 = vector.load %arg16[%c0_65, %c0_66, %c0_67] : memref<2x128x32xf32, #tpu.memory_space<vmem>>, vector<1x128x32xf32>
    %137 = vector.shape_cast %136 : vector<1x128x32xf32> to vector<128x32xf32>
    %cst_68 = arith.constant dense<0.000000e+00> : vector<128x32xf32>
    %138 = tpu.matmul %135, %137, %cst_68 {dimension_numbers = #tpu.dot_dimension_numbers<[1], [0], [0], [1], [0, 0, 1, 1], [], []>} : vector<128x128xf32>, vector<128x32xf32>, vector<128x32xf32> -> vector<128x32xf32>
    %c0_69 = arith.constant 0 : index
    %c0_70 = arith.constant 0 : index
    %c0_71 = arith.constant 0 : index
    %139 = vector.load %arg17[%c0_69, %c0_70, %c0_71] : memref<2x1x32xf32, #tpu.memory_space<vmem>>, vector<1x1x32xf32>
    %140 = vector.shape_cast %139 : vector<1x1x32xf32> to vector<1x32xf32>
    %141 = vector.broadcast %140 : vector<1x32xf32> to vector<128x32xf32>
    %142 = arith.addf %138, %141 : vector<128x32xf32>
    %143 = arith.addf %89, %142 : vector<128x32xf32>
    %c1 = arith.constant 1 : index
    %c0_72 = arith.constant 0 : index
    %c0_73 = arith.constant 0 : index
    %144 = vector.load %arg6[%c1, %c0_72, %c0_73] : memref<2x1x32xf32, #tpu.memory_space<vmem>>, vector<1x1x32xf32>
    %145 = vector.shape_cast %144 : vector<1x1x32xf32> to vector<1x32xf32>
    %c1_74 = arith.constant 1 : index
    %c0_75 = arith.constant 0 : index
    %c0_76 = arith.constant 0 : index
    %146 = vector.load %arg7[%c1_74, %c0_75, %c0_76] : memref<2x1x32xf32, #tpu.memory_space<vmem>>, vector<1x1x32xf32>
    %147 = vector.shape_cast %146 : vector<1x1x32xf32> to vector<1x32xf32>
    %cst_77 = arith.constant dense<0.000000e+00> : vector<128xf32>
    %148 = vector.multi_reduction <add>, %143, %cst_77 [1] : vector<128x32xf32> to vector<128xf32>
    %149 = vector.shape_cast %148 : vector<128xf32> to vector<128x1xf32>
    %cst_78 = arith.constant 3.200000e+01 : f32
    %150 = vector.broadcast %cst_78 : f32 to vector<128x1xf32>
    %151 = arith.divf %149, %150 : vector<128x1xf32>
    %152 = vector.broadcast %151 : vector<128x1xf32> to vector<128x32xf32>
    %153 = arith.subf %143, %152 : vector<128x32xf32>
    %154 = arith.mulf %153, %153 : vector<128x32xf32>
    %cst_79 = arith.constant dense<0.000000e+00> : vector<128xf32>
    %155 = vector.multi_reduction <add>, %154, %cst_79 [1] : vector<128x32xf32> to vector<128xf32>
    %156 = vector.shape_cast %155 : vector<128xf32> to vector<128x1xf32>
    %cst_80 = arith.constant 3.200000e+01 : f32
    %157 = vector.broadcast %cst_80 : f32 to vector<128x1xf32>
    %158 = arith.divf %156, %157 : vector<128x1xf32>
    %159 = vector.broadcast %151 : vector<128x1xf32> to vector<128x32xf32>
    %160 = arith.subf %143, %159 : vector<128x32xf32>
    %cst_81 = arith.constant 9.99999974E-6 : f32
    %161 = vector.broadcast %cst_81 : f32 to vector<128x1xf32>
    %162 = arith.addf %158, %161 : vector<128x1xf32>
    %163 = math.rsqrt %162 : vector<128x1xf32>
    %164 = vector.broadcast %163 : vector<128x1xf32> to vector<128x32xf32>
    %165 = arith.mulf %160, %164 : vector<128x32xf32>
    %166 = vector.broadcast %145 : vector<1x32xf32> to vector<128x32xf32>
    %167 = arith.mulf %165, %166 : vector<128x32xf32>
    %168 = vector.broadcast %147 : vector<1x32xf32> to vector<128x32xf32>
    %169 = arith.addf %167, %168 : vector<128x32xf32>
    %170 = vector.shape_cast %169 : vector<128x32xf32> to vector<8x16x32xf32>
    %171 = tpu.transpose %170, [0, 2, 1] : vector<8x16x32xf32> -> vector<8x32x16xf32>
    %172 = vector.shape_cast %171 : vector<8x32x16xf32> to vector<256x16xf32>
    %c1_82 = arith.constant 1 : index
    %c0_83 = arith.constant 0 : index
    %c0_84 = arith.constant 0 : index
    %173 = vector.load %arg8[%c1_82, %c0_83, %c0_84] : memref<2x16x128xf32, #tpu.memory_space<vmem>>, vector<1x16x128xf32>
    %174 = vector.shape_cast %173 : vector<1x16x128xf32> to vector<16x128xf32>
    %cst_85 = arith.constant dense<0.000000e+00> : vector<256x128xf32>
    %175 = tpu.matmul %172, %174, %cst_85 {dimension_numbers = #tpu.dot_dimension_numbers<[1], [0], [0], [1], [0, 0, 1, 1], [], []>} : vector<256x16xf32>, vector<16x128xf32>, vector<256x128xf32> -> vector<256x128xf32>
    %c1_86 = arith.constant 1 : index
    %c0_87 = arith.constant 0 : index
    %c0_88 = arith.constant 0 : index
    %176 = vector.load %arg9[%c1_86, %c0_87, %c0_88] : memref<2x1x128xf32, #tpu.memory_space<vmem>>, vector<1x1x128xf32>
    %177 = vector.shape_cast %176 : vector<1x1x128xf32> to vector<1x128xf32>
    %178 = vector.broadcast %177 : vector<1x128xf32> to vector<256x128xf32>
    %179 = arith.addf %175, %178 : vector<256x128xf32>
    %cst_89 = arith.constant 5.000000e-01 : f32
    %180 = vector.broadcast %cst_89 : f32 to vector<256x128xf32>
    %181 = arith.mulf %180, %179 : vector<256x128xf32>
    %cst_90 = arith.constant 4.471500e-02 : f32
    %182 = vector.broadcast %cst_90 : f32 to vector<256x128xf32>
    %183 = arith.mulf %182, %179 : vector<256x128xf32>
    %184 = arith.mulf %183, %179 : vector<256x128xf32>
    %185 = arith.mulf %184, %179 : vector<256x128xf32>
    %186 = arith.addf %179, %185 : vector<256x128xf32>
    %cst_91 = arith.constant 0.797884583 : f32
    %187 = vector.broadcast %cst_91 : f32 to vector<256x128xf32>
    %188 = arith.mulf %187, %186 : vector<256x128xf32>
    %189 = math.tanh %188 : vector<256x128xf32>
    %cst_92 = arith.constant 1.000000e+00 : f32
    %190 = vector.broadcast %cst_92 : f32 to vector<256x128xf32>
    %191 = arith.addf %190, %189 : vector<256x128xf32>
    %192 = arith.mulf %181, %191 : vector<256x128xf32>
    %c1_93 = arith.constant 1 : index
    %c0_94 = arith.constant 0 : index
    %c0_95 = arith.constant 0 : index
    %193 = vector.load %arg10[%c1_93, %c0_94, %c0_95] : memref<2x128x16xf32, #tpu.memory_space<vmem>>, vector<1x128x16xf32>
    %194 = vector.shape_cast %193 : vector<1x128x16xf32> to vector<128x16xf32>
    %cst_96 = arith.constant dense<0.000000e+00> : vector<256x16xf32>
    %195 = tpu.matmul %192, %194, %cst_96 {dimension_numbers = #tpu.dot_dimension_numbers<[1], [0], [0], [1], [0, 0, 1, 1], [], []>} : vector<256x128xf32>, vector<128x16xf32>, vector<256x16xf32> -> vector<256x16xf32>
    %c1_97 = arith.constant 1 : index
    %c0_98 = arith.constant 0 : index
    %c0_99 = arith.constant 0 : index
    %196 = vector.load %arg11[%c1_97, %c0_98, %c0_99] : memref<2x1x16xf32, #tpu.memory_space<vmem>>, vector<1x1x16xf32>
    %197 = vector.shape_cast %196 : vector<1x1x16xf32> to vector<1x16xf32>
    %198 = vector.broadcast %197 : vector<1x16xf32> to vector<256x16xf32>
    %199 = arith.addf %195, %198 : vector<256x16xf32>
    %200 = vector.shape_cast %199 : vector<256x16xf32> to vector<8x32x16xf32>
    %201 = tpu.transpose %200, [0, 2, 1] : vector<8x32x16xf32> -> vector<8x16x32xf32>
    %202 = vector.shape_cast %201 : vector<8x16x32xf32> to vector<128x32xf32>
    %203 = arith.addf %143, %202 : vector<128x32xf32>
    %c1_100 = arith.constant 1 : index
    %c0_101 = arith.constant 0 : index
    %c0_102 = arith.constant 0 : index
    %204 = vector.load %arg12[%c1_100, %c0_101, %c0_102] : memref<2x1x32xf32, #tpu.memory_space<vmem>>, vector<1x1x32xf32>
    %205 = vector.shape_cast %204 : vector<1x1x32xf32> to vector<1x32xf32>
    %c1_103 = arith.constant 1 : index
    %c0_104 = arith.constant 0 : index
    %c0_105 = arith.constant 0 : index
    %206 = vector.load %arg13[%c1_103, %c0_104, %c0_105] : memref<2x1x32xf32, #tpu.memory_space<vmem>>, vector<1x1x32xf32>
    %207 = vector.shape_cast %206 : vector<1x1x32xf32> to vector<1x32xf32>
    %cst_106 = arith.constant dense<0.000000e+00> : vector<128xf32>
    %208 = vector.multi_reduction <add>, %203, %cst_106 [1] : vector<128x32xf32> to vector<128xf32>
    %209 = vector.shape_cast %208 : vector<128xf32> to vector<128x1xf32>
    %cst_107 = arith.constant 3.200000e+01 : f32
    %210 = vector.broadcast %cst_107 : f32 to vector<128x1xf32>
    %211 = arith.divf %209, %210 : vector<128x1xf32>
    %212 = vector.broadcast %211 : vector<128x1xf32> to vector<128x32xf32>
    %213 = arith.subf %203, %212 : vector<128x32xf32>
    %214 = arith.mulf %213, %213 : vector<128x32xf32>
    %cst_108 = arith.constant dense<0.000000e+00> : vector<128xf32>
    %215 = vector.multi_reduction <add>, %214, %cst_108 [1] : vector<128x32xf32> to vector<128xf32>
    %216 = vector.shape_cast %215 : vector<128xf32> to vector<128x1xf32>
    %cst_109 = arith.constant 3.200000e+01 : f32
    %217 = vector.broadcast %cst_109 : f32 to vector<128x1xf32>
    %218 = arith.divf %216, %217 : vector<128x1xf32>
    %219 = vector.broadcast %211 : vector<128x1xf32> to vector<128x32xf32>
    %220 = arith.subf %203, %219 : vector<128x32xf32>
    %cst_110 = arith.constant 9.99999974E-6 : f32
    %221 = vector.broadcast %cst_110 : f32 to vector<128x1xf32>
    %222 = arith.addf %218, %221 : vector<128x1xf32>
    %223 = math.rsqrt %222 : vector<128x1xf32>
    %224 = vector.broadcast %223 : vector<128x1xf32> to vector<128x32xf32>
    %225 = arith.mulf %220, %224 : vector<128x32xf32>
    %226 = vector.broadcast %205 : vector<1x32xf32> to vector<128x32xf32>
    %227 = arith.mulf %225, %226 : vector<128x32xf32>
    %228 = vector.broadcast %207 : vector<1x32xf32> to vector<128x32xf32>
    %229 = arith.addf %227, %228 : vector<128x32xf32>
    %c1_111 = arith.constant 1 : index
    %c0_112 = arith.constant 0 : index
    %c0_113 = arith.constant 0 : index
    %230 = vector.load %arg14[%c1_111, %c0_112, %c0_113] : memref<2x32x128xf32, #tpu.memory_space<vmem>>, vector<1x32x128xf32>
    %231 = vector.shape_cast %230 : vector<1x32x128xf32> to vector<32x128xf32>
    %cst_114 = arith.constant dense<0.000000e+00> : vector<128x128xf32>
    %232 = tpu.matmul %229, %231, %cst_114 {dimension_numbers = #tpu.dot_dimension_numbers<[1], [0], [0], [1], [0, 0, 1, 1], [], []>} : vector<128x32xf32>, vector<32x128xf32>, vector<128x128xf32> -> vector<128x128xf32>
    %c1_115 = arith.constant 1 : index
    %c0_116 = arith.constant 0 : index
    %c0_117 = arith.constant 0 : index
    %233 = vector.load %arg15[%c1_115, %c0_116, %c0_117] : memref<2x1x128xf32, #tpu.memory_space<vmem>>, vector<1x1x128xf32>
    %234 = vector.shape_cast %233 : vector<1x1x128xf32> to vector<1x128xf32>
    %235 = vector.broadcast %234 : vector<1x128xf32> to vector<128x128xf32>
    %236 = arith.addf %232, %235 : vector<128x128xf32>
    %cst_118 = arith.constant 5.000000e-01 : f32
    %237 = vector.broadcast %cst_118 : f32 to vector<128x128xf32>
    %238 = arith.mulf %237, %236 : vector<128x128xf32>
    %cst_119 = arith.constant 4.471500e-02 : f32
    %239 = vector.broadcast %cst_119 : f32 to vector<128x128xf32>
    %240 = arith.mulf %239, %236 : vector<128x128xf32>
    %241 = arith.mulf %240, %236 : vector<128x128xf32>
    %242 = arith.mulf %241, %236 : vector<128x128xf32>
    %243 = arith.addf %236, %242 : vector<128x128xf32>
    %cst_120 = arith.constant 0.797884583 : f32
    %244 = vector.broadcast %cst_120 : f32 to vector<128x128xf32>
    %245 = arith.mulf %244, %243 : vector<128x128xf32>
    %246 = math.tanh %245 : vector<128x128xf32>
    %cst_121 = arith.constant 1.000000e+00 : f32
    %247 = vector.broadcast %cst_121 : f32 to vector<128x128xf32>
    %248 = arith.addf %247, %246 : vector<128x128xf32>
    %249 = arith.mulf %238, %248 : vector<128x128xf32>
    %c1_122 = arith.constant 1 : index
    %c0_123 = arith.constant 0 : index
    %c0_124 = arith.constant 0 : index
    %250 = vector.load %arg16[%c1_122, %c0_123, %c0_124] : memref<2x128x32xf32, #tpu.memory_space<vmem>>, vector<1x128x32xf32>
    %251 = vector.shape_cast %250 : vector<1x128x32xf32> to vector<128x32xf32>
    %cst_125 = arith.constant dense<0.000000e+00> : vector<128x32xf32>
    %252 = tpu.matmul %249, %251, %cst_125 {dimension_numbers = #tpu.dot_dimension_numbers<[1], [0], [0], [1], [0, 0, 1, 1], [], []>} : vector<128x128xf32>, vector<128x32xf32>, vector<128x32xf32> -> vector<128x32xf32>
    %c1_126 = arith.constant 1 : index
    %c0_127 = arith.constant 0 : index
    %c0_128 = arith.constant 0 : index
    %253 = vector.load %arg17[%c1_126, %c0_127, %c0_128] : memref<2x1x32xf32, #tpu.memory_space<vmem>>, vector<1x1x32xf32>
    %254 = vector.shape_cast %253 : vector<1x1x32xf32> to vector<1x32xf32>
    %255 = vector.broadcast %254 : vector<1x32xf32> to vector<128x32xf32>
    %256 = arith.addf %252, %255 : vector<128x32xf32>
    %257 = arith.addf %203, %256 : vector<128x32xf32>
    %c0_129 = arith.constant 0 : index
    %c0_130 = arith.constant 0 : index
    %258 = vector.load %arg18[%c0_129, %c0_130] : memref<1x32xf32, #tpu.memory_space<vmem>>, vector<1x32xf32>
    %c0_131 = arith.constant 0 : index
    %c0_132 = arith.constant 0 : index
    %259 = vector.load %arg19[%c0_131, %c0_132] : memref<1x32xf32, #tpu.memory_space<vmem>>, vector<1x32xf32>
    %cst_133 = arith.constant dense<0.000000e+00> : vector<128xf32>
    %260 = vector.multi_reduction <add>, %257, %cst_133 [1] : vector<128x32xf32> to vector<128xf32>
    %261 = vector.shape_cast %260 : vector<128xf32> to vector<128x1xf32>
    %cst_134 = arith.constant 3.200000e+01 : f32
    %262 = vector.broadcast %cst_134 : f32 to vector<128x1xf32>
    %263 = arith.divf %261, %262 : vector<128x1xf32>
    %264 = vector.broadcast %263 : vector<128x1xf32> to vector<128x32xf32>
    %265 = arith.subf %257, %264 : vector<128x32xf32>
    %266 = arith.mulf %265, %265 : vector<128x32xf32>
    %cst_135 = arith.constant dense<0.000000e+00> : vector<128xf32>
    %267 = vector.multi_reduction <add>, %266, %cst_135 [1] : vector<128x32xf32> to vector<128xf32>
    %268 = vector.shape_cast %267 : vector<128xf32> to vector<128x1xf32>
    %cst_136 = arith.constant 3.200000e+01 : f32
    %269 = vector.broadcast %cst_136 : f32 to vector<128x1xf32>
    %270 = arith.divf %268, %269 : vector<128x1xf32>
    %271 = vector.broadcast %263 : vector<128x1xf32> to vector<128x32xf32>
    %272 = arith.subf %257, %271 : vector<128x32xf32>
    %cst_137 = arith.constant 9.99999974E-6 : f32
    %273 = vector.broadcast %cst_137 : f32 to vector<128x1xf32>
    %274 = arith.addf %270, %273 : vector<128x1xf32>
    %275 = math.rsqrt %274 : vector<128x1xf32>
    %276 = vector.broadcast %275 : vector<128x1xf32> to vector<128x32xf32>
    %277 = arith.mulf %272, %276 : vector<128x32xf32>
    %278 = vector.broadcast %258 : vector<1x32xf32> to vector<128x32xf32>
    %279 = arith.mulf %277, %278 : vector<128x32xf32>
    %280 = vector.broadcast %259 : vector<1x32xf32> to vector<128x32xf32>
    %281 = arith.addf %279, %280 : vector<128x32xf32>
    %c0_138 = arith.constant 0 : index
    %c0_139 = arith.constant 0 : index
    %282 = vector.load %arg22[%c0_138, %c0_139] : memref<8x128xf32, #tpu.memory_space<vmem>>, vector<8x128xf32>
    %cst_140 = arith.constant dense<0.000000e+00> : vector<8x32xf32>
    %283 = tpu.matmul %282, %281, %cst_140 {dimension_numbers = #tpu.dot_dimension_numbers<[1], [0], [0], [1], [0, 0, 1, 1], [], []>} : vector<8x128xf32>, vector<128x32xf32>, vector<8x32xf32> -> vector<8x32xf32>
    %c0_141 = arith.constant 0 : index
    %c0_142 = arith.constant 0 : index
    %284 = vector.load %arg20[%c0_141, %c0_142] : memref<32x128xf32, #tpu.memory_space<vmem>>, vector<32x128xf32>
    %cst_143 = arith.constant dense<0.000000e+00> : vector<8x128xf32>
    %285 = tpu.matmul %283, %284, %cst_143 {dimension_numbers = #tpu.dot_dimension_numbers<[1], [0], [0], [1], [0, 0, 1, 1], [], []>} : vector<8x32xf32>, vector<32x128xf32>, vector<8x128xf32> -> vector<8x128xf32>
    %c0_144 = arith.constant 0 : index
    %c0_145 = arith.constant 0 : index
    %286 = vector.load %arg21[%c0_144, %c0_145] : memref<1x128xf32, #tpu.memory_space<vmem>>, vector<1x128xf32>
    %287 = vector.broadcast %286 : vector<1x128xf32> to vector<8x128xf32>
    %288 = arith.addf %285, %287 : vector<8x128xf32>
    %289 = arith.negf %288 : vector<8x128xf32>
    %290 = math.exp %289 : vector<8x128xf32>
    %cst_146 = arith.constant 1.000000e+00 : f32
    %291 = vector.broadcast %cst_146 : f32 to vector<8x128xf32>
    %292 = arith.addf %291, %290 : vector<8x128xf32>
    %293 = arith.divf %291, %292 : vector<8x128xf32>
    %c0_147 = arith.constant 0 : index
    %c0_148 = arith.constant 0 : index
    %294 = vector.load %arg23[%c0_147, %c0_148] : memref<8x128xf32, #tpu.memory_space<vmem>>, vector<8x128xf32>
    tpu.vector_store %arg23[%c0_147, %c0_148], %293 {strides = array<i32>} : memref<8x128xf32, #tpu.memory_space<vmem>>, vector<8x128xf32>,
    return
  }
  func.func @transform_0(%arg0: i32) -> (i32, i32) {
    %c0_i32 = arith.constant 0 : i32
    %c0_i32_0 = arith.constant 0 : i32
    return %arg0, %c0_i32 : i32, i32
  }
  func.func @transform_1(%arg0: i32) -> (i32, i32) {
    %c0_i32 = arith.constant 0 : i32
    %c0_i32_0 = arith.constant 0 : i32
    %c0_i32_1 = arith.constant 0 : i32
    return %c0_i32, %c0_i32_0 : i32, i32
  }
  func.func @transform_2(%arg0: i32) -> (i32, i32) {
    %c0_i32 = arith.constant 0 : i32
    %c0_i32_0 = arith.constant 0 : i32
    %c0_i32_1 = arith.constant 0 : i32
    return %c0_i32, %c0_i32_0 : i32, i32
  }
  func.func @transform_3(%arg0: i32) -> (i32, i32) {
    %c0_i32 = arith.constant 0 : i32
    %c0_i32_0 = arith.constant 0 : i32
    %c0_i32_1 = arith.constant 0 : i32
    return %c0_i32, %c0_i32_0 : i32, i32
  }
  func.func @transform_4(%arg0: i32) -> (i32, i32) {
    %c0_i32 = arith.constant 0 : i32
    %c0_i32_0 = arith.constant 0 : i32
    %c0_i32_1 = arith.constant 0 : i32
    return %c0_i32, %c0_i32_0 : i32, i32
  }
  func.func @transform_5(%arg0: i32) -> (i32, i32, i32) {
    %c0_i32 = arith.constant 0 : i32
    %c0_i32_0 = arith.constant 0 : i32
    %c0_i32_1 = arith.constant 0 : i32
    %c0_i32_2 = arith.constant 0 : i32
    return %c0_i32, %c0_i32_0, %c0_i32_1 : i32, i32, i32
  }
  func.func @transform_6(%arg0: i32) -> (i32, i32, i32) {
    %c0_i32 = arith.constant 0 : i32
    %c0_i32_0 = arith.constant 0 : i32
    %c0_i32_1 = arith.constant 0 : i32
    %c0_i32_2 = arith.constant 0 : i32
    return %c0_i32, %c0_i32_0, %c0_i32_1 : i32, i32, i32
  }
  func.func @transform_7(%arg0: i32) -> (i32, i32, i32) {
    %c0_i32 = arith.constant 0 : i32
    %c0_i32_0 = arith.constant 0 : i32
    %c0_i32_1 = arith.constant 0 : i32
    %c0_i32_2 = arith.constant 0 : i32
    return %c0_i32, %c0_i32_0, %c0_i32_1 : i32, i32, i32
  }
  func.func @transform_8(%arg0: i32) -> (i32, i32, i32) {
    %c0_i32 = arith.constant 0 : i32
    %c0_i32_0 = arith.constant 0 : i32
    %c0_i32_1 = arith.constant 0 : i32
    %c0_i32_2 = arith.constant 0 : i32
    return %c0_i32, %c0_i32_0, %c0_i32_1 : i32, i32, i32
  }
  func.func @transform_9(%arg0: i32) -> (i32, i32, i32) {
    %c0_i32 = arith.constant 0 : i32
    %c0_i32_0 = arith.constant 0 : i32
    %c0_i32_1 = arith.constant 0 : i32
    %c0_i32_2 = arith.constant 0 : i32
    return %c0_i32, %c0_i32_0, %c0_i32_1 : i32, i32, i32
  }
  func.func @transform_10(%arg0: i32) -> (i32, i32, i32) {
    %c0_i32 = arith.constant 0 : i32
    %c0_i32_0 = arith.constant 0 : i32
    %c0_i32_1 = arith.constant 0 : i32
    %c0_i32_2 = arith.constant 0 : i32
    return %c0_i32, %c0_i32_0, %c0_i32_1 : i32, i32, i32
  }
  func.func @transform_11(%arg0: i32) -> (i32, i32, i32) {
    %c0_i32 = arith.constant 0 : i32
    %c0_i32_0 = arith.constant 0 : i32
    %c0_i32_1 = arith.constant 0 : i32
    %c0_i32_2 = arith.constant 0 : i32
    return %c0_i32, %c0_i32_0, %c0_i32_1 : i32, i32, i32
  }
  func.func @transform_12(%arg0: i32) -> (i32, i32, i32) {
    %c0_i32 = arith.constant 0 : i32
    %c0_i32_0 = arith.constant 0 : i32
    %c0_i32_1 = arith.constant 0 : i32
    %c0_i32_2 = arith.constant 0 : i32
    return %c0_i32, %c0_i32_0, %c0_i32_1 : i32, i32, i32
  }
  func.func @transform_13(%arg0: i32) -> (i32, i32, i32) {
    %c0_i32 = arith.constant 0 : i32
    %c0_i32_0 = arith.constant 0 : i32
    %c0_i32_1 = arith.constant 0 : i32
    %c0_i32_2 = arith.constant 0 : i32
    return %c0_i32, %c0_i32_0, %c0_i32_1 : i32, i32, i32
  }
  func.func @transform_14(%arg0: i32) -> (i32, i32, i32) {
    %c0_i32 = arith.constant 0 : i32
    %c0_i32_0 = arith.constant 0 : i32
    %c0_i32_1 = arith.constant 0 : i32
    %c0_i32_2 = arith.constant 0 : i32
    return %c0_i32, %c0_i32_0, %c0_i32_1 : i32, i32, i32
  }
  func.func @transform_15(%arg0: i32) -> (i32, i32, i32) {
    %c0_i32 = arith.constant 0 : i32
    %c0_i32_0 = arith.constant 0 : i32
    %c0_i32_1 = arith.constant 0 : i32
    %c0_i32_2 = arith.constant 0 : i32
    return %c0_i32, %c0_i32_0, %c0_i32_1 : i32, i32, i32
  }
  func.func @transform_16(%arg0: i32) -> (i32, i32, i32) {
    %c0_i32 = arith.constant 0 : i32
    %c0_i32_0 = arith.constant 0 : i32
    %c0_i32_1 = arith.constant 0 : i32
    %c0_i32_2 = arith.constant 0 : i32
    return %c0_i32, %c0_i32_0, %c0_i32_1 : i32, i32, i32
  }
  func.func @transform_17(%arg0: i32) -> (i32, i32) {
    %c0_i32 = arith.constant 0 : i32
    %c0_i32_0 = arith.constant 0 : i32
    %c0_i32_1 = arith.constant 0 : i32
    return %c0_i32, %c0_i32_0 : i32, i32
  }
  func.func @transform_18(%arg0: i32) -> (i32, i32) {
    %c0_i32 = arith.constant 0 : i32
    %c0_i32_0 = arith.constant 0 : i32
    %c0_i32_1 = arith.constant 0 : i32
    return %c0_i32, %c0_i32_0 : i32, i32
  }
  func.func @transform_19(%arg0: i32) -> (i32, i32) {
    %c0_i32 = arith.constant 0 : i32
    %c0_i32_0 = arith.constant 0 : i32
    %c0_i32_1 = arith.constant 0 : i32
    return %c0_i32, %c0_i32_0 : i32, i32
  }
  func.func @transform_20(%arg0: i32) -> (i32, i32) {
    %c0_i32 = arith.constant 0 : i32
    %c0_i32_0 = arith.constant 0 : i32
    %c0_i32_1 = arith.constant 0 : i32
    return %c0_i32, %c0_i32_0 : i32, i32
  }
  func.func @transform_21(%arg0: i32) -> (i32, i32) {
    %c0_i32 = arith.constant 0 : i32
    %c0_i32_0 = arith.constant 0 : i32
    %c0_i32_1 = arith.constant 0 : i32
    return %c0_i32, %c0_i32_0 : i32, i32
  }
  func.func @transform_22(%arg0: i32) -> (i32, i32) {
    %c0_i32 = arith.constant 0 : i32
    %c0_i32_0 = arith.constant 0 : i32
    return %arg0, %c0_i32 : i32, i32
  }
}

</mosaic_0001>

<llo_original>
// kernel: tpu_custom_call.1
$region0: #{tpu_custom_call.1}
  #allocation0 [shape = 'u32[]', space=smem, size = 0x4, offset = 0x4, fixed_abs, tag = 'smem constant byte address 0x4 - core index']
  #allocation1 [shape = 'u32[72,128]{1,0:T(1,128)}', space=vmem, size = 0x9000, scoped, tag = 'internal scratch']
  %s0 = inlined_call_operand.vmem [shape: f32[128,128], index: 0, kind: input, shape index: {}]
  %s1 = inlined_call_operand.vmem [shape: f32[128,32], index: 1, kind: input, shape index: {}]
  %s2 = inlined_call_operand.vmem [shape: f32[1,32], index: 2, kind: input, shape index: {}]
  %s3 = inlined_call_operand.vmem [shape: f32[1,32], index: 3, kind: input, shape index: {}]
  %s4 = inlined_call_operand.vmem [shape: f32[1,32], index: 4, kind: input, shape index: {}]
  %s5 = inlined_call_operand.vmem [shape: f32[2,1,32], index: 5, kind: input, shape index: {}]
  %s6 = inlined_call_operand.vmem [shape: f32[2,1,32], index: 6, kind: input, shape index: {}]
  %s7 = inlined_call_operand.vmem [shape: f32[2,16,128], index: 7, kind: input, shape index: {}]
  %s8 = inlined_call_operand.vmem [shape: f32[2,1,128], index: 8, kind: input, shape index: {}]
  %s9 = inlined_call_operand.vmem [shape: f32[2,128,16], index: 9, kind: input, shape index: {}]
  %s10 = inlined_call_operand.vmem [shape: f32[2,1,16], index: 10, kind: input, shape index: {}]
  %s11 = inlined_call_operand.vmem [shape: f32[2,1,32], index: 11, kind: input, shape index: {}]
  %s12 = inlined_call_operand.vmem [shape: f32[2,1,32], index: 12, kind: input, shape index: {}]
  %s13 = inlined_call_operand.vmem [shape: f32[2,32,128], index: 13, kind: input, shape index: {}]
  %s14 = inlined_call_operand.vmem [shape: f32[2,1,128], index: 14, kind: input, shape index: {}]
  %s15 = inlined_call_operand.vmem [shape: f32[2,128,32], index: 15, kind: input, shape index: {}]
  %s16 = inlined_call_operand.vmem [shape: f32[2,1,32], index: 16, kind: input, shape index: {}]
  %s17 = inlined_call_operand.vmem [shape: f32[1,32], index: 17, kind: input, shape index: {}]
  %s18 = inlined_call_operand.vmem [shape: f32[1,32], index: 18, kind: input, shape index: {}]
  %s19 = inlined_call_operand.vmem [shape: f32[32,128], index: 19, kind: input, shape index: {}]
  %s20 = inlined_call_operand.vmem [shape: f32[1,128], index: 20, kind: input, shape index: {}]
  %s21 = inlined_call_operand.vmem [shape: f32[8,128], index: 21, kind: input, shape index: {}]
  %s22 = inlined_call_operand.hbm [shape: f32[8,128], index: 22, kind: output, shape index: {}]
  %s23 = sld [smem:[#allocation0]]
  $region98: #{tpu_custom_call.1} parent=0
    _
  %s25 = ssub.s32 1, %s23
  %s26 = scalar_select 0, %s25, %s23
  $region1: #{tpu_custom_call.1} parent=0
    #allocation2 [shape = 'u8[4096]{0}', space=vmem, size = 0x1000, scoped, tag = 'output window, operand 0, single buffered']
    #allocation3 [shape = 's32[1]{0}', space=sflag, size = 0x4, scoped, tag = 'scoped memory for tpu_custom_call.1']
    %27 = vsyncpa [#allocation3], 0
    // Predicated region
    $region2: #{tpu_custom_call.1} parent=1 // pred_check
      _
    $region3: #{tpu_custom_call.1} parent=1 // pred_check_branch
      %29 = sbr.rel (0) target = $region5
    $region4: #{tpu_custom_call.1} parent=1 // pred_region
      _
    $region5: #{tpu_custom_call.1} parent=1 // pred_fallthru
      _
    // Predicated region
    $region6: #{tpu_custom_call.1} parent=1 // pred_check
      _
    $region7: #{tpu_custom_call.1} parent=1 // pred_check_branch
      %31 = sbr.rel (0) target = $region9
    $region8: #{tpu_custom_call.1} parent=1 // pred_region
      _
    $region9: #{tpu_custom_call.1} parent=1 // pred_fallthru
      _
    // Predicated region
    $region10: #{tpu_custom_call.1} parent=1 // pred_check
      _
    $region11: #{tpu_custom_call.1} parent=1 // pred_check_branch
      %33 = sbr.rel (0) target = $region13
    $region12: #{tpu_custom_call.1} parent=1 // pred_region
      _
    $region13: #{tpu_custom_call.1} parent=1 // pred_fallthru
      _
    // Predicated region
    $region14: #{tpu_custom_call.1} parent=1 // pred_check
      _
    $region15: #{tpu_custom_call.1} parent=1 // pred_check_branch
      %35 = sbr.rel (0) target = $region17
    $region16: #{tpu_custom_call.1} parent=1 // pred_region
      _
    $region17: #{tpu_custom_call.1} parent=1 // pred_fallthru
      _
    // Predicated region
    $region18: #{tpu_custom_call.1} parent=1 // pred_check
      _
    $region19: #{tpu_custom_call.1} parent=1 // pred_check_branch
      %37 = sbr.rel (0) target = $region21
    $region20: #{tpu_custom_call.1} parent=1 // pred_region
      _
    $region21: #{tpu_custom_call.1} parent=1 // pred_fallthru
      _
    // Predicated region
    $region22: #{tpu_custom_call.1} parent=1 // pred_check
      _
    $region23: #{tpu_custom_call.1} parent=1 // pred_check_branch
      %39 = sbr.rel (0) target = $region25
    $region24: #{tpu_custom_call.1} parent=1 // pred_region
      _
    $region25: #{tpu_custom_call.1} parent=1 // pred_fallthru
      _
    // Predicated region
    $region26: #{tpu_custom_call.1} parent=1 // pred_check
      _
    $region27: #{tpu_custom_call.1} parent=1 // pred_check_branch
      %41 = sbr.rel (0) target = $region29
    $region28: #{tpu_custom_call.1} parent=1 // pred_region
      _
    $region29: #{tpu_custom_call.1} parent=1 // pred_fallthru
      _
    // Predicated region
    $region30: #{tpu_custom_call.1} parent=1 // pred_check
      _
    $region31: #{tpu_custom_call.1} parent=1 // pred_check_branch
      %43 = sbr.rel (0) target = $region33
    $region32: #{tpu_custom_call.1} parent=1 // pred_region
      _
    $region33: #{tpu_custom_call.1} parent=1 // pred_fallthru
      _
    // Predicated region
    $region34: #{tpu_custom_call.1} parent=1 // pred_check
      _
    $region35: #{tpu_custom_call.1} parent=1 // pred_check_branch
      %45 = sbr.rel (0) target = $region37
    $region36: #{tpu_custom_call.1} parent=1 // pred_region
      _
    $region37: #{tpu_custom_call.1} parent=1 // pred_fallthru
      _
    // Predicated region
    $region38: #{tpu_custom_call.1} parent=1 // pred_check
      _
    $region39: #{tpu_custom_call.1} parent=1 // pred_check_branch
      %47 = sbr.rel (0) target = $region41
    $region40: #{tpu_custom_call.1} parent=1 // pred_region
      _
    $region41: #{tpu_custom_call.1} parent=1 // pred_fallthru
      _
    // Predicated region
    $region42: #{tpu_custom_call.1} parent=1 // pred_check
      _
    $region43: #{tpu_custom_call.1} parent=1 // pred_check_branch
      %49 = sbr.rel (0) target = $region45
    $region44: #{tpu_custom_call.1} parent=1 // pred_region
      _
    $region45: #{tpu_custom_call.1} parent=1 // pred_fallthru
      _
    // Predicated region
    $region46: #{tpu_custom_call.1} parent=1 // pred_check
      _
    $region47: #{tpu_custom_call.1} parent=1 // pred_check_branch
      %51 = sbr.rel (0) target = $region49
    $region48: #{tpu_custom_call.1} parent=1 // pred_region
      _
    $region49: #{tpu_custom_call.1} parent=1 // pred_fallthru
      _
    // Predicated region
    $region50: #{tpu_custom_call.1} parent=1 // pred_check
      _
    $region51: #{tpu_custom_call.1} parent=1 // pred_check_branch
      %53 = sbr.rel (0) target = $region53
    $region52: #{tpu_custom_call.1} parent=1 // pred_region
      _
    $region53: #{tpu_custom_call.1} parent=1 // pred_fallthru
      _
    // Predicated region
    $region54: #{tpu_custom_call.1} parent=1 // pred_check
      _
    $region55: #{tpu_custom_call.1} parent=1 // pred_check_branch
      %55 = sbr.rel (0) target = $region57
    $region56: #{tpu_custom_call.1} parent=1 // pred_region
      _
    $region57: #{tpu_custom_call.1} parent=1 // pred_fallthru
      _
    // Predicated region
    $region58: #{tpu_custom_call.1} parent=1 // pred_check
      _
    $region59: #{tpu_custom_call.1} parent=1 // pred_check_branch
      %57 = sbr.rel (0) target = $region61
    $region60: #{tpu_custom_call.1} parent=1 // pred_region
      _
    $region61: #{tpu_custom_call.1} parent=1 // pred_fallthru
      _
    // Predicated region
    $region62: #{tpu_custom_call.1} parent=1 // pred_check
      _
    $region63: #{tpu_custom_call.1} parent=1 // pred_check_branch
      %59 = sbr.rel (0) target = $region65
    $region64: #{tpu_custom_call.1} parent=1 // pred_region
      _
    $region65: #{tpu_custom_call.1} parent=1 // pred_fallthru
      _
    // Predicated region
    $region66: #{tpu_custom_call.1} parent=1 // pred_check
      _
    $region67: #{tpu_custom_call.1} parent=1 // pred_check_branch
      %61 = sbr.rel (0) target = $region69
    $region68: #{tpu_custom_call.1} parent=1 // pred_region
      _
    $region69: #{tpu_custom_call.1} parent=1 // pred_fallthru
      _
    // Predicated region
    $region70: #{tpu_custom_call.1} parent=1 // pred_check
      _
    $region71: #{tpu_custom_call.1} parent=1 // pred_check_branch
      %63 = sbr.rel (0) target = $region73
    $region72: #{tpu_custom_call.1} parent=1 // pred_region
      _
    $region73: #{tpu_custom_call.1} parent=1 // pred_fallthru
      _
    // Predicated region
    $region74: #{tpu_custom_call.1} parent=1 // pred_check
      _
    $region75: #{tpu_custom_call.1} parent=1 // pred_check_branch
      %65 = sbr.rel (0) target = $region77
    $region76: #{tpu_custom_call.1} parent=1 // pred_region
      _
    $region77: #{tpu_custom_call.1} parent=1 // pred_fallthru
      _
    // Predicated region
    $region78: #{tpu_custom_call.1} parent=1 // pred_check
      _
    $region79: #{tpu_custom_call.1} parent=1 // pred_check_branch
      %67 = sbr.rel (0) target = $region81
    $region80: #{tpu_custom_call.1} parent=1 // pred_region
      _
    $region81: #{tpu_custom_call.1} parent=1 // pred_fallthru
      _
    // Predicated region
    $region82: #{tpu_custom_call.1} parent=1 // pred_check
      _
    $region83: #{tpu_custom_call.1} parent=1 // pred_check_branch
      %69 = sbr.rel (0) target = $region85
    $region84: #{tpu_custom_call.1} parent=1 // pred_region
      _
    $region85: #{tpu_custom_call.1} parent=1 // pred_fallthru
      _
    // Predicated region
    $region86: #{tpu_custom_call.1} parent=1 // pred_check
      _
    $region87: #{tpu_custom_call.1} parent=1 // pred_check_branch
      %71 = sbr.rel (0) target = $region89
    $region88: #{tpu_custom_call.1} parent=1 // pred_region
      _
    $region89: #{tpu_custom_call.1} parent=1 // pred_fallthru
      _
    %v72 = vld [vmem:[%s0] sm:$0xff]
    %v73 = vld [vmem:[%s0 + $0x8] sm:$0xff]
    %v74 = vld [vmem:[%s0 + $0x10] sm:$0xff]
    %v75 = vld [vmem:[%s0 + $0x18] sm:$0xff]
    %v76 = vld [vmem:[%s0 + $0x20] sm:$0xff]
    %v77 = vld [vmem:[%s0 + $0x28] sm:$0xff]
    %v78 = vld [vmem:[%s0 + $0x30] sm:$0xff]
    %v79 = vld [vmem:[%s0 + $0x38] sm:$0xff]
    %v80 = vld [vmem:[%s0 + $0x40] sm:$0xff]
    %v81 = vld [vmem:[%s0 + $0x48] sm:$0xff]
    %v82 = vld [vmem:[%s0 + $0x50] sm:$0xff]
    %v83 = vld [vmem:[%s0 + $0x58] sm:$0xff]
    %v84 = vld [vmem:[%s0 + $0x60] sm:$0xff]
    %v85 = vld [vmem:[%s0 + $0x68] sm:$0xff]
    %v86 = vld [vmem:[%s0 + $0x70] sm:$0xff]
    %v87 = vld [vmem:[%s0 + $0x78] sm:$0xff]
    %v88 = vld [vmem:[%s1] sm:$0xff]
    %v89 = vld [vmem:[%s1 + $0x8] sm:$0xff]
    %v90 = vld [vmem:[%s1 + $0x10] sm:$0xff]
    %v91 = vld [vmem:[%s1 + $0x18] sm:$0xff]
    %v92 = vld [vmem:[%s1 + $0x20] sm:$0xff]
    %v93 = vld [vmem:[%s1 + $0x28] sm:$0xff]
    %v94 = vld [vmem:[%s1 + $0x30] sm:$0xff]
    %v95 = vld [vmem:[%s1 + $0x38] sm:$0xff]
    %v96 = vld [vmem:[%s1 + $0x40] sm:$0xff]
    %v97 = vld [vmem:[%s1 + $0x48] sm:$0xff]
    %v98 = vld [vmem:[%s1 + $0x50] sm:$0xff]
    %v99 = vld [vmem:[%s1 + $0x58] sm:$0xff]
    %v100 = vld [vmem:[%s1 + $0x60] sm:$0xff]
    %v101 = vld [vmem:[%s1 + $0x68] sm:$0xff]
    %v102 = vld [vmem:[%s1 + $0x70] sm:$0xff]
    %v103 = vld [vmem:[%s1 + $0x78] sm:$0xff]
    %v104 = vld [vmem:[%s2] sm:$0x1]
    %v106 = vperm.slane %v104, 0
    %108 = vmatpush.msra.mxu0 %v103
    %109 = vmatpush.msra.mxu0 %v102
    %110 = vmatpush.msra.mxu0 %v101
    %111 = vmatpush.msra.mxu0 %v100
    %112 = vmatpush.msra.mxu0 %v99
    %113 = vmatpush.msra.mxu0 %v98
    %114 = vmatpush.msra.mxu0 %v97
    %115 = vmatpush.msra.mxu0 %v96
    %116 = vmatpush.msra.mxu0 %v95
    %117 = vmatpush.msra.mxu0 %v94
    %118 = vmatpush.msra.mxu0 %v93
    %119 = vmatpush.msra.mxu0 %v92
    %120 = vmatpush.msra.mxu0 %v91
    %121 = vmatpush.msra.mxu0 %v90
    %122 = vmatpush.msra.mxu0 %v89
    %123 = vmatpush.msra.mxu0 %v88
    %124 = vmatmul.f32.gmra.mxu0 %v72
    %v125 = vpop.f32.mrf.mxu0
    %v126 = vadd.f32 %v106, %v125
    %127 = vmatmul.f32.gmra.mxu0 %v73
    %v128 = vpop.f32.mrf.mxu0
    %v129 = vadd.f32 %v106, %v128
    %130 = vmatmul.f32.gmra.mxu0 %v74
    %v131 = vpop.f32.mrf.mxu0
    %v132 = vadd.f32 %v106, %v131
    %133 = vmatmul.f32.gmra.mxu0 %v75
    %v134 = vpop.f32.mrf.mxu0
    %v135 = vadd.f32 %v106, %v134
    %136 = vmatmul.f32.gmra.mxu0 %v76
    %v137 = vpop.f32.mrf.mxu0
    %v138 = vadd.f32 %v106, %v137
    %139 = vmatmul.f32.gmra.mxu0 %v77
    %v140 = vpop.f32.mrf.mxu0
    %v141 = vadd.f32 %v106, %v140
    %142 = vmatmul.f32.gmra.mxu0 %v78
    %v143 = vpop.f32.mrf.mxu0
    %v144 = vadd.f32 %v106, %v143
    %145 = vmatmul.f32.gmra.mxu0 %v79
    %v146 = vpop.f32.mrf.mxu0
    %v147 = vadd.f32 %v106, %v146
    %148 = vmatmul.f32.gmra.mxu0 %v80
    %v149 = vpop.f32.mrf.mxu0
    %v150 = vadd.f32 %v106, %v149
    %151 = vmatmul.f32.gmra.mxu0 %v81
    %v152 = vpop.f32.mrf.mxu0
    %v153 = vadd.f32 %v106, %v152
    %154 = vmatmul.f32.gmra.mxu0 %v82
    %v155 = vpop.f32.mrf.mxu0
    %v156 = vadd.f32 %v106, %v155
    %157 = vmatmul.f32.gmra.mxu0 %v83
    %v158 = vpop.f32.mrf.mxu0
    %v159 = vadd.f32 %v106, %v158
    %160 = vmatmul.f32.gmra.mxu0 %v84
    %v161 = vpop.f32.mrf.mxu0
    %v162 = vadd.f32 %v106, %v161
    %163 = vmatmul.f32.gmra.mxu0 %v85
    %v164 = vpop.f32.mrf.mxu0
    %v165 = vadd.f32 %v106, %v164
    %166 = vmatmul.f32.gmra.mxu0 %v86
    %v167 = vpop.f32.mrf.mxu0
    %v168 = vadd.f32 %v106, %v167
    %169 = vmatmul.f32.gmra.mxu0 %v87
    %v170 = vpop.f32.mrf.mxu0
    %v171 = vadd.f32 %v106, %v170
    %172 = vdwg.mxu0
    %v173 = vld [vmem:[%s3] sm:$0x1]
    %v174 = vld [vmem:[%s4] sm:$0x1]
    %vm175 = vcmask 261120
    %v176 = vsel %vm175, %v126, 0.0
    %177 = vadd.xlane.f32.xlu0 %v176
    %v178 = vpop.xlane.xlu0 %177
    %v179 = vsel %vm175, %v129, 0.0
    %180 = vadd.xlane.f32.xlu0 %v179
    %v181 = vpop.xlane.xlu0 %180
    %v182 = vsel %vm175, %v132, 0.0
    %183 = vadd.xlane.f32.xlu0 %v182
    %v184 = vpop.xlane.xlu0 %183
    %v185 = vsel %vm175, %v135, 0.0
    %186 = vadd.xlane.f32.xlu0 %v185
    %v187 = vpop.xlane.xlu0 %186
    %v188 = vsel %vm175, %v138, 0.0
    %189 = vadd.xlane.f32.xlu0 %v188
    %v190 = vpop.xlane.xlu0 %189
    %v191 = vsel %vm175, %v141, 0.0
    %192 = vadd.xlane.f32.xlu0 %v191
    %v193 = vpop.xlane.xlu0 %192
    %v194 = vsel %vm175, %v144, 0.0
    %195 = vadd.xlane.f32.xlu0 %v194
    %v196 = vpop.xlane.xlu0 %195
    %v197 = vsel %vm175, %v147, 0.0
    %198 = vadd.xlane.f32.xlu0 %v197
    %v199 = vpop.xlane.xlu0 %198
    %v200 = vsel %vm175, %v150, 0.0
    %201 = vadd.xlane.f32.xlu0 %v200
    %v202 = vpop.xlane.xlu0 %201
    %v203 = vsel %vm175, %v153, 0.0
    %204 = vadd.xlane.f32.xlu0 %v203
    %v205 = vpop.xlane.xlu0 %204
    %v206 = vsel %vm175, %v156, 0.0
    %207 = vadd.xlane.f32.xlu0 %v206
    %v208 = vpop.xlane.xlu0 %207
    %v209 = vsel %vm175, %v159, 0.0
    %210 = vadd.xlane.f32.xlu0 %v209
    %v211 = vpop.xlane.xlu0 %210
    %v212 = vsel %vm175, %v162, 0.0
    %213 = vadd.xlane.f32.xlu0 %v212
    %v214 = vpop.xlane.xlu0 %213
    %v215 = vsel %vm175, %v165, 0.0
    %216 = vadd.xlane.f32.xlu0 %v215
    %v217 = vpop.xlane.xlu0 %216
    %v218 = vsel %vm175, %v168, 0.0
    %219 = vadd.xlane.f32.xlu0 %v218
    %v220 = vpop.xlane.xlu0 %219
    %v221 = vsel %vm175, %v171, 0.0
    %222 = vadd.xlane.f32.xlu0 %v221
    %v223 = vpop.xlane.xlu0 %222
    %v224 = vrcp.pop 32.0
    %v225 = vmul.f32 32.0, %v224
    %v226 = vsub.f32 1.0, %v225
    %v227 = vmul.f32 %v224, %v226
    %v228 = vadd.f32 %v224, %v227
    %vm229 = vweird.f32 %v224
    %v230 = vsel %vm229, %v224, %v228
    %v231 = vmul.f32 %v178, %v230
    %v232 = vmul.f32 %v181, %v230
    %v233 = vmul.f32 %v184, %v230
    %v234 = vmul.f32 %v187, %v230
    %v235 = vmul.f32 %v190, %v230
    %v236 = vmul.f32 %v193, %v230
    %v237 = vmul.f32 %v196, %v230
    %v238 = vmul.f32 %v199, %v230
    %v239 = vmul.f32 %v202, %v230
    %v240 = vmul.f32 %v205, %v230
    %v241 = vmul.f32 %v208, %v230
    %v242 = vmul.f32 %v211, %v230
    %v243 = vmul.f32 %v214, %v230
    %v244 = vmul.f32 %v217, %v230
    %v245 = vmul.f32 %v220, %v230
    %v246 = vmul.f32 %v223, %v230
    %v247 = vsub.f32 %v126, %v231
    %v248 = vsub.f32 %v129, %v232
    %v249 = vsub.f32 %v132, %v233
    %v250 = vsub.f32 %v135, %v234
    %v251 = vsub.f32 %v138, %v235
    %v252 = vsub.f32 %v141, %v236
    %v253 = vsub.f32 %v144, %v237
    %v254 = vsub.f32 %v147, %v238
    %v255 = vsub.f32 %v150, %v239
    %v256 = vsub.f32 %v153, %v240
    %v257 = vsub.f32 %v156, %v241
    %v258 = vsub.f32 %v159, %v242
    %v259 = vsub.f32 %v162, %v243
    %v260 = vsub.f32 %v165, %v244
    %v261 = vsub.f32 %v168, %v245
    %v262 = vsub.f32 %v171, %v246
    %v263 = vmul.f32 %v247, %v247
    %v264 = vmul.f32 %v248, %v248
    %v265 = vmul.f32 %v249, %v249
    %v266 = vmul.f32 %v250, %v250
    %v267 = vmul.f32 %v251, %v251
    %v268 = vmul.f32 %v252, %v252
    %v269 = vmul.f32 %v253, %v253
    %v270 = vmul.f32 %v254, %v254
    %v271 = vmul.f32 %v255, %v255
    %v272 = vmul.f32 %v256, %v256
    %v273 = vmul.f32 %v257, %v257
    %v274 = vmul.f32 %v258, %v258
    %v275 = vmul.f32 %v259, %v259
    %v276 = vmul.f32 %v260, %v260
    %v277 = vmul.f32 %v261, %v261
    %v278 = vmul.f32 %v262, %v262
    %v279 = vsel %vm175, %v263, 0.0
    %280 = vadd.xlane.f32.xlu0 %v279
    %v281 = vpop.xlane.xlu0 %280
    %v282 = vsel %vm175, %v264, 0.0
    %283 = vadd.xlane.f32.xlu0 %v282
    %v284 = vpop.xlane.xlu0 %283
    %v285 = vsel %vm175, %v265, 0.0
    %286 = vadd.xlane.f32.xlu0 %v285
    %v287 = vpop.xlane.xlu0 %286
    %v288 = vsel %vm175, %v266, 0.0
    %289 = vadd.xlane.f32.xlu0 %v288
    %v290 = vpop.xlane.xlu0 %289
    %v291 = vsel %vm175, %v267, 0.0
    %292 = vadd.xlane.f32.xlu0 %v291
    %v293 = vpop.xlane.xlu0 %292
    %v294 = vsel %vm175, %v268, 0.0
    %295 = vadd.xlane.f32.xlu0 %v294
    %v296 = vpop.xlane.xlu0 %295
    %v297 = vsel %vm175, %v269, 0.0
    %298 = vadd.xlane.f32.xlu0 %v297
    %v299 = vpop.xlane.xlu0 %298
    %v300 = vsel %vm175, %v270, 0.0
    %301 = vadd.xlane.f32.xlu0 %v300
    %v302 = vpop.xlane.xlu0 %301
    %v303 = vsel %vm175, %v271, 0.0
    %304 = vadd.xlane.f32.xlu0 %v303
    %v305 = vpop.xlane.xlu0 %304
    %v306 = vsel %vm175, %v272, 0.0
    %307 = vadd.xlane.f32.xlu0 %v306
    %v308 = vpop.xlane.xlu0 %307
    %v309 = vsel %vm175, %v273, 0.0
    %310 = vadd.xlane.f32.xlu0 %v309
    %v311 = vpop.xlane.xlu0 %310
    %v312 = vsel %vm175, %v274, 0.0
    %313 = vadd.xlane.f32.xlu0 %v312
    %v314 = vpop.xlane.xlu0 %313
    %v315 = vsel %vm175, %v275, 0.0
    %316 = vadd.xlane.f32.xlu0 %v315
    %v317 = vpop.xlane.xlu0 %316
    %v318 = vsel %vm175, %v276, 0.0
    %319 = vadd.xlane.f32.xlu0 %v318
    %v320 = vpop.xlane.xlu0 %319
    %v321 = vsel %vm175, %v277, 0.0
    %322 = vadd.xlane.f32.xlu0 %v321
    %v323 = vpop.xlane.xlu0 %322
    %v324 = vsel %vm175, %v278, 0.0
    %325 = vadd.xlane.f32.xlu0 %v324
    %v326 = vpop.xlane.xlu0 %325
    %v327 = vmul.f32 %v281, %v230
    %v328 = vmul.f32 %v284, %v230
    %v329 = vmul.f32 %v287, %v230
    %v330 = vmul.f32 %v290, %v230
    %v331 = vmul.f32 %v293, %v230
    %v332 = vmul.f32 %v296, %v230
    %v333 = vmul.f32 %v299, %v230
    %v334 = vmul.f32 %v302, %v230
    %v335 = vmul.f32 %v305, %v230
    %v336 = vmul.f32 %v308, %v230
    %v337 = vmul.f32 %v311, %v230
    %v338 = vmul.f32 %v314, %v230
    %v339 = vmul.f32 %v317, %v230
    %v340 = vmul.f32 %v320, %v230
    %v341 = vmul.f32 %v323, %v230
    %v342 = vmul.f32 %v326, %v230
    %v343 = vadd.f32 %v327, 1e-05
    %v344 = vadd.f32 %v328, 1e-05
    %v345 = vadd.f32 %v329, 1e-05
    %v346 = vadd.f32 %v330, 1e-05
    %v347 = vadd.f32 %v331, 1e-05
    %v348 = vadd.f32 %v332, 1e-05
    %v349 = vadd.f32 %v333, 1e-05
    %v350 = vadd.f32 %v334, 1e-05
    %v351 = vadd.f32 %v335, 1e-05
    %v352 = vadd.f32 %v336, 1e-05
    %v353 = vadd.f32 %v337, 1e-05
    %v354 = vadd.f32 %v338, 1e-05
    %v355 = vadd.f32 %v339, 1e-05
    %v356 = vadd.f32 %v340, 1e-05
    %v357 = vadd.f32 %v341, 1e-05
    %v358 = vadd.f32 %v342, 1e-05
    %v359 = vrsqrt.pop %v343
    %v360 = vmul.f32 %v359, %v343
    %v361 = vmul.f32 %v360, %v359
    %v362 = vmul.f32 0.5, %v361
    %v363 = vsub.f32 1.5, %v362
    %v364 = vmul.f32 %v359, %v363
    %vm365 = vweird.f32 %v343
    %vm366 = vweird.f32 %v359
    %vm367 = vmor %vm365, %vm366
    %v368 = vsel %vm367, %v359, %v364
    %v369 = vrsqrt.pop %v344
    %v370 = vmul.f32 %v369, %v344
    %v371 = vmul.f32 %v370, %v369
    %v372 = vmul.f32 0.5, %v371
    %v373 = vsub.f32 1.5, %v372
    %v374 = vmul.f32 %v369, %v373
    %vm375 = vweird.f32 %v344
    %vm376 = vweird.f32 %v369
    %vm377 = vmor %vm375, %vm376
    %v378 = vsel %vm377, %v369, %v374
    %v379 = vrsqrt.pop %v345
    %v380 = vmul.f32 %v379, %v345
    %v381 = vmul.f32 %v380, %v379
    %v382 = vmul.f32 0.5, %v381
    %v383 = vsub.f32 1.5, %v382
    %v384 = vmul.f32 %v379, %v383
    %vm385 = vweird.f32 %v345
    %vm386 = vweird.f32 %v379
    %vm387 = vmor %vm385, %vm386
    %v388 = vsel %vm387, %v379, %v384
    %v389 = vrsqrt.pop %v346
    %v390 = vmul.f32 %v389, %v346
    %v391 = vmul.f32 %v390, %v389
    %v392 = vmul.f32 0.5, %v391
    %v393 = vsub.f32 1.5, %v392
    %v394 = vmul.f32 %v389, %v393
    %vm395 = vweird.f32 %v346
    %vm396 = vweird.f32 %v389
    %vm397 = vmor %vm395, %vm396
    %v398 = vsel %vm397, %v389, %v394
    %v399 = vrsqrt.pop %v347
    %v400 = vmul.f32 %v399, %v347
    %v401 = vmul.f32 %v400, %v399
    %v402 = vmul.f32 0.5, %v401
    %v403 = vsub.f32 1.5, %v402
    %v404 = vmul.f32 %v399, %v403
    %vm405 = vweird.f32 %v347
    %vm406 = vweird.f32 %v399
    %vm407 = vmor %vm405, %vm406
    %v408 = vsel %vm407, %v399, %v404
    %v409 = vrsqrt.pop %v348
    %v410 = vmul.f32 %v409, %v348
    %v411 = vmul.f32 %v410, %v409
    %v412 = vmul.f32 0.5, %v411
    %v413 = vsub.f32 1.5, %v412
    %v414 = vmul.f32 %v409, %v413
    %vm415 = vweird.f32 %v348
    %vm416 = vweird.f32 %v409
    %vm417 = vmor %vm415, %vm416
    %v418 = vsel %vm417, %v409, %v414
    %v419 = vrsqrt.pop %v349
    %v420 = vmul.f32 %v419, %v349
    %v421 = vmul.f32 %v420, %v419
    %v422 = vmul.f32 0.5, %v421
    %v423 = vsub.f32 1.5, %v422
    %v424 = vmul.f32 %v419, %v423
    %vm425 = vweird.f32 %v349
    %vm426 = vweird.f32 %v419
    %vm427 = vmor %vm425, %vm426
    %v428 = vsel %vm427, %v419, %v424
    %v429 = vrsqrt.pop %v350
    %v430 = vmul.f32 %v429, %v350
    %v431 = vmul.f32 %v430, %v429
    %v432 = vmul.f32 0.5, %v431
    %v433 = vsub.f32 1.5, %v432
    %v434 = vmul.f32 %v429, %v433
    %vm435 = vweird.f32 %v350
    %vm436 = vweird.f32 %v429
    %vm437 = vmor %vm435, %vm436
    %v438 = vsel %vm437, %v429, %v434
    %v439 = vrsqrt.pop %v351
    %v440 = vmul.f32 %v439, %v351
    %v441 = vmul.f32 %v440, %v439
    %v442 = vmul.f32 0.5, %v441
    %v443 = vsub.f32 1.5, %v442
    %v444 = vmul.f32 %v439, %v443
    %vm445 = vweird.f32 %v351
    %vm446 = vweird.f32 %v439
    %vm447 = vmor %vm445, %vm446
    %v448 = vsel %vm447, %v439, %v444
    %v449 = vrsqrt.pop %v352
    %v450 = vmul.f32 %v449, %v352
    %v451 = vmul.f32 %v450, %v449
    %v452 = vmul.f32 0.5, %v451
    %v453 = vsub.f32 1.5, %v452
    %v454 = vmul.f32 %v449, %v453
    %vm455 = vweird.f32 %v352
    %vm456 = vweird.f32 %v449
    %vm457 = vmor %vm455, %vm456
    %v458 = vsel %vm457, %v449, %v454
    %v459 = vrsqrt.pop %v353
    %v460 = vmul.f32 %v459, %v353
    %v461 = vmul.f32 %v460, %v459
    %v462 = vmul.f32 0.5, %v461
    %v463 = vsub.f32 1.5, %v462
    %v464 = vmul.f32 %v459, %v463
    %vm465 = vweird.f32 %v353
    %vm466 = vweird.f32 %v459
    %vm467 = vmor %vm465, %vm466
    %v468 = vsel %vm467, %v459, %v464
    %v469 = vrsqrt.pop %v354
    %v470 = vmul.f32 %v469, %v354
    %v471 = vmul.f32 %v470, %v469
    %v472 = vmul.f32 0.5, %v471
    %v473 = vsub.f32 1.5, %v472
    %v474 = vmul.f32 %v469, %v473
    %vm475 = vweird.f32 %v354
    %vm476 = vweird.f32 %v469
    %vm477 = vmor %vm475, %vm476
    %v478 = vsel %vm477, %v469, %v474
    %v479 = vrsqrt.pop %v355
    %v480 = vmul.f32 %v479, %v355
    %v481 = vmul.f32 %v480, %v479
    %v482 = vmul.f32 0.5, %v481
    %v483 = vsub.f32 1.5, %v482
    %v484 = vmul.f32 %v479, %v483
    %vm485 = vweird.f32 %v355
    %vm486 = vweird.f32 %v479
    %vm487 = vmor %vm485, %vm486
    %v488 = vsel %vm487, %v479, %v484
    %v489 = vrsqrt.pop %v356
    %v490 = vmul.f32 %v489, %v356
    %v491 = vmul.f32 %v490, %v489
    %v492 = vmul.f32 0.5, %v491
    %v493 = vsub.f32 1.5, %v492
    %v494 = vmul.f32 %v489, %v493
    %vm495 = vweird.f32 %v356
    %vm496 = vweird.f32 %v489
    %vm497 = vmor %vm495, %vm496
    %v498 = vsel %vm497, %v489, %v494
    %v499 = vrsqrt.pop %v357
    %v500 = vmul.f32 %v499, %v357
    %v501 = vmul.f32 %v500, %v499
    %v502 = vmul.f32 0.5, %v501
    %v503 = vsub.f32 1.5, %v502
    %v504 = vmul.f32 %v499, %v503
    %vm505 = vweird.f32 %v357
    %vm506 = vweird.f32 %v499
    %vm507 = vmor %vm505, %vm506
    %v508 = vsel %vm507, %v499, %v504
    %v509 = vrsqrt.pop %v358
    %v510 = vmul.f32 %v509, %v358
    %v511 = vmul.f32 %v510, %v509
    %v512 = vmul.f32 0.5, %v511
    %v513 = vsub.f32 1.5, %v512
    %v514 = vmul.f32 %v509, %v513
    %vm515 = vweird.f32 %v358
    %vm516 = vweird.f32 %v509
    %vm517 = vmor %vm515, %vm516
    %v518 = vsel %vm517, %v509, %v514
    %v519 = vmul.f32 %v247, %v368
    %v520 = vmul.f32 %v248, %v378
    %v521 = vmul.f32 %v249, %v388
    %v522 = vmul.f32 %v250, %v398
    %v523 = vmul.f32 %v251, %v408
    %v524 = vmul.f32 %v252, %v418
    %v525 = vmul.f32 %v253, %v428
    %v526 = vmul.f32 %v254, %v438
    %v527 = vmul.f32 %v255, %v448
    %v528 = vmul.f32 %v256, %v458
    %v529 = vmul.f32 %v257, %v468
    %v530 = vmul.f32 %v258, %v478
    %v531 = vmul.f32 %v259, %v488
    %v532 = vmul.f32 %v260, %v498
    %v533 = vmul.f32 %v261, %v508
    %v534 = vmul.f32 %v262, %v518
    %v536 = vperm.slane %v173, 0
    %v538 = vmul.f32 %v519, %v536
    %v539 = vmul.f32 %v520, %v536
    %v540 = vmul.f32 %v521, %v536
    %v541 = vmul.f32 %v522, %v536
    %v542 = vmul.f32 %v523, %v536
    %v543 = vmul.f32 %v524, %v536
    %v544 = vmul.f32 %v525, %v536
    %v545 = vmul.f32 %v526, %v536
    %v546 = vmul.f32 %v527, %v536
    %v547 = vmul.f32 %v528, %v536
    %v548 = vmul.f32 %v529, %v536
    %v549 = vmul.f32 %v530, %v536
    %v550 = vmul.f32 %v531, %v536
    %v551 = vmul.f32 %v532, %v536
    %v552 = vmul.f32 %v533, %v536
    %v553 = vmul.f32 %v534, %v536
    %v555 = vperm.slane %v174, 0
    %v557 = vadd.f32 %v538, %v555
    %v558 = vadd.f32 %v539, %v555
    %v559 = vadd.f32 %v540, %v555
    %v560 = vadd.f32 %v541, %v555
    %v561 = vadd.f32 %v542, %v555
    %v562 = vadd.f32 %v543, %v555
    %v563 = vadd.f32 %v544, %v555
    %v564 = vadd.f32 %v545, %v555
    %v565 = vadd.f32 %v546, %v555
    %v566 = vadd.f32 %v547, %v555
    %v567 = vadd.f32 %v548, %v555
    %v568 = vadd.f32 %v549, %v555
    %v569 = vadd.f32 %v550, %v555
    %v570 = vadd.f32 %v551, %v555
    %v571 = vadd.f32 %v552, %v555
    %v572 = vadd.f32 %v553, %v555
    %v573 = vld [vmem:[%s5] sm:$0x1]
    %v574 = vld [vmem:[%s6] sm:$0x1]
    %v575 = vsel %vm175, %v557, 0.0
    %576 = vadd.xlane.f32.xlu0 %v575
    %v577 = vpop.xlane.xlu0 %576
    %v578 = vsel %vm175, %v558, 0.0
    %579 = vadd.xlane.f32.xlu0 %v578
    %v580 = vpop.xlane.xlu0 %579
    %v581 = vsel %vm175, %v559, 0.0
    %582 = vadd.xlane.f32.xlu0 %v581
    %v583 = vpop.xlane.xlu0 %582
    %v584 = vsel %vm175, %v560, 0.0
    %585 = vadd.xlane.f32.xlu0 %v584
    %v586 = vpop.xlane.xlu0 %585
    %v587 = vsel %vm175, %v561, 0.0
    %588 = vadd.xlane.f32.xlu0 %v587
    %v589 = vpop.xlane.xlu0 %588
    %v590 = vsel %vm175, %v562, 0.0
    %591 = vadd.xlane.f32.xlu0 %v590
    %v592 = vpop.xlane.xlu0 %591
    %v593 = vsel %vm175, %v563, 0.0
    %594 = vadd.xlane.f32.xlu0 %v593
    %v595 = vpop.xlane.xlu0 %594
    %v596 = vsel %vm175, %v564, 0.0
    %597 = vadd.xlane.f32.xlu0 %v596
    %v598 = vpop.xlane.xlu0 %597
    %v599 = vsel %vm175, %v565, 0.0
    %600 = vadd.xlane.f32.xlu0 %v599
    %v601 = vpop.xlane.xlu0 %600
    %v602 = vsel %vm175, %v566, 0.0
    %603 = vadd.xlane.f32.xlu0 %v602
    %v604 = vpop.xlane.xlu0 %603
    %v605 = vsel %vm175, %v567, 0.0
    %606 = vadd.xlane.f32.xlu0 %v605
    %v607 = vpop.xlane.xlu0 %606
    %v608 = vsel %vm175, %v568, 0.0
    %609 = vadd.xlane.f32.xlu0 %v608
    %v610 = vpop.xlane.xlu0 %609
    %v611 = vsel %vm175, %v569, 0.0
    %612 = vadd.xlane.f32.xlu0 %v611
    %v613 = vpop.xlane.xlu0 %612
    %v614 = vsel %vm175, %v570, 0.0
    %615 = vadd.xlane.f32.xlu0 %v614
    %v616 = vpop.xlane.xlu0 %615
    %v617 = vsel %vm175, %v571, 0.0
    %618 = vadd.xlane.f32.xlu0 %v617
    %v619 = vpop.xlane.xlu0 %618
    %v620 = vsel %vm175, %v572, 0.0
    %621 = vadd.xlane.f32.xlu0 %v620
    %v622 = vpop.xlane.xlu0 %621
    %v623 = vmul.f32 %v577, %v230
    %v624 = vmul.f32 %v580, %v230
    %v625 = vmul.f32 %v583, %v230
    %v626 = vmul.f32 %v586, %v230
    %v627 = vmul.f32 %v589, %v230
    %v628 = vmul.f32 %v592, %v230
    %v629 = vmul.f32 %v595, %v230
    %v630 = vmul.f32 %v598, %v230
    %v631 = vmul.f32 %v601, %v230
    %v632 = vmul.f32 %v604, %v230
    %v633 = vmul.f32 %v607, %v230
    %v634 = vmul.f32 %v610, %v230
    %v635 = vmul.f32 %v613, %v230
    %v636 = vmul.f32 %v616, %v230
    %v637 = vmul.f32 %v619, %v230
    %v638 = vmul.f32 %v622, %v230
    %v639 = vsub.f32 %v557, %v623
    %v640 = vsub.f32 %v558, %v624
    %v641 = vsub.f32 %v559, %v625
    %v642 = vsub.f32 %v560, %v626
    %v643 = vsub.f32 %v561, %v627
    %v644 = vsub.f32 %v562, %v628
    %v645 = vsub.f32 %v563, %v629
    %v646 = vsub.f32 %v564, %v630
    %v647 = vsub.f32 %v565, %v631
    %v648 = vsub.f32 %v566, %v632
    %v649 = vsub.f32 %v567, %v633
    %v650 = vsub.f32 %v568, %v634
    %v651 = vsub.f32 %v569, %v635
    %v652 = vsub.f32 %v570, %v636
    %v653 = vsub.f32 %v571, %v637
    %v654 = vsub.f32 %v572, %v638
    %v655 = vmul.f32 %v639, %v639
    %v656 = vmul.f32 %v640, %v640
    %v657 = vmul.f32 %v641, %v641
    %v658 = vmul.f32 %v642, %v642
    %v659 = vmul.f32 %v643, %v643
    %v660 = vmul.f32 %v644, %v644
    %v661 = vmul.f32 %v645, %v645
    %v662 = vmul.f32 %v646, %v646
    %v663 = vmul.f32 %v647, %v647
    %v664 = vmul.f32 %v648, %v648
    %v665 = vmul.f32 %v649, %v649
    %v666 = vmul.f32 %v650, %v650
    %v667 = vmul.f32 %v651, %v651
    %v668 = vmul.f32 %v652, %v652
    %v669 = vmul.f32 %v653, %v653
    %v670 = vmul.f32 %v654, %v654
    %v671 = vsel %vm175, %v655, 0.0
    %672 = vadd.xlane.f32.xlu0 %v671
    %v673 = vpop.xlane.xlu0 %672
    %v674 = vsel %vm175, %v656, 0.0
    %675 = vadd.xlane.f32.xlu0 %v674
    %v676 = vpop.xlane.xlu0 %675
    %v677 = vsel %vm175, %v657, 0.0
    %678 = vadd.xlane.f32.xlu0 %v677
    %v679 = vpop.xlane.xlu0 %678
    %v680 = vsel %vm175, %v658, 0.0
    %681 = vadd.xlane.f32.xlu0 %v680
    %v682 = vpop.xlane.xlu0 %681
    %v683 = vsel %vm175, %v659, 0.0
    %684 = vadd.xlane.f32.xlu0 %v683
    %v685 = vpop.xlane.xlu0 %684
    %v686 = vsel %vm175, %v660, 0.0
    %687 = vadd.xlane.f32.xlu0 %v686
    %v688 = vpop.xlane.xlu0 %687
    %v689 = vsel %vm175, %v661, 0.0
    %690 = vadd.xlane.f32.xlu0 %v689
    %v691 = vpop.xlane.xlu0 %690
    %v692 = vsel %vm175, %v662, 0.0
    %693 = vadd.xlane.f32.xlu0 %v692
    %v694 = vpop.xlane.xlu0 %693
    %v695 = vsel %vm175, %v663, 0.0
    %696 = vadd.xlane.f32.xlu0 %v695
    %v697 = vpop.xlane.xlu0 %696
    %v698 = vsel %vm175, %v664, 0.0
    %699 = vadd.xlane.f32.xlu0 %v698
    %v700 = vpop.xlane.xlu0 %699
    %v701 = vsel %vm175, %v665, 0.0
    %702 = vadd.xlane.f32.xlu0 %v701
    %v703 = vpop.xlane.xlu0 %702
    %v704 = vsel %vm175, %v666, 0.0
    %705 = vadd.xlane.f32.xlu0 %v704
    %v706 = vpop.xlane.xlu0 %705
    %v707 = vsel %vm175, %v667, 0.0
    %708 = vadd.xlane.f32.xlu0 %v707
    %v709 = vpop.xlane.xlu0 %708
    %v710 = vsel %vm175, %v668, 0.0
    %711 = vadd.xlane.f32.xlu0 %v710
    %v712 = vpop.xlane.xlu0 %711
    %v713 = vsel %vm175, %v669, 0.0
    %714 = vadd.xlane.f32.xlu0 %v713
    %v715 = vpop.xlane.xlu0 %714
    %v716 = vsel %vm175, %v670, 0.0
    %717 = vadd.xlane.f32.xlu0 %v716
    %v718 = vpop.xlane.xlu0 %717
    %v719 = vmul.f32 %v673, %v230
    %v720 = vmul.f32 %v676, %v230
    %v721 = vmul.f32 %v679, %v230
    %v722 = vmul.f32 %v682, %v230
    %v723 = vmul.f32 %v685, %v230
    %v724 = vmul.f32 %v688, %v230
    %v725 = vmul.f32 %v691, %v230
    %v726 = vmul.f32 %v694, %v230
    %v727 = vmul.f32 %v697, %v230
    %v728 = vmul.f32 %v700, %v230
    %v729 = vmul.f32 %v703, %v230
    %v730 = vmul.f32 %v706, %v230
    %v731 = vmul.f32 %v709, %v230
    %v732 = vmul.f32 %v712, %v230
    %v733 = vmul.f32 %v715, %v230
    %v734 = vmul.f32 %v718, %v230
    %v735 = vadd.f32 %v719, 1e-05
    %v736 = vadd.f32 %v720, 1e-05
    %v737 = vadd.f32 %v721, 1e-05
    %v738 = vadd.f32 %v722, 1e-05
    %v739 = vadd.f32 %v723, 1e-05
    %v740 = vadd.f32 %v724, 1e-05
    %v741 = vadd.f32 %v725, 1e-05
    %v742 = vadd.f32 %v726, 1e-05
    %v743 = vadd.f32 %v727, 1e-05
    %v744 = vadd.f32 %v728, 1e-05
    %v745 = vadd.f32 %v729, 1e-05
    %v746 = vadd.f32 %v730, 1e-05
    %v747 = vadd.f32 %v731, 1e-05
    %v748 = vadd.f32 %v732, 1e-05
    %v749 = vadd.f32 %v733, 1e-05
    %v750 = vadd.f32 %v734, 1e-05
    %v751 = vrsqrt.pop %v735
    %v752 = vmul.f32 %v751, %v735
    %v753 = vmul.f32 %v752, %v751
    %v754 = vmul.f32 0.5, %v753
    %v755 = vsub.f32 1.5, %v754
    %v756 = vmul.f32 %v751, %v755
    %vm757 = vweird.f32 %v735
    %vm758 = vweird.f32 %v751
    %vm759 = vmor %vm757, %vm758
    %v760 = vsel %vm759, %v751, %v756
    %v761 = vrsqrt.pop %v736
    %v762 = vmul.f32 %v761, %v736
    %v763 = vmul.f32 %v762, %v761
    %v764 = vmul.f32 0.5, %v763
    %v765 = vsub.f32 1.5, %v764
    %v766 = vmul.f32 %v761, %v765
    %vm767 = vweird.f32 %v736
    %vm768 = vweird.f32 %v761
    %vm769 = vmor %vm767, %vm768
    %v770 = vsel %vm769, %v761, %v766
    %v771 = vrsqrt.pop %v737
    %v772 = vmul.f32 %v771, %v737
    %v773 = vmul.f32 %v772, %v771
    %v774 = vmul.f32 0.5, %v773
    %v775 = vsub.f32 1.5, %v774
    %v776 = vmul.f32 %v771, %v775
    %vm777 = vweird.f32 %v737
    %vm778 = vweird.f32 %v771
    %vm779 = vmor %vm777, %vm778
    %v780 = vsel %vm779, %v771, %v776
    %v781 = vrsqrt.pop %v738
    %v782 = vmul.f32 %v781, %v738
    %v783 = vmul.f32 %v782, %v781
    %v784 = vmul.f32 0.5, %v783
    %v785 = vsub.f32 1.5, %v784
    %v786 = vmul.f32 %v781, %v785
    %vm787 = vweird.f32 %v738
    %vm788 = vweird.f32 %v781
    %vm789 = vmor %vm787, %vm788
    %v790 = vsel %vm789, %v781, %v786
    %v791 = vrsqrt.pop %v739
    %v792 = vmul.f32 %v791, %v739
    %v793 = vmul.f32 %v792, %v791
    %v794 = vmul.f32 0.5, %v793
    %v795 = vsub.f32 1.5, %v794
    %v796 = vmul.f32 %v791, %v795
    %vm797 = vweird.f32 %v739
    %vm798 = vweird.f32 %v791
    %vm799 = vmor %vm797, %vm798
    %v800 = vsel %vm799, %v791, %v796
    %v801 = vrsqrt.pop %v740
    %v802 = vmul.f32 %v801, %v740
    %v803 = vmul.f32 %v802, %v801
    %v804 = vmul.f32 0.5, %v803
    %v805 = vsub.f32 1.5, %v804
    %v806 = vmul.f32 %v801, %v805
    %vm807 = vweird.f32 %v740
    %vm808 = vweird.f32 %v801
    %vm809 = vmor %vm807, %vm808
    %v810 = vsel %vm809, %v801, %v806
    %v811 = vrsqrt.pop %v741
    %v812 = vmul.f32 %v811, %v741
    %v813 = vmul.f32 %v812, %v811
    %v814 = vmul.f32 0.5, %v813
    %v815 = vsub.f32 1.5, %v814
    %v816 = vmul.f32 %v811, %v815
    %vm817 = vweird.f32 %v741
    %vm818 = vweird.f32 %v811
    %vm819 = vmor %vm817, %vm818
    %v820 = vsel %vm819, %v811, %v816
    %v821 = vrsqrt.pop %v742
    %v822 = vmul.f32 %v821, %v742
    %v823 = vmul.f32 %v822, %v821
    %v824 = vmul.f32 0.5, %v823
    %v825 = vsub.f32 1.5, %v824
    %v826 = vmul.f32 %v821, %v825
    %vm827 = vweird.f32 %v742
    %vm828 = vweird.f32 %v821
    %vm829 = vmor %vm827, %vm828
    %v830 = vsel %vm829, %v821, %v826
    %v831 = vrsqrt.pop %v743
    %v832 = vmul.f32 %v831, %v743
    %v833 = vmul.f32 %v832, %v831
    %v834 = vmul.f32 0.5, %v833
    %v835 = vsub.f32 1.5, %v834
    %v836 = vmul.f32 %v831, %v835
    %vm837 = vweird.f32 %v743
    %vm838 = vweird.f32 %v831
    %vm839 = vmor %vm837, %vm838
    %v840 = vsel %vm839, %v831, %v836
    %v841 = vrsqrt.pop %v744
    %v842 = vmul.f32 %v841, %v744
    %v843 = vmul.f32 %v842, %v841
    %v844 = vmul.f32 0.5, %v843
    %v845 = vsub.f32 1.5, %v844
    %v846 = vmul.f32 %v841, %v845
    %vm847 = vweird.f32 %v744
    %vm848 = vweird.f32 %v841
    %vm849 = vmor %vm847, %vm848
    %v850 = vsel %vm849, %v841, %v846
    %v851 = vrsqrt.pop %v745
    %v852 = vmul.f32 %v851, %v745
    %v853 = vmul.f32 %v852, %v851
    %v854 = vmul.f32 0.5, %v853
    %v855 = vsub.f32 1.5, %v854
    %v856 = vmul.f32 %v851, %v855
    %vm857 = vweird.f32 %v745
    %vm858 = vweird.f32 %v851
    %vm859 = vmor %vm857, %vm858
    %v860 = vsel %vm859, %v851, %v856
    %v861 = vrsqrt.pop %v746
    %v862 = vmul.f32 %v861, %v746
    %v863 = vmul.f32 %v862, %v861
    %v864 = vmul.f32 0.5, %v863
    %v865 = vsub.f32 1.5, %v864
    %v866 = vmul.f32 %v861, %v865
    %vm867 = vweird.f32 %v746
    %vm868 = vweird.f32 %v861
    %vm869 = vmor %vm867, %vm868
    %v870 = vsel %vm869, %v861, %v866
    %v871 = vrsqrt.pop %v747
    %v872 = vmul.f32 %v871, %v747
    %v873 = vmul.f32 %v872, %v871
    %v874 = vmul.f32 0.5, %v873
    %v875 = vsub.f32 1.5, %v874
    %v876 = vmul.f32 %v871, %v875
    %vm877 = vweird.f32 %v747
    %vm878 = vweird.f32 %v871
    %vm879 = vmor %vm877, %vm878
    %v880 = vsel %vm879, %v871, %v876
    %v881 = vrsqrt.pop %v748
    %v882 = vmul.f32 %v881, %v748
    %v883 = vmul.f32 %v882, %v881
    %v884 = vmul.f32 0.5, %v883
    %v885 = vsub.f32 1.5, %v884
    %v886 = vmul.f32 %v881, %v885
    %vm887 = vweird.f32 %v748
    %vm888 = vweird.f32 %v881
    %vm889 = vmor %vm887, %vm888
    %v890 = vsel %vm889, %v881, %v886
    %v891 = vrsqrt.pop %v749
    %v892 = vmul.f32 %v891, %v749
    %v893 = vmul.f32 %v892, %v891
    %v894 = vmul.f32 0.5, %v893
    %v895 = vsub.f32 1.5, %v894
    %v896 = vmul.f32 %v891, %v895
    %vm897 = vweird.f32 %v749
    %vm898 = vweird.f32 %v891
    %vm899 = vmor %vm897, %vm898
    %v900 = vsel %vm899, %v891, %v896
    %v901 = vrsqrt.pop %v750
    %v902 = vmul.f32 %v901, %v750
    %v903 = vmul.f32 %v902, %v901
    %v904 = vmul.f32 0.5, %v903
    %v905 = vsub.f32 1.5, %v904
    %v906 = vmul.f32 %v901, %v905
    %vm907 = vweird.f32 %v750
    %vm908 = vweird.f32 %v901
    %vm909 = vmor %vm907, %vm908
    %v910 = vsel %vm909, %v901, %v906
    %v911 = vmul.f32 %v639, %v760
    %v912 = vmul.f32 %v640, %v770
    %v913 = vmul.f32 %v641, %v780
    %v914 = vmul.f32 %v642, %v790
    %v915 = vmul.f32 %v643, %v800
    %v916 = vmul.f32 %v644, %v810
    %v917 = vmul.f32 %v645, %v820
    %v918 = vmul.f32 %v646, %v830
    %v919 = vmul.f32 %v647, %v840
    %v920 = vmul.f32 %v648, %v850
    %v921 = vmul.f32 %v649, %v860
    %v922 = vmul.f32 %v650, %v870
    %v923 = vmul.f32 %v651, %v880
    %v924 = vmul.f32 %v652, %v890
    %v925 = vmul.f32 %v653, %v900
    %v926 = vmul.f32 %v654, %v910
    %v928 = vperm.slane %v573, 0
    %v930 = vmul.f32 %v911, %v928
    %v931 = vmul.f32 %v912, %v928
    %v932 = vmul.f32 %v913, %v928
    %v933 = vmul.f32 %v914, %v928
    %v934 = vmul.f32 %v915, %v928
    %v935 = vmul.f32 %v916, %v928
    %v936 = vmul.f32 %v917, %v928
    %v937 = vmul.f32 %v918, %v928
    %v938 = vmul.f32 %v919, %v928
    %v939 = vmul.f32 %v920, %v928
    %v940 = vmul.f32 %v921, %v928
    %v941 = vmul.f32 %v922, %v928
    %v942 = vmul.f32 %v923, %v928
    %v943 = vmul.f32 %v924, %v928
    %v944 = vmul.f32 %v925, %v928
    %v945 = vmul.f32 %v926, %v928
    %v947 = vperm.slane %v574, 0
    %v949 = vadd.f32 %v930, %v947
    %v950 = vadd.f32 %v931, %v947
    %v951 = vadd.f32 %v932, %v947
    %v952 = vadd.f32 %v933, %v947
    %v953 = vadd.f32 %v934, %v947
    %v954 = vadd.f32 %v935, %v947
    %v955 = vadd.f32 %v936, %v947
    %v956 = vadd.f32 %v937, %v947
    %v957 = vadd.f32 %v938, %v947
    %v958 = vadd.f32 %v939, %v947
    %v959 = vadd.f32 %v940, %v947
    %v960 = vadd.f32 %v941, %v947
    %v961 = vadd.f32 %v942, %v947
    %v962 = vadd.f32 %v943, %v947
    %v963 = vadd.f32 %v944, %v947
    %v964 = vadd.f32 %v945, %v947
    %965 = vxpose.xlu0.b32.start [1/16] %v949, 128
    %966 = vxpose.xlu0.b32.cont [2/16] %v950, 128
    %967 = vxpose.xlu0.b32.cont [3/16] 0.0, 128
    %968 = vxpose.xlu0.b32.cont [4/16] 0.0, 128
    %969 = vxpose.xlu0.b32.cont [5/16] 0.0, 128
    %970 = vxpose.xlu0.b32.cont [6/16] 0.0, 128
    %971 = vxpose.xlu0.b32.cont [7/16] 0.0, 128
    %972 = vxpose.xlu0.b32.cont [8/16] 0.0, 128
    %973 = vxpose.xlu0.b32.cont [9/16] 0.0, 128
    %974 = vxpose.xlu0.b32.cont [10/16] 0.0, 128
    %975 = vxpose.xlu0.b32.cont [11/16] 0.0, 128
    %976 = vxpose.xlu0.b32.cont [12/16] 0.0, 128
    %977 = vxpose.xlu0.b32.cont [13/16] 0.0, 128
    %978 = vxpose.xlu0.b32.cont [14/16] 0.0, 128
    %979 = vxpose.xlu0.b32.cont [15/16] 0.0, 128
    %980 = vxpose.xlu0.b32.end [16/16] 0.0, 128
    %v981 = vpop.trf.xlu0
    %v982 = vpop.trf.xlu0
    %v983 = vpop.trf.xlu0
    %v984 = vpop.trf.xlu0
    %v985 = vpop.trf.xlu0
    %v986 = vpop.trf.xlu0
    %v987 = vpop.trf.xlu0
    %v988 = vpop.trf.xlu0
    %v989 = vpop.trf.xlu0
    %v990 = vpop.trf.xlu0
    %v991 = vpop.trf.xlu0
    %v992 = vpop.trf.xlu0
    %v993 = vpop.trf.xlu0
    %v994 = vpop.trf.xlu0
    %v995 = vpop.trf.xlu0
    %v996 = vpop.trf.xlu0
    %997 = vxpose.xlu0.b32.start [1/16] %v951, 128
    %998 = vxpose.xlu0.b32.cont [2/16] %v952, 128
    %999 = vxpose.xlu0.b32.cont [3/16] 0.0, 128
    %1000 = vxpose.xlu0.b32.cont [4/16] 0.0, 128
    %1001 = vxpose.xlu0.b32.cont [5/16] 0.0, 128
    %1002 = vxpose.xlu0.b32.cont [6/16] 0.0, 128
    %1003 = vxpose.xlu0.b32.cont [7/16] 0.0, 128
    %1004 = vxpose.xlu0.b32.cont [8/16] 0.0, 128
    %1005 = vxpose.xlu0.b32.cont [9/16] 0.0, 128
    %1006 = vxpose.xlu0.b32.cont [10/16] 0.0, 128
    %1007 = vxpose.xlu0.b32.cont [11/16] 0.0, 128
    %1008 = vxpose.xlu0.b32.cont [12/16] 0.0, 128
    %1009 = vxpose.xlu0.b32.cont [13/16] 0.0, 128
    %1010 = vxpose.xlu0.b32.cont [14/16] 0.0, 128
    %1011 = vxpose.xlu0.b32.cont [15/16] 0.0, 128
    %1012 = vxpose.xlu0.b32.end [16/16] 0.0, 128
    %v1013 = vpop.trf.xlu0
    %v1014 = vpop.trf.xlu0
    %v1015 = vpop.trf.xlu0
    %v1016 = vpop.trf.xlu0
    %v1017 = vpop.trf.xlu0
    %v1018 = vpop.trf.xlu0
    %v1019 = vpop.trf.xlu0
    %v1020 = vpop.trf.xlu0
    %v1021 = vpop.trf.xlu0
    %v1022 = vpop.trf.xlu0
    %v1023 = vpop.trf.xlu0
    %v1024 = vpop.trf.xlu0
    %v1025 = vpop.trf.xlu0
    %v1026 = vpop.trf.xlu0
    %v1027 = vpop.trf.xlu0
    %v1028 = vpop.trf.xlu0
    %1029 = vxpose.xlu0.b32.start [1/16] %v953, 128
    %1030 = vxpose.xlu0.b32.cont [2/16] %v954, 128
    %1031 = vxpose.xlu0.b32.cont [3/16] 0.0, 128
    %1032 = vxpose.xlu0.b32.cont [4/16] 0.0, 128
    %1033 = vxpose.xlu0.b32.cont [5/16] 0.0, 128
    %1034 = vxpose.xlu0.b32.cont [6/16] 0.0, 128
    %1035 = vxpose.xlu0.b32.cont [7/16] 0.0, 128
    %1036 = vxpose.xlu0.b32.cont [8/16] 0.0, 128
    %1037 = vxpose.xlu0.b32.cont [9/16] 0.0, 128
    %1038 = vxpose.xlu0.b32.cont [10/16] 0.0, 128
    %1039 = vxpose.xlu0.b32.cont [11/16] 0.0, 128
    %1040 = vxpose.xlu0.b32.cont [12/16] 0.0, 128
    %1041 = vxpose.xlu0.b32.cont [13/16] 0.0, 128
    %1042 = vxpose.xlu0.b32.cont [14/16] 0.0, 128
    %1043 = vxpose.xlu0.b32.cont [15/16] 0.0, 128
    %1044 = vxpose.xlu0.b32.end [16/16] 0.0, 128
    %v1045 = vpop.trf.xlu0
    %v1046 = vpop.trf.xlu0
    %v1047 = vpop.trf.xlu0
    %v1048 = vpop.trf.xlu0
    %v1049 = vpop.trf.xlu0
    %v1050 = vpop.trf.xlu0
    %v1051 = vpop.trf.xlu0
    %v1052 = vpop.trf.xlu0
    %v1053 = vpop.trf.xlu0
    %v1054 = vpop.trf.xlu0
    %v1055 = vpop.trf.xlu0
    %v1056 = vpop.trf.xlu0
    %v1057 = vpop.trf.xlu0
    %v1058 = vpop.trf.xlu0
    %v1059 = vpop.trf.xlu0
    %v1060 = vpop.trf.xlu0
    %1061 = vxpose.xlu0.b32.start [1/16] %v955, 128
    %1062 = vxpose.xlu0.b32.cont [2/16] %v956, 128
    %1063 = vxpose.xlu0.b32.cont [3/16] 0.0, 128
    %1064 = vxpose.xlu0.b32.cont [4/16] 0.0, 128
    %1065 = vxpose.xlu0.b32.cont [5/16] 0.0, 128
    %1066 = vxpose.xlu0.b32.cont [6/16] 0.0, 128
    %1067 = vxpose.xlu0.b32.cont [7/16] 0.0, 128
    %1068 = vxpose.xlu0.b32.cont [8/16] 0.0, 128
    %1069 = vxpose.xlu0.b32.cont [9/16] 0.0, 128
    %1070 = vxpose.xlu0.b32.cont [10/16] 0.0, 128
    %1071 = vxpose.xlu0.b32.cont [11/16] 0.0, 128
    %1072 = vxpose.xlu0.b32.cont [12/16] 0.0, 128
    %1073 = vxpose.xlu0.b32.cont [13/16] 0.0, 128
    %1074 = vxpose.xlu0.b32.cont [14/16] 0.0, 128
    %1075 = vxpose.xlu0.b32.cont [15/16] 0.0, 128
    %1076 = vxpose.xlu0.b32.end [16/16] 0.0, 128
    %v1077 = vpop.trf.xlu0
    %v1078 = vpop.trf.xlu0
    %v1079 = vpop.trf.xlu0
    %v1080 = vpop.trf.xlu0
    %v1081 = vpop.trf.xlu0
    %v1082 = vpop.trf.xlu0
    %v1083 = vpop.trf.xlu0
    %v1084 = vpop.trf.xlu0
    %v1085 = vpop.trf.xlu0
    %v1086 = vpop.trf.xlu0
    %v1087 = vpop.trf.xlu0
    %v1088 = vpop.trf.xlu0
    %v1089 = vpop.trf.xlu0
    %v1090 = vpop.trf.xlu0
    %v1091 = vpop.trf.xlu0
    %v1092 = vpop.trf.xlu0
    %1093 = vxpose.xlu0.b32.start [1/16] %v957, 128
    %1094 = vxpose.xlu0.b32.cont [2/16] %v958, 128
    %1095 = vxpose.xlu0.b32.cont [3/16] 0.0, 128
    %1096 = vxpose.xlu0.b32.cont [4/16] 0.0, 128
    %1097 = vxpose.xlu0.b32.cont [5/16] 0.0, 128
    %1098 = vxpose.xlu0.b32.cont [6/16] 0.0, 128
    %1099 = vxpose.xlu0.b32.cont [7/16] 0.0, 128
    %1100 = vxpose.xlu0.b32.cont [8/16] 0.0, 128
    %1101 = vxpose.xlu0.b32.cont [9/16] 0.0, 128
    %1102 = vxpose.xlu0.b32.cont [10/16] 0.0, 128
    %1103 = vxpose.xlu0.b32.cont [11/16] 0.0, 128
    %1104 = vxpose.xlu0.b32.cont [12/16] 0.0, 128
    %1105 = vxpose.xlu0.b32.cont [13/16] 0.0, 128
    %1106 = vxpose.xlu0.b32.cont [14/16] 0.0, 128
    %1107 = vxpose.xlu0.b32.cont [15/16] 0.0, 128
    %1108 = vxpose.xlu0.b32.end [16/16] 0.0, 128
    %v1109 = vpop.trf.xlu0
    %v1110 = vpop.trf.xlu0
    %v1111 = vpop.trf.xlu0
    %v1112 = vpop.trf.xlu0
    %v1113 = vpop.trf.xlu0
    %v1114 = vpop.trf.xlu0
    %v1115 = vpop.trf.xlu0
    %v1116 = vpop.trf.xlu0
    %v1117 = vpop.trf.xlu0
    %v1118 = vpop.trf.xlu0
    %v1119 = vpop.trf.xlu0
    %v1120 = vpop.trf.xlu0
    %v1121 = vpop.trf.xlu0
    %v1122 = vpop.trf.xlu0
    %v1123 = vpop.trf.xlu0
    %v1124 = vpop.trf.xlu0
    %1125 = vxpose.xlu0.b32.start [1/16] %v959, 128
    %1126 = vxpose.xlu0.b32.cont [2/16] %v960, 128
    %1127 = vxpose.xlu0.b32.cont [3/16] 0.0, 128
    %1128 = vxpose.xlu0.b32.cont [4/16] 0.0, 128
    %1129 = vxpose.xlu0.b32.cont [5/16] 0.0, 128
    %1130 = vxpose.xlu0.b32.cont [6/16] 0.0, 128
    %1131 = vxpose.xlu0.b32.cont [7/16] 0.0, 128
    %1132 = vxpose.xlu0.b32.cont [8/16] 0.0, 128
    %1133 = vxpose.xlu0.b32.cont [9/16] 0.0, 128
    %1134 = vxpose.xlu0.b32.cont [10/16] 0.0, 128
    %1135 = vxpose.xlu0.b32.cont [11/16] 0.0, 128
    %1136 = vxpose.xlu0.b32.cont [12/16] 0.0, 128
    %1137 = vxpose.xlu0.b32.cont [13/16] 0.0, 128
    %1138 = vxpose.xlu0.b32.cont [14/16] 0.0, 128
    %1139 = vxpose.xlu0.b32.cont [15/16] 0.0, 128
    %1140 = vxpose.xlu0.b32.end [16/16] 0.0, 128
    %v1141 = vpop.trf.xlu0
    %v1142 = vpop.trf.xlu0
    %v1143 = vpop.trf.xlu0
    %v1144 = vpop.trf.xlu0
    %v1145 = vpop.trf.xlu0
    %v1146 = vpop.trf.xlu0
    %v1147 = vpop.trf.xlu0
    %v1148 = vpop.trf.xlu0
    %v1149 = vpop.trf.xlu0
    %v1150 = vpop.trf.xlu0
    %v1151 = vpop.trf.xlu0
    %v1152 = vpop.trf.xlu0
    %v1153 = vpop.trf.xlu0
    %v1154 = vpop.trf.xlu0
    %v1155 = vpop.trf.xlu0
    %v1156 = vpop.trf.xlu0
    %1157 = vxpose.xlu0.b32.start [1/16] %v961, 128
    %1158 = vxpose.xlu0.b32.cont [2/16] %v962, 128
    %1159 = vxpose.xlu0.b32.cont [3/16] 0.0, 128
    %1160 = vxpose.xlu0.b32.cont [4/16] 0.0, 128
    %1161 = vxpose.xlu0.b32.cont [5/16] 0.0, 128
    %1162 = vxpose.xlu0.b32.cont [6/16] 0.0, 128
    %1163 = vxpose.xlu0.b32.cont [7/16] 0.0, 128
    %1164 = vxpose.xlu0.b32.cont [8/16] 0.0, 128
    %1165 = vxpose.xlu0.b32.cont [9/16] 0.0, 128
    %1166 = vxpose.xlu0.b32.cont [10/16] 0.0, 128
    %1167 = vxpose.xlu0.b32.cont [11/16] 0.0, 128
    %1168 = vxpose.xlu0.b32.cont [12/16] 0.0, 128
    %1169 = vxpose.xlu0.b32.cont [13/16] 0.0, 128
    %1170 = vxpose.xlu0.b32.cont [14/16] 0.0, 128
    %1171 = vxpose.xlu0.b32.cont [15/16] 0.0, 128
    %1172 = vxpose.xlu0.b32.end [16/16] 0.0, 128
    %v1173 = vpop.trf.xlu0
    %v1174 = vpop.trf.xlu0
    %v1175 = vpop.trf.xlu0
    %v1176 = vpop.trf.xlu0
    %v1177 = vpop.trf.xlu0
    %v1178 = vpop.trf.xlu0
    %v1179 = vpop.trf.xlu0
    %v1180 = vpop.trf.xlu0
    %v1181 = vpop.trf.xlu0
    %v1182 = vpop.trf.xlu0
    %v1183 = vpop.trf.xlu0
    %v1184 = vpop.trf.xlu0
    %v1185 = vpop.trf.xlu0
    %v1186 = vpop.trf.xlu0
    %v1187 = vpop.trf.xlu0
    %v1188 = vpop.trf.xlu0
    %1189 = vxpose.xlu0.b32.start [1/16] %v963, 128
    %1190 = vxpose.xlu0.b32.cont [2/16] %v964, 128
    %1191 = vxpose.xlu0.b32.cont [3/16] 0.0, 128
    %1192 = vxpose.xlu0.b32.cont [4/16] 0.0, 128
    %1193 = vxpose.xlu0.b32.cont [5/16] 0.0, 128
    %1194 = vxpose.xlu0.b32.cont [6/16] 0.0, 128
    %1195 = vxpose.xlu0.b32.cont [7/16] 0.0, 128
    %1196 = vxpose.xlu0.b32.cont [8/16] 0.0, 128
    %1197 = vxpose.xlu0.b32.cont [9/16] 0.0, 128
    %1198 = vxpose.xlu0.b32.cont [10/16] 0.0, 128
    %1199 = vxpose.xlu0.b32.cont [11/16] 0.0, 128
    %1200 = vxpose.xlu0.b32.cont [12/16] 0.0, 128
    %1201 = vxpose.xlu0.b32.cont [13/16] 0.0, 128
    %1202 = vxpose.xlu0.b32.cont [14/16] 0.0, 128
    %1203 = vxpose.xlu0.b32.cont [15/16] 0.0, 128
    %1204 = vxpose.xlu0.b32.end [16/16] 0.0, 128
    %v1205 = vpop.trf.xlu0
    %v1206 = vpop.trf.xlu0
    %v1207 = vpop.trf.xlu0
    %v1208 = vpop.trf.xlu0
    %v1209 = vpop.trf.xlu0
    %v1210 = vpop.trf.xlu0
    %v1211 = vpop.trf.xlu0
    %v1212 = vpop.trf.xlu0
    %v1213 = vpop.trf.xlu0
    %v1214 = vpop.trf.xlu0
    %v1215 = vpop.trf.xlu0
    %v1216 = vpop.trf.xlu0
    %v1217 = vpop.trf.xlu0
    %v1218 = vpop.trf.xlu0
    %v1219 = vpop.trf.xlu0
    %v1220 = vpop.trf.xlu0
    %v1221 = vld [vmem:[%s7] sm:$0xff]
    %v1222 = vld [vmem:[%s7 + $0x8] sm:$0xff]
    %v1223 = vld [vmem:[%s8] sm:$0x1]
    %v1225 = vperm.slane %v1223, 0
    %vm1227 = vcmask 130048
    %v1229 = vsel %vm1227, %v981, 0
    %v1232 = vsel %vm1227, %v982, 0
    %v1235 = vsel %vm1227, %v983, 0
    %v1238 = vsel %vm1227, %v984, 0
    %v1241 = vsel %vm1227, %v1013, 0
    %v1244 = vsel %vm1227, %v1014, 0
    %v1247 = vsel %vm1227, %v1015, 0
    %v1250 = vsel %vm1227, %v1016, 0
    %v1253 = vsel %vm1227, %v1045, 0
    %v1256 = vsel %vm1227, %v1046, 0
    %v1259 = vsel %vm1227, %v1047, 0
    %v1262 = vsel %vm1227, %v1048, 0
    %v1265 = vsel %vm1227, %v1077, 0
    %v1268 = vsel %vm1227, %v1078, 0
    %v1271 = vsel %vm1227, %v1079, 0
    %v1274 = vsel %vm1227, %v1080, 0
    %v1277 = vsel %vm1227, %v1109, 0
    %v1280 = vsel %vm1227, %v1110, 0
    %v1283 = vsel %vm1227, %v1111, 0
    %v1286 = vsel %vm1227, %v1112, 0
    %v1289 = vsel %vm1227, %v1141, 0
    %v1292 = vsel %vm1227, %v1142, 0
    %v1295 = vsel %vm1227, %v1143, 0
    %v1298 = vsel %vm1227, %v1144, 0
    %v1301 = vsel %vm1227, %v1173, 0
    %v1304 = vsel %vm1227, %v1174, 0
    %v1307 = vsel %vm1227, %v1175, 0
    %v1310 = vsel %vm1227, %v1176, 0
    %v1313 = vsel %vm1227, %v1205, 0
    %v1316 = vsel %vm1227, %v1206, 0
    %v1319 = vsel %vm1227, %v1207, 0
    %v1322 = vsel %vm1227, %v1208, 0
    %1324 = vmatpush.msra.mxu0 0.0
    %1325 = vmatpush.msra.mxu0 0.0
    %1326 = vmatpush.msra.mxu0 0.0
    %1327 = vmatpush.msra.mxu0 0.0
    %1328 = vmatpush.msra.mxu0 0.0
    %1329 = vmatpush.msra.mxu0 0.0
    %1330 = vmatpush.msra.mxu0 0.0
    %1331 = vmatpush.msra.mxu0 0.0
    %1332 = vmatpush.msra.mxu0 0.0
    %1333 = vmatpush.msra.mxu0 0.0
    %1334 = vmatpush.msra.mxu0 0.0
    %1335 = vmatpush.msra.mxu0 0.0
    %1336 = vmatpush.msra.mxu0 0.0
    %1337 = vmatpush.msra.mxu0 0.0
    %1338 = vmatpush.msra.mxu0 %v1222
    %1339 = vmatpush.msra.mxu0 %v1221
    %1340 = vmatmul.f32.gmra.mxu0 %v1229
    %v1341 = vpop.f32.mrf.mxu0
    %v1342 = vadd.f32 %v1225, %v1341
    %1343 = vmatmul.f32.gmra.mxu0 %v1232
    %v1344 = vpop.f32.mrf.mxu0
    %v1345 = vadd.f32 %v1225, %v1344
    %1346 = vmatmul.f32.gmra.mxu0 %v1235
    %v1347 = vpop.f32.mrf.mxu0
    %v1348 = vadd.f32 %v1225, %v1347
    %1349 = vmatmul.f32.gmra.mxu0 %v1238
    %v1350 = vpop.f32.mrf.mxu0
    %v1351 = vadd.f32 %v1225, %v1350
    %1352 = vmatmul.f32.gmra.mxu0 %v1241
    %v1353 = vpop.f32.mrf.mxu0
    %v1354 = vadd.f32 %v1225, %v1353
    %1355 = vmatmul.f32.gmra.mxu0 %v1244
    %v1356 = vpop.f32.mrf.mxu0
    %v1357 = vadd.f32 %v1225, %v1356
    %1358 = vmatmul.f32.gmra.mxu0 %v1247
    %v1359 = vpop.f32.mrf.mxu0
    %v1360 = vadd.f32 %v1225, %v1359
    %1361 = vmatmul.f32.gmra.mxu0 %v1250
    %v1362 = vpop.f32.mrf.mxu0
    %v1363 = vadd.f32 %v1225, %v1362
    %1364 = vmatmul.f32.gmra.mxu0 %v1253
    %v1365 = vpop.f32.mrf.mxu0
    %v1366 = vadd.f32 %v1225, %v1365
    %1367 = vmatmul.f32.gmra.mxu0 %v1256
    %v1368 = vpop.f32.mrf.mxu0
    %v1369 = vadd.f32 %v1225, %v1368
    %1370 = vmatmul.f32.gmra.mxu0 %v1259
    %v1371 = vpop.f32.mrf.mxu0
    %v1372 = vadd.f32 %v1225, %v1371
    %1373 = vmatmul.f32.gmra.mxu0 %v1262
    %v1374 = vpop.f32.mrf.mxu0
    %v1375 = vadd.f32 %v1225, %v1374
    %1376 = vmatmul.f32.gmra.mxu0 %v1265
    %v1377 = vpop.f32.mrf.mxu0
    %v1378 = vadd.f32 %v1225, %v1377
    %1379 = vmatmul.f32.gmra.mxu0 %v1268
    %v1380 = vpop.f32.mrf.mxu0
    %v1381 = vadd.f32 %v1225, %v1380
    %1382 = vmatmul.f32.gmra.mxu0 %v1271
    %v1383 = vpop.f32.mrf.mxu0
    %v1384 = vadd.f32 %v1225, %v1383
    %1385 = vmatmul.f32.gmra.mxu0 %v1274
    %v1386 = vpop.f32.mrf.mxu0
    %v1387 = vadd.f32 %v1225, %v1386
    %1388 = vmatmul.f32.gmra.mxu0 %v1277
    %v1389 = vpop.f32.mrf.mxu0
    %v1390 = vadd.f32 %v1225, %v1389
    %1391 = vmatmul.f32.gmra.mxu0 %v1280
    %v1392 = vpop.f32.mrf.mxu0
    %v1393 = vadd.f32 %v1225, %v1392
    %1394 = vmatmul.f32.gmra.mxu0 %v1283
    %v1395 = vpop.f32.mrf.mxu0
    %v1396 = vadd.f32 %v1225, %v1395
    %1397 = vmatmul.f32.gmra.mxu0 %v1286
    %v1398 = vpop.f32.mrf.mxu0
    %v1399 = vadd.f32 %v1225, %v1398
    %1400 = vmatmul.f32.gmra.mxu0 %v1289
    %v1401 = vpop.f32.mrf.mxu0
    %v1402 = vadd.f32 %v1225, %v1401
    %1403 = vmatmul.f32.gmra.mxu0 %v1292
    %v1404 = vpop.f32.mrf.mxu0
    %v1405 = vadd.f32 %v1225, %v1404
    %1406 = vmatmul.f32.gmra.mxu0 %v1295
    %v1407 = vpop.f32.mrf.mxu0
    %v1408 = vadd.f32 %v1225, %v1407
    %1409 = vmatmul.f32.gmra.mxu0 %v1298
    %v1410 = vpop.f32.mrf.mxu0
    %v1411 = vadd.f32 %v1225, %v1410
    %1412 = vmatmul.f32.gmra.mxu0 %v1301
    %v1413 = vpop.f32.mrf.mxu0
    %v1414 = vadd.f32 %v1225, %v1413
    %1415 = vmatmul.f32.gmra.mxu0 %v1304
    %v1416 = vpop.f32.mrf.mxu0
    %v1417 = vadd.f32 %v1225, %v1416
    %1418 = vmatmul.f32.gmra.mxu0 %v1307
    %v1419 = vpop.f32.mrf.mxu0
    %v1420 = vadd.f32 %v1225, %v1419
    %1421 = vmatmul.f32.gmra.mxu0 %v1310
    %v1422 = vpop.f32.mrf.mxu0
    %v1423 = vadd.f32 %v1225, %v1422
    %1424 = vmatmul.f32.gmra.mxu0 %v1313
    %v1425 = vpop.f32.mrf.mxu0
    %v1426 = vadd.f32 %v1225, %v1425
    %1427 = vmatmul.f32.gmra.mxu0 %v1316
    %v1428 = vpop.f32.mrf.mxu0
    %v1429 = vadd.f32 %v1225, %v1428
    %1430 = vmatmul.f32.gmra.mxu0 %v1319
    %v1431 = vpop.f32.mrf.mxu0
    %v1432 = vadd.f32 %v1225, %v1431
    %1433 = vmatmul.f32.gmra.mxu0 %v1322
    %v1434 = vpop.f32.mrf.mxu0
    %v1435 = vadd.f32 %v1225, %v1434
    %1436 = vdwg.mxu0
    %v1437 = vmul.f32 %v1342, 0.5
    %v1438 = vmul.f32 %v1345, 0.5
    %v1439 = vmul.f32 %v1348, 0.5
    %v1440 = vmul.f32 %v1351, 0.5
    %v1441 = vmul.f32 %v1354, 0.5
    %v1442 = vmul.f32 %v1357, 0.5
    %v1443 = vmul.f32 %v1360, 0.5
    %v1444 = vmul.f32 %v1363, 0.5
    %v1445 = vmul.f32 %v1366, 0.5
    %v1446 = vmul.f32 %v1369, 0.5
    %v1447 = vmul.f32 %v1372, 0.5
    %v1448 = vmul.f32 %v1375, 0.5
    %v1449 = vmul.f32 %v1378, 0.5
    %v1450 = vmul.f32 %v1381, 0.5
    %v1451 = vmul.f32 %v1384, 0.5
    %v1452 = vmul.f32 %v1387, 0.5
    %v1453 = vmul.f32 %v1390, 0.5
    %v1454 = vmul.f32 %v1393, 0.5
    %v1455 = vmul.f32 %v1396, 0.5
    %v1456 = vmul.f32 %v1399, 0.5
    %v1457 = vmul.f32 %v1402, 0.5
    %v1458 = vmul.f32 %v1405, 0.5
    %v1459 = vmul.f32 %v1408, 0.5
    %v1460 = vmul.f32 %v1411, 0.5
    %v1461 = vmul.f32 %v1414, 0.5
    %v1462 = vmul.f32 %v1417, 0.5
    %v1463 = vmul.f32 %v1420, 0.5
    %v1464 = vmul.f32 %v1423, 0.5
    %v1465 = vmul.f32 %v1426, 0.5
    %v1466 = vmul.f32 %v1429, 0.5
    %v1467 = vmul.f32 %v1432, 0.5
    %v1468 = vmul.f32 %v1435, 0.5
    %v1469 = vmul.f32 %v1342, 0.044715
    %v1470 = vmul.f32 %v1345, 0.044715
    %v1471 = vmul.f32 %v1348, 0.044715
    %v1472 = vmul.f32 %v1351, 0.044715
    %v1473 = vmul.f32 %v1354, 0.044715
    %v1474 = vmul.f32 %v1357, 0.044715
    %v1475 = vmul.f32 %v1360, 0.044715
    %v1476 = vmul.f32 %v1363, 0.044715
    %v1477 = vmul.f32 %v1366, 0.044715
    %v1478 = vmul.f32 %v1369, 0.044715
    %v1479 = vmul.f32 %v1372, 0.044715
    %v1480 = vmul.f32 %v1375, 0.044715
    %v1481 = vmul.f32 %v1378, 0.044715
    %v1482 = vmul.f32 %v1381, 0.044715
    %v1483 = vmul.f32 %v1384, 0.044715
    %v1484 = vmul.f32 %v1387, 0.044715
    %v1485 = vmul.f32 %v1390, 0.044715
    %v1486 = vmul.f32 %v1393, 0.044715
    %v1487 = vmul.f32 %v1396, 0.044715
    %v1488 = vmul.f32 %v1399, 0.044715
    %v1489 = vmul.f32 %v1402, 0.044715
    %v1490 = vmul.f32 %v1405, 0.044715
    %v1491 = vmul.f32 %v1408, 0.044715
    %v1492 = vmul.f32 %v1411, 0.044715
    %v1493 = vmul.f32 %v1414, 0.044715
    %v1494 = vmul.f32 %v1417, 0.044715
    %v1495 = vmul.f32 %v1420, 0.044715
    %v1496 = vmul.f32 %v1423, 0.044715
    %v1497 = vmul.f32 %v1426, 0.044715
    %v1498 = vmul.f32 %v1429, 0.044715
    %v1499 = vmul.f32 %v1432, 0.044715
    %v1500 = vmul.f32 %v1435, 0.044715
    %v1501 = vmul.f32 %v1469, %v1342
    %v1502 = vmul.f32 %v1470, %v1345
    %v1503 = vmul.f32 %v1471, %v1348
    %v1504 = vmul.f32 %v1472, %v1351
    %v1505 = vmul.f32 %v1473, %v1354
    %v1506 = vmul.f32 %v1474, %v1357
    %v1507 = vmul.f32 %v1475, %v1360
    %v1508 = vmul.f32 %v1476, %v1363
    %v1509 = vmul.f32 %v1477, %v1366
    %v1510 = vmul.f32 %v1478, %v1369
    %v1511 = vmul.f32 %v1479, %v1372
    %v1512 = vmul.f32 %v1480, %v1375
    %v1513 = vmul.f32 %v1481, %v1378
    %v1514 = vmul.f32 %v1482, %v1381
    %v1515 = vmul.f32 %v1483, %v1384
    %v1516 = vmul.f32 %v1484, %v1387
    %v1517 = vmul.f32 %v1485, %v1390
    %v1518 = vmul.f32 %v1486, %v1393
    %v1519 = vmul.f32 %v1487, %v1396
    %v1520 = vmul.f32 %v1488, %v1399
    %v1521 = vmul.f32 %v1489, %v1402
    %v1522 = vmul.f32 %v1490, %v1405
    %v1523 = vmul.f32 %v1491, %v1408
    %v1524 = vmul.f32 %v1492, %v1411
    %v1525 = vmul.f32 %v1493, %v1414
    %v1526 = vmul.f32 %v1494, %v1417
    %v1527 = vmul.f32 %v1495, %v1420
    %v1528 = vmul.f32 %v1496, %v1423
    %v1529 = vmul.f32 %v1497, %v1426
    %v1530 = vmul.f32 %v1498, %v1429
    %v1531 = vmul.f32 %v1499, %v1432
    %v1532 = vmul.f32 %v1500, %v1435
    %v1533 = vmul.f32 %v1501, %v1342
    %v1534 = vmul.f32 %v1502, %v1345
    %v1535 = vmul.f32 %v1503, %v1348
    %v1536 = vmul.f32 %v1504, %v1351
    %v1537 = vmul.f32 %v1505, %v1354
    %v1538 = vmul.f32 %v1506, %v1357
    %v1539 = vmul.f32 %v1507, %v1360
    %v1540 = vmul.f32 %v1508, %v1363
    %v1541 = vmul.f32 %v1509, %v1366
    %v1542 = vmul.f32 %v1510, %v1369
    %v1543 = vmul.f32 %v1511, %v1372
    %v1544 = vmul.f32 %v1512, %v1375
    %v1545 = vmul.f32 %v1513, %v1378
    %v1546 = vmul.f32 %v1514, %v1381
    %v1547 = vmul.f32 %v1515, %v1384
    %v1548 = vmul.f32 %v1516, %v1387
    %v1549 = vmul.f32 %v1517, %v1390
    %v1550 = vmul.f32 %v1518, %v1393
    %v1551 = vmul.f32 %v1519, %v1396
    %v1552 = vmul.f32 %v1520, %v1399
    %v1553 = vmul.f32 %v1521, %v1402
    %v1554 = vmul.f32 %v1522, %v1405
    %v1555 = vmul.f32 %v1523, %v1408
    %v1556 = vmul.f32 %v1524, %v1411
    %v1557 = vmul.f32 %v1525, %v1414
    %v1558 = vmul.f32 %v1526, %v1417
    %v1559 = vmul.f32 %v1527, %v1420
    %v1560 = vmul.f32 %v1528, %v1423
    %v1561 = vmul.f32 %v1529, %v1426
    %v1562 = vmul.f32 %v1530, %v1429
    %v1563 = vmul.f32 %v1531, %v1432
    %v1564 = vmul.f32 %v1532, %v1435
    %v1565 = vadd.f32 %v1342, %v1533
    %v1566 = vadd.f32 %v1345, %v1534
    %v1567 = vadd.f32 %v1348, %v1535
    %v1568 = vadd.f32 %v1351, %v1536
    %v1569 = vadd.f32 %v1354, %v1537
    %v1570 = vadd.f32 %v1357, %v1538
    %v1571 = vadd.f32 %v1360, %v1539
    %v1572 = vadd.f32 %v1363, %v1540
    %v1573 = vadd.f32 %v1366, %v1541
    %v1574 = vadd.f32 %v1369, %v1542
    %v1575 = vadd.f32 %v1372, %v1543
    %v1576 = vadd.f32 %v1375, %v1544
    %v1577 = vadd.f32 %v1378, %v1545
    %v1578 = vadd.f32 %v1381, %v1546
    %v1579 = vadd.f32 %v1384, %v1547
    %v1580 = vadd.f32 %v1387, %v1548
    %v1581 = vadd.f32 %v1390, %v1549
    %v1582 = vadd.f32 %v1393, %v1550
    %v1583 = vadd.f32 %v1396, %v1551
    %v1584 = vadd.f32 %v1399, %v1552
    %v1585 = vadd.f32 %v1402, %v1553
    %v1586 = vadd.f32 %v1405, %v1554
    %v1587 = vadd.f32 %v1408, %v1555
    %v1588 = vadd.f32 %v1411, %v1556
    %v1589 = vadd.f32 %v1414, %v1557
    %v1590 = vadd.f32 %v1417, %v1558
    %v1591 = vadd.f32 %v1420, %v1559
    %v1592 = vadd.f32 %v1423, %v1560
    %v1593 = vadd.f32 %v1426, %v1561
    %v1594 = vadd.f32 %v1429, %v1562
    %v1595 = vadd.f32 %v1432, %v1563
    %v1596 = vadd.f32 %v1435, %v1564
    %v1597 = vmul.f32 %v1565, 0.7978846
    %v1598 = vmul.f32 %v1566, 0.7978846
    %v1599 = vmul.f32 %v1567, 0.7978846
    %v1600 = vmul.f32 %v1568, 0.7978846
    %v1601 = vmul.f32 %v1569, 0.7978846
    %v1602 = vmul.f32 %v1570, 0.7978846
    %v1603 = vmul.f32 %v1571, 0.7978846
    %v1604 = vmul.f32 %v1572, 0.7978846
    %v1605 = vmul.f32 %v1573, 0.7978846
    %v1606 = vmul.f32 %v1574, 0.7978846
    %v1607 = vmul.f32 %v1575, 0.7978846
    %v1608 = vmul.f32 %v1576, 0.7978846
    %v1609 = vmul.f32 %v1577, 0.7978846
    %v1610 = vmul.f32 %v1578, 0.7978846
    %v1611 = vmul.f32 %v1579, 0.7978846
    %v1612 = vmul.f32 %v1580, 0.7978846
    %v1613 = vmul.f32 %v1581, 0.7978846
    %v1614 = vmul.f32 %v1582, 0.7978846
    %v1615 = vmul.f32 %v1583, 0.7978846
    %v1616 = vmul.f32 %v1584, 0.7978846
    %v1617 = vmul.f32 %v1585, 0.7978846
    %v1618 = vmul.f32 %v1586, 0.7978846
    %v1619 = vmul.f32 %v1587, 0.7978846
    %v1620 = vmul.f32 %v1588, 0.7978846
    %v1621 = vmul.f32 %v1589, 0.7978846
    %v1622 = vmul.f32 %v1590, 0.7978846
    %v1623 = vmul.f32 %v1591, 0.7978846
    %v1624 = vmul.f32 %v1592, 0.7978846
    %v1625 = vmul.f32 %v1593, 0.7978846
    %v1626 = vmul.f32 %v1594, 0.7978846
    %v1627 = vmul.f32 %v1595, 0.7978846
    %v1628 = vmul.f32 %v1596, 0.7978846
    %v1629 = vtanh.pop %v1597
    %v1630 = vtanh.pop %v1598
    %v1631 = vtanh.pop %v1599
    %v1632 = vtanh.pop %v1600
    %v1633 = vtanh.pop %v1601
    %v1634 = vtanh.pop %v1602
    %v1635 = vtanh.pop %v1603
    %v1636 = vtanh.pop %v1604
    %v1637 = vtanh.pop %v1605
    %v1638 = vtanh.pop %v1606
    %v1639 = vtanh.pop %v1607
    %v1640 = vtanh.pop %v1608
    %v1641 = vtanh.pop %v1609
    %v1642 = vtanh.pop %v1610
    %v1643 = vtanh.pop %v1611
    %v1644 = vtanh.pop %v1612
    %v1645 = vtanh.pop %v1613
    %v1646 = vtanh.pop %v1614
    %v1647 = vtanh.pop %v1615
    %v1648 = vtanh.pop %v1616
    %v1649 = vtanh.pop %v1617
    %v1650 = vtanh.pop %v1618
    %v1651 = vtanh.pop %v1619
    %v1652 = vtanh.pop %v1620
    %v1653 = vtanh.pop %v1621
    %v1654 = vtanh.pop %v1622
    %v1655 = vtanh.pop %v1623
    %v1656 = vtanh.pop %v1624
    %v1657 = vtanh.pop %v1625
    %v1658 = vtanh.pop %v1626
    %v1659 = vtanh.pop %v1627
    %v1660 = vtanh.pop %v1628
    %v1661 = vadd.f32 %v1629, 1.0
    %v1662 = vadd.f32 %v1630, 1.0
    %v1663 = vadd.f32 %v1631, 1.0
    %v1664 = vadd.f32 %v1632, 1.0
    %v1665 = vadd.f32 %v1633, 1.0
    %v1666 = vadd.f32 %v1634, 1.0
    %v1667 = vadd.f32 %v1635, 1.0
    %v1668 = vadd.f32 %v1636, 1.0
    %v1669 = vadd.f32 %v1637, 1.0
    %v1670 = vadd.f32 %v1638, 1.0
    %v1671 = vadd.f32 %v1639, 1.0
    %v1672 = vadd.f32 %v1640, 1.0
    %v1673 = vadd.f32 %v1641, 1.0
    %v1674 = vadd.f32 %v1642, 1.0
    %v1675 = vadd.f32 %v1643, 1.0
    %v1676 = vadd.f32 %v1644, 1.0
    %v1677 = vadd.f32 %v1645, 1.0
    %v1678 = vadd.f32 %v1646, 1.0
    %v1679 = vadd.f32 %v1647, 1.0
    %v1680 = vadd.f32 %v1648, 1.0
    %v1681 = vadd.f32 %v1649, 1.0
    %v1682 = vadd.f32 %v1650, 1.0
    %v1683 = vadd.f32 %v1651, 1.0
    %v1684 = vadd.f32 %v1652, 1.0
    %v1685 = vadd.f32 %v1653, 1.0
    %v1686 = vadd.f32 %v1654, 1.0
    %v1687 = vadd.f32 %v1655, 1.0
    %v1688 = vadd.f32 %v1656, 1.0
    %v1689 = vadd.f32 %v1657, 1.0
    %v1690 = vadd.f32 %v1658, 1.0
    %v1691 = vadd.f32 %v1659, 1.0
    %v1692 = vadd.f32 %v1660, 1.0
    %v1693 = vmul.f32 %v1437, %v1661
    %v1694 = vmul.f32 %v1438, %v1662
    %v1695 = vmul.f32 %v1439, %v1663
    %v1696 = vmul.f32 %v1440, %v1664
    %v1697 = vmul.f32 %v1441, %v1665
    %v1698 = vmul.f32 %v1442, %v1666
    %v1699 = vmul.f32 %v1443, %v1667
    %v1700 = vmul.f32 %v1444, %v1668
    %v1701 = vmul.f32 %v1445, %v1669
    %v1702 = vmul.f32 %v1446, %v1670
    %v1703 = vmul.f32 %v1447, %v1671
    %v1704 = vmul.f32 %v1448, %v1672
    %v1705 = vmul.f32 %v1449, %v1673
    %v1706 = vmul.f32 %v1450, %v1674
    %v1707 = vmul.f32 %v1451, %v1675
    %v1708 = vmul.f32 %v1452, %v1676
    %v1709 = vmul.f32 %v1453, %v1677
    %v1710 = vmul.f32 %v1454, %v1678
    %v1711 = vmul.f32 %v1455, %v1679
    %v1712 = vmul.f32 %v1456, %v1680
    %v1713 = vmul.f32 %v1457, %v1681
    %v1714 = vmul.f32 %v1458, %v1682
    %v1715 = vmul.f32 %v1459, %v1683
    %v1716 = vmul.f32 %v1460, %v1684
    %v1717 = vmul.f32 %v1461, %v1685
    %v1718 = vmul.f32 %v1462, %v1686
    %v1719 = vmul.f32 %v1463, %v1687
    %v1720 = vmul.f32 %v1464, %v1688
    %v1721 = vmul.f32 %v1465, %v1689
    %v1722 = vmul.f32 %v1466, %v1690
    %v1723 = vmul.f32 %v1467, %v1691
    %v1724 = vmul.f32 %v1468, %v1692
    %v1725 = vld [vmem:[%s9] sm:$0xff]
    %v1726 = vld [vmem:[%s9 + $0x8] sm:$0xff]
    %v1727 = vld [vmem:[%s9 + $0x10] sm:$0xff]
    %v1728 = vld [vmem:[%s9 + $0x18] sm:$0xff]
    %v1729 = vld [vmem:[%s9 + $0x20] sm:$0xff]
    %v1730 = vld [vmem:[%s9 + $0x28] sm:$0xff]
    %v1731 = vld [vmem:[%s9 + $0x30] sm:$0xff]
    %v1732 = vld [vmem:[%s9 + $0x38] sm:$0xff]
    %v1733 = vld [vmem:[%s9 + $0x40] sm:$0xff]
    %v1734 = vld [vmem:[%s9 + $0x48] sm:$0xff]
    %v1735 = vld [vmem:[%s9 + $0x50] sm:$0xff]
    %v1736 = vld [vmem:[%s9 + $0x58] sm:$0xff]
    %v1737 = vld [vmem:[%s9 + $0x60] sm:$0xff]
    %v1738 = vld [vmem:[%s9 + $0x68] sm:$0xff]
    %v1739 = vld [vmem:[%s9 + $0x70] sm:$0xff]
    %v1740 = vld [vmem:[%s9 + $0x78] sm:$0xff]
    %v1741 = vld [vmem:[%s10] sm:$0x1]
    %v1743 = vperm.slane %v1741, 0
    %1745 = vmatpush.msra.mxu0 %v1740
    %1746 = vmatpush.msra.mxu0 %v1739
    %1747 = vmatpush.msra.mxu0 %v1738
    %1748 = vmatpush.msra.mxu0 %v1737
    %1749 = vmatpush.msra.mxu0 %v1736
    %1750 = vmatpush.msra.mxu0 %v1735
    %1751 = vmatpush.msra.mxu0 %v1734
    %1752 = vmatpush.msra.mxu0 %v1733
    %1753 = vmatpush.msra.mxu0 %v1732
    %1754 = vmatpush.msra.mxu0 %v1731
    %1755 = vmatpush.msra.mxu0 %v1730
    %1756 = vmatpush.msra.mxu0 %v1729
    %1757 = vmatpush.msra.mxu0 %v1728
    %1758 = vmatpush.msra.mxu0 %v1727
    %1759 = vmatpush.msra.mxu0 %v1726
    %1760 = vmatpush.msra.mxu0 %v1725
    %1761 = vmatmul.f32.gmra.mxu0 %v1693
    %v1762 = vpop.f32.mrf.mxu0
    %v1763 = vadd.f32 %v1743, %v1762
    %1764 = vmatmul.f32.gmra.mxu0 %v1694
    %v1765 = vpop.f32.mrf.mxu0
    %v1766 = vadd.f32 %v1743, %v1765
    %1767 = vmatmul.f32.gmra.mxu0 %v1695
    %v1768 = vpop.f32.mrf.mxu0
    %v1769 = vadd.f32 %v1743, %v1768
    %1770 = vmatmul.f32.gmra.mxu0 %v1696
    %v1771 = vpop.f32.mrf.mxu0
    %v1772 = vadd.f32 %v1743, %v1771
    %1773 = vmatmul.f32.gmra.mxu0 %v1697
    %v1774 = vpop.f32.mrf.mxu0
    %v1775 = vadd.f32 %v1743, %v1774
    %1776 = vmatmul.f32.gmra.mxu0 %v1698
    %v1777 = vpop.f32.mrf.mxu0
    %v1778 = vadd.f32 %v1743, %v1777
    %1779 = vmatmul.f32.gmra.mxu0 %v1699
    %v1780 = vpop.f32.mrf.mxu0
    %v1781 = vadd.f32 %v1743, %v1780
    %1782 = vmatmul.f32.gmra.mxu0 %v1700
    %v1783 = vpop.f32.mrf.mxu0
    %v1784 = vadd.f32 %v1743, %v1783
    %1785 = vmatmul.f32.gmra.mxu0 %v1701
    %v1786 = vpop.f32.mrf.mxu0
    %v1787 = vadd.f32 %v1743, %v1786
    %1788 = vmatmul.f32.gmra.mxu0 %v1702
    %v1789 = vpop.f32.mrf.mxu0
    %v1790 = vadd.f32 %v1743, %v1789
    %1791 = vmatmul.f32.gmra.mxu0 %v1703
    %v1792 = vpop.f32.mrf.mxu0
    %v1793 = vadd.f32 %v1743, %v1792
    %1794 = vmatmul.f32.gmra.mxu0 %v1704
    %v1795 = vpop.f32.mrf.mxu0
    %v1796 = vadd.f32 %v1743, %v1795
    %1797 = vmatmul.f32.gmra.mxu0 %v1705
    %v1798 = vpop.f32.mrf.mxu0
    %v1799 = vadd.f32 %v1743, %v1798
    %1800 = vmatmul.f32.gmra.mxu0 %v1706
    %v1801 = vpop.f32.mrf.mxu0
    %v1802 = vadd.f32 %v1743, %v1801
    %1803 = vmatmul.f32.gmra.mxu0 %v1707
    %v1804 = vpop.f32.mrf.mxu0
    %v1805 = vadd.f32 %v1743, %v1804
    %1806 = vmatmul.f32.gmra.mxu0 %v1708
    %v1807 = vpop.f32.mrf.mxu0
    %v1808 = vadd.f32 %v1743, %v1807
    %1809 = vmatmul.f32.gmra.mxu0 %v1709
    %v1810 = vpop.f32.mrf.mxu0
    %v1811 = vadd.f32 %v1743, %v1810
    %1812 = vmatmul.f32.gmra.mxu0 %v1710
    %v1813 = vpop.f32.mrf.mxu0
    %v1814 = vadd.f32 %v1743, %v1813
    %1815 = vmatmul.f32.gmra.mxu0 %v1711
    %v1816 = vpop.f32.mrf.mxu0
    %v1817 = vadd.f32 %v1743, %v1816
    %1818 = vmatmul.f32.gmra.mxu0 %v1712
    %v1819 = vpop.f32.mrf.mxu0
    %v1820 = vadd.f32 %v1743, %v1819
    %1821 = vmatmul.f32.gmra.mxu0 %v1713
    %v1822 = vpop.f32.mrf.mxu0
    %v1823 = vadd.f32 %v1743, %v1822
    %1824 = vmatmul.f32.gmra.mxu0 %v1714
    %v1825 = vpop.f32.mrf.mxu0
    %v1826 = vadd.f32 %v1743, %v1825
    %1827 = vmatmul.f32.gmra.mxu0 %v1715
    %v1828 = vpop.f32.mrf.mxu0
    %v1829 = vadd.f32 %v1743, %v1828
    %1830 = vmatmul.f32.gmra.mxu0 %v1716
    %v1831 = vpop.f32.mrf.mxu0
    %v1832 = vadd.f32 %v1743, %v1831
    %1833 = vmatmul.f32.gmra.mxu0 %v1717
    %v1834 = vpop.f32.mrf.mxu0
    %v1835 = vadd.f32 %v1743, %v1834
    %1836 = vmatmul.f32.gmra.mxu0 %v1718
    %v1837 = vpop.f32.mrf.mxu0
    %v1838 = vadd.f32 %v1743, %v1837
    %1839 = vmatmul.f32.gmra.mxu0 %v1719
    %v1840 = vpop.f32.mrf.mxu0
    %v1841 = vadd.f32 %v1743, %v1840
    %1842 = vmatmul.f32.gmra.mxu0 %v1720
    %v1843 = vpop.f32.mrf.mxu0
    %v1844 = vadd.f32 %v1743, %v1843
    %1845 = vmatmul.f32.gmra.mxu0 %v1721
    %v1846 = vpop.f32.mrf.mxu0
    %v1847 = vadd.f32 %v1743, %v1846
    %1848 = vmatmul.f32.gmra.mxu0 %v1722
    %v1849 = vpop.f32.mrf.mxu0
    %v1850 = vadd.f32 %v1743, %v1849
    %1851 = vmatmul.f32.gmra.mxu0 %v1723
    %v1852 = vpop.f32.mrf.mxu0
    %v1853 = vadd.f32 %v1743, %v1852
    %1854 = vmatmul.f32.gmra.mxu0 %v1724
    %v1855 = vpop.f32.mrf.mxu0
    %v1856 = vadd.f32 %v1743, %v1855
    %1857 = vdwg.mxu0
    %1858 = vxpose.xlu0.b32.start [1/16] %v1763, 128
    %1859 = vxpose.xlu0.b32.cont [2/16] %v1766, 128
    %1860 = vxpose.xlu0.b32.cont [3/16] %v1769, 128
    %1861 = vxpose.xlu0.b32.cont [4/16] %v1772, 128
    %1862 = vxpose.xlu0.b32.cont [5/16] 0.0, 128
    %1863 = vxpose.xlu0.b32.cont [6/16] 0.0, 128
    %1864 = vxpose.xlu0.b32.cont [7/16] 0.0, 128
    %1865 = vxpose.xlu0.b32.cont [8/16] 0.0, 128
    %1866 = vxpose.xlu0.b32.cont [9/16] 0.0, 128
    %1867 = vxpose.xlu0.b32.cont [10/16] 0.0, 128
    %1868 = vxpose.xlu0.b32.cont [11/16] 0.0, 128
    %1869 = vxpose.xlu0.b32.cont [12/16] 0.0, 128
    %1870 = vxpose.xlu0.b32.cont [13/16] 0.0, 128
    %1871 = vxpose.xlu0.b32.cont [14/16] 0.0, 128
    %1872 = vxpose.xlu0.b32.cont [15/16] 0.0, 128
    %1873 = vxpose.xlu0.b32.end [16/16] 0.0, 128
    %v1874 = vpop.trf.xlu0
    %v1875 = vpop.trf.xlu0
    %v1876 = vpop.trf.xlu0
    %v1877 = vpop.trf.xlu0
    %v1878 = vpop.trf.xlu0
    %v1879 = vpop.trf.xlu0
    %v1880 = vpop.trf.xlu0
    %v1881 = vpop.trf.xlu0
    %v1882 = vpop.trf.xlu0
    %v1883 = vpop.trf.xlu0
    %v1884 = vpop.trf.xlu0
    %v1885 = vpop.trf.xlu0
    %v1886 = vpop.trf.xlu0
    %v1887 = vpop.trf.xlu0
    %v1888 = vpop.trf.xlu0
    %v1889 = vpop.trf.xlu0
    %1890 = vxpose.xlu0.b32.start [1/16] %v1775, 128
    %1891 = vxpose.xlu0.b32.cont [2/16] %v1778, 128
    %1892 = vxpose.xlu0.b32.cont [3/16] %v1781, 128
    %1893 = vxpose.xlu0.b32.cont [4/16] %v1784, 128
    %1894 = vxpose.xlu0.b32.cont [5/16] 0.0, 128
    %1895 = vxpose.xlu0.b32.cont [6/16] 0.0, 128
    %1896 = vxpose.xlu0.b32.cont [7/16] 0.0, 128
    %1897 = vxpose.xlu0.b32.cont [8/16] 0.0, 128
    %1898 = vxpose.xlu0.b32.cont [9/16] 0.0, 128
    %1899 = vxpose.xlu0.b32.cont [10/16] 0.0, 128
    %1900 = vxpose.xlu0.b32.cont [11/16] 0.0, 128
    %1901 = vxpose.xlu0.b32.cont [12/16] 0.0, 128
    %1902 = vxpose.xlu0.b32.cont [13/16] 0.0, 128
    %1903 = vxpose.xlu0.b32.cont [14/16] 0.0, 128
    %1904 = vxpose.xlu0.b32.cont [15/16] 0.0, 128
    %1905 = vxpose.xlu0.b32.end [16/16] 0.0, 128
    %v1906 = vpop.trf.xlu0
    %v1907 = vpop.trf.xlu0
    %v1908 = vpop.trf.xlu0
    %v1909 = vpop.trf.xlu0
    %v1910 = vpop.trf.xlu0
    %v1911 = vpop.trf.xlu0
    %v1912 = vpop.trf.xlu0
    %v1913 = vpop.trf.xlu0
    %v1914 = vpop.trf.xlu0
    %v1915 = vpop.trf.xlu0
    %v1916 = vpop.trf.xlu0
    %v1917 = vpop.trf.xlu0
    %v1918 = vpop.trf.xlu0
    %v1919 = vpop.trf.xlu0
    %v1920 = vpop.trf.xlu0
    %v1921 = vpop.trf.xlu0
    %1922 = vxpose.xlu0.b32.start [1/16] %v1787, 128
    %1923 = vxpose.xlu0.b32.cont [2/16] %v1790, 128
    %1924 = vxpose.xlu0.b32.cont [3/16] %v1793, 128
    %1925 = vxpose.xlu0.b32.cont [4/16] %v1796, 128
    %1926 = vxpose.xlu0.b32.cont [5/16] 0.0, 128
    %1927 = vxpose.xlu0.b32.cont [6/16] 0.0, 128
    %1928 = vxpose.xlu0.b32.cont [7/16] 0.0, 128
    %1929 = vxpose.xlu0.b32.cont [8/16] 0.0, 128
    %1930 = vxpose.xlu0.b32.cont [9/16] 0.0, 128
    %1931 = vxpose.xlu0.b32.cont [10/16] 0.0, 128
    %1932 = vxpose.xlu0.b32.cont [11/16] 0.0, 128
    %1933 = vxpose.xlu0.b32.cont [12/16] 0.0, 128
    %1934 = vxpose.xlu0.b32.cont [13/16] 0.0, 128
    %1935 = vxpose.xlu0.b32.cont [14/16] 0.0, 128
    %1936 = vxpose.xlu0.b32.cont [15/16] 0.0, 128
    %1937 = vxpose.xlu0.b32.end [16/16] 0.0, 128
    %v1938 = vpop.trf.xlu0
    %v1939 = vpop.trf.xlu0
    %v1940 = vpop.trf.xlu0
    %v1941 = vpop.trf.xlu0
    %v1942 = vpop.trf.xlu0
    %v1943 = vpop.trf.xlu0
    %v1944 = vpop.trf.xlu0
    %v1945 = vpop.trf.xlu0
    %v1946 = vpop.trf.xlu0
    %v1947 = vpop.trf.xlu0
    %v1948 = vpop.trf.xlu0
    %v1949 = vpop.trf.xlu0
    %v1950 = vpop.trf.xlu0
    %v1951 = vpop.trf.xlu0
    %v1952 = vpop.trf.xlu0
    %v1953 = vpop.trf.xlu0
    %1954 = vxpose.xlu0.b32.start [1/16] %v1799, 128
    %1955 = vxpose.xlu0.b32.cont [2/16] %v1802, 128
    %1956 = vxpose.xlu0.b32.cont [3/16] %v1805, 128
    %1957 = vxpose.xlu0.b32.cont [4/16] %v1808, 128
    %1958 = vxpose.xlu0.b32.cont [5/16] 0.0, 128
    %1959 = vxpose.xlu0.b32.cont [6/16] 0.0, 128
    %1960 = vxpose.xlu0.b32.cont [7/16] 0.0, 128
    %1961 = vxpose.xlu0.b32.cont [8/16] 0.0, 128
    %1962 = vxpose.xlu0.b32.cont [9/16] 0.0, 128
    %1963 = vxpose.xlu0.b32.cont [10/16] 0.0, 128
    %1964 = vxpose.xlu0.b32.cont [11/16] 0.0, 128
    %1965 = vxpose.xlu0.b32.cont [12/16] 0.0, 128
    %1966 = vxpose.xlu0.b32.cont [13/16] 0.0, 128
    %1967 = vxpose.xlu0.b32.cont [14/16] 0.0, 128
    %1968 = vxpose.xlu0.b32.cont [15/16] 0.0, 128
    %1969 = vxpose.xlu0.b32.end [16/16] 0.0, 128
    %v1970 = vpop.trf.xlu0
    %v1971 = vpop.trf.xlu0
    %v1972 = vpop.trf.xlu0
    %v1973 = vpop.trf.xlu0
    %v1974 = vpop.trf.xlu0
    %v1975 = vpop.trf.xlu0
    %v1976 = vpop.trf.xlu0
    %v1977 = vpop.trf.xlu0
    %v1978 = vpop.trf.xlu0
    %v1979 = vpop.trf.xlu0
    %v1980 = vpop.trf.xlu0
    %v1981 = vpop.trf.xlu0
    %v1982 = vpop.trf.xlu0
    %v1983 = vpop.trf.xlu0
    %v1984 = vpop.trf.xlu0
    %v1985 = vpop.trf.xlu0
    %1986 = vxpose.xlu0.b32.start [1/16] %v1811, 128
    %1987 = vxpose.xlu0.b32.cont [2/16] %v1814, 128
    %1988 = vxpose.xlu0.b32.cont [3/16] %v1817, 128
    %1989 = vxpose.xlu0.b32.cont [4/16] %v1820, 128
    %1990 = vxpose.xlu0.b32.cont [5/16] 0.0, 128
    %1991 = vxpose.xlu0.b32.cont [6/16] 0.0, 128
    %1992 = vxpose.xlu0.b32.cont [7/16] 0.0, 128
    %1993 = vxpose.xlu0.b32.cont [8/16] 0.0, 128
    %1994 = vxpose.xlu0.b32.cont [9/16] 0.0, 128
    %1995 = vxpose.xlu0.b32.cont [10/16] 0.0, 128
    %1996 = vxpose.xlu0.b32.cont [11/16] 0.0, 128
    %1997 = vxpose.xlu0.b32.cont [12/16] 0.0, 128
    %1998 = vxpose.xlu0.b32.cont [13/16] 0.0, 128
    %1999 = vxpose.xlu0.b32.cont [14/16] 0.0, 128
    %2000 = vxpose.xlu0.b32.cont [15/16] 0.0, 128
    %2001 = vxpose.xlu0.b32.end [16/16] 0.0, 128
    %v2002 = vpop.trf.xlu0
    %v2003 = vpop.trf.xlu0
    %v2004 = vpop.trf.xlu0
    %v2005 = vpop.trf.xlu0
    %v2006 = vpop.trf.xlu0
    %v2007 = vpop.trf.xlu0
    %v2008 = vpop.trf.xlu0
    %v2009 = vpop.trf.xlu0
    %v2010 = vpop.trf.xlu0
    %v2011 = vpop.trf.xlu0
    %v2012 = vpop.trf.xlu0
    %v2013 = vpop.trf.xlu0
    %v2014 = vpop.trf.xlu0
    %v2015 = vpop.trf.xlu0
    %v2016 = vpop.trf.xlu0
    %v2017 = vpop.trf.xlu0
    %2018 = vxpose.xlu0.b32.start [1/16] %v1823, 128
    %2019 = vxpose.xlu0.b32.cont [2/16] %v1826, 128
    %2020 = vxpose.xlu0.b32.cont [3/16] %v1829, 128
    %2021 = vxpose.xlu0.b32.cont [4/16] %v1832, 128
    %2022 = vxpose.xlu0.b32.cont [5/16] 0.0, 128
    %2023 = vxpose.xlu0.b32.cont [6/16] 0.0, 128
    %2024 = vxpose.xlu0.b32.cont [7/16] 0.0, 128
    %2025 = vxpose.xlu0.b32.cont [8/16] 0.0, 128
    %2026 = vxpose.xlu0.b32.cont [9/16] 0.0, 128
    %2027 = vxpose.xlu0.b32.cont [10/16] 0.0, 128
    %2028 = vxpose.xlu0.b32.cont [11/16] 0.0, 128
    %2029 = vxpose.xlu0.b32.cont [12/16] 0.0, 128
    %2030 = vxpose.xlu0.b32.cont [13/16] 0.0, 128
    %2031 = vxpose.xlu0.b32.cont [14/16] 0.0, 128
    %2032 = vxpose.xlu0.b32.cont [15/16] 0.0, 128
    %2033 = vxpose.xlu0.b32.end [16/16] 0.0, 128
    %v2034 = vpop.trf.xlu0
    %v2035 = vpop.trf.xlu0
    %v2036 = vpop.trf.xlu0
    %v2037 = vpop.trf.xlu0
    %v2038 = vpop.trf.xlu0
    %v2039 = vpop.trf.xlu0
    %v2040 = vpop.trf.xlu0
    %v2041 = vpop.trf.xlu0
    %v2042 = vpop.trf.xlu0
    %v2043 = vpop.trf.xlu0
    %v2044 = vpop.trf.xlu0
    %v2045 = vpop.trf.xlu0
    %v2046 = vpop.trf.xlu0
    %v2047 = vpop.trf.xlu0
    %v2048 = vpop.trf.xlu0
    %v2049 = vpop.trf.xlu0
    %2050 = vxpose.xlu0.b32.start [1/16] %v1835, 128
    %2051 = vxpose.xlu0.b32.cont [2/16] %v1838, 128
    %2052 = vxpose.xlu0.b32.cont [3/16] %v1841, 128
    %2053 = vxpose.xlu0.b32.cont [4/16] %v1844, 128
    %2054 = vxpose.xlu0.b32.cont [5/16] 0.0, 128
    %2055 = vxpose.xlu0.b32.cont [6/16] 0.0, 128
    %2056 = vxpose.xlu0.b32.cont [7/16] 0.0, 128
    %2057 = vxpose.xlu0.b32.cont [8/16] 0.0, 128
    %2058 = vxpose.xlu0.b32.cont [9/16] 0.0, 128
    %2059 = vxpose.xlu0.b32.cont [10/16] 0.0, 128
    %2060 = vxpose.xlu0.b32.cont [11/16] 0.0, 128
    %2061 = vxpose.xlu0.b32.cont [12/16] 0.0, 128
    %2062 = vxpose.xlu0.b32.cont [13/16] 0.0, 128
    %2063 = vxpose.xlu0.b32.cont [14/16] 0.0, 128
    %2064 = vxpose.xlu0.b32.cont [15/16] 0.0, 128
    %2065 = vxpose.xlu0.b32.end [16/16] 0.0, 128
    %v2066 = vpop.trf.xlu0
    %v2067 = vpop.trf.xlu0
    %v2068 = vpop.trf.xlu0
    %v2069 = vpop.trf.xlu0
    %v2070 = vpop.trf.xlu0
    %v2071 = vpop.trf.xlu0
    %v2072 = vpop.trf.xlu0
    %v2073 = vpop.trf.xlu0
    %v2074 = vpop.trf.xlu0
    %v2075 = vpop.trf.xlu0
    %v2076 = vpop.trf.xlu0
    %v2077 = vpop.trf.xlu0
    %v2078 = vpop.trf.xlu0
    %v2079 = vpop.trf.xlu0
    %v2080 = vpop.trf.xlu0
    %v2081 = vpop.trf.xlu0
    %2082 = vxpose.xlu0.b32.start [1/16] %v1847, 128
    %2083 = vxpose.xlu0.b32.cont [2/16] %v1850, 128
    %2084 = vxpose.xlu0.b32.cont [3/16] %v1853, 128
    %2085 = vxpose.xlu0.b32.cont [4/16] %v1856, 128
    %2086 = vxpose.xlu0.b32.cont [5/16] 0.0, 128
    %2087 = vxpose.xlu0.b32.cont [6/16] 0.0, 128
    %2088 = vxpose.xlu0.b32.cont [7/16] 0.0, 128
    %2089 = vxpose.xlu0.b32.cont [8/16] 0.0, 128
    %2090 = vxpose.xlu0.b32.cont [9/16] 0.0, 128
    %2091 = vxpose.xlu0.b32.cont [10/16] 0.0, 128
    %2092 = vxpose.xlu0.b32.cont [11/16] 0.0, 128
    %2093 = vxpose.xlu0.b32.cont [12/16] 0.0, 128
    %2094 = vxpose.xlu0.b32.cont [13/16] 0.0, 128
    %2095 = vxpose.xlu0.b32.cont [14/16] 0.0, 128
    %2096 = vxpose.xlu0.b32.cont [15/16] 0.0, 128
    %2097 = vxpose.xlu0.b32.end [16/16] 0.0, 128
    %v2098 = vpop.trf.xlu0
    %v2099 = vpop.trf.xlu0
    %v2100 = vpop.trf.xlu0
    %v2101 = vpop.trf.xlu0
    %v2102 = vpop.trf.xlu0
    %v2103 = vpop.trf.xlu0
    %v2104 = vpop.trf.xlu0
    %v2105 = vpop.trf.xlu0
    %v2106 = vpop.trf.xlu0
    %v2107 = vpop.trf.xlu0
    %v2108 = vpop.trf.xlu0
    %v2109 = vpop.trf.xlu0
    %v2110 = vpop.trf.xlu0
    %v2111 = vpop.trf.xlu0
    %v2112 = vpop.trf.xlu0
    %v2113 = vpop.trf.xlu0
    %v2114 = vadd.f32 %v557, %v1874
    %v2115 = vadd.f32 %v558, %v1875
    %v2116 = vadd.f32 %v559, %v1906
    %v2117 = vadd.f32 %v560, %v1907
    %v2118 = vadd.f32 %v561, %v1938
    %v2119 = vadd.f32 %v562, %v1939
    %v2120 = vadd.f32 %v563, %v1970
    %v2121 = vadd.f32 %v564, %v1971
    %v2122 = vadd.f32 %v565, %v2002
    %v2123 = vadd.f32 %v566, %v2003
    %v2124 = vadd.f32 %v567, %v2034
    %v2125 = vadd.f32 %v568, %v2035
    %v2126 = vadd.f32 %v569, %v2066
    %v2127 = vadd.f32 %v570, %v2067
    %v2128 = vadd.f32 %v571, %v2098
    %v2129 = vadd.f32 %v572, %v2099
    %v2130 = vld [vmem:[%s11] sm:$0x1]
    %v2131 = vld [vmem:[%s12] sm:$0x1]
    %v2132 = vsel %vm175, %v2114, 0.0
    %2133 = vadd.xlane.f32.xlu0 %v2132
    %v2134 = vpop.xlane.xlu0 %2133
    %v2135 = vsel %vm175, %v2115, 0.0
    %2136 = vadd.xlane.f32.xlu0 %v2135
    %v2137 = vpop.xlane.xlu0 %2136
    %v2138 = vsel %vm175, %v2116, 0.0
    %2139 = vadd.xlane.f32.xlu0 %v2138
    %v2140 = vpop.xlane.xlu0 %2139
    %v2141 = vsel %vm175, %v2117, 0.0
    %2142 = vadd.xlane.f32.xlu0 %v2141
    %v2143 = vpop.xlane.xlu0 %2142
    %v2144 = vsel %vm175, %v2118, 0.0
    %2145 = vadd.xlane.f32.xlu0 %v2144
    %v2146 = vpop.xlane.xlu0 %2145
    %v2147 = vsel %vm175, %v2119, 0.0
    %2148 = vadd.xlane.f32.xlu0 %v2147
    %v2149 = vpop.xlane.xlu0 %2148
    %v2150 = vsel %vm175, %v2120, 0.0
    %2151 = vadd.xlane.f32.xlu0 %v2150
    %v2152 = vpop.xlane.xlu0 %2151
    %v2153 = vsel %vm175, %v2121, 0.0
    %2154 = vadd.xlane.f32.xlu0 %v2153
    %v2155 = vpop.xlane.xlu0 %2154
    %v2156 = vsel %vm175, %v2122, 0.0
    %2157 = vadd.xlane.f32.xlu0 %v2156
    %v2158 = vpop.xlane.xlu0 %2157
    %v2159 = vsel %vm175, %v2123, 0.0
    %2160 = vadd.xlane.f32.xlu0 %v2159
    %v2161 = vpop.xlane.xlu0 %2160
    %v2162 = vsel %vm175, %v2124, 0.0
    %2163 = vadd.xlane.f32.xlu0 %v2162
    %v2164 = vpop.xlane.xlu0 %2163
    %v2165 = vsel %vm175, %v2125, 0.0
    %2166 = vadd.xlane.f32.xlu0 %v2165
    %v2167 = vpop.xlane.xlu0 %2166
    %v2168 = vsel %vm175, %v2126, 0.0
    %2169 = vadd.xlane.f32.xlu0 %v2168
    %v2170 = vpop.xlane.xlu0 %2169
    %v2171 = vsel %vm175, %v2127, 0.0
    %2172 = vadd.xlane.f32.xlu0 %v2171
    %v2173 = vpop.xlane.xlu0 %2172
    %v2174 = vsel %vm175, %v2128, 0.0
    %2175 = vadd.xlane.f32.xlu0 %v2174
    %v2176 = vpop.xlane.xlu0 %2175
    %v2177 = vsel %vm175, %v2129, 0.0
    %2178 = vadd.xlane.f32.xlu0 %v2177
    %v2179 = vpop.xlane.xlu0 %2178
    %v2180 = vmul.f32 %v2134, %v230
    %v2181 = vmul.f32 %v2137, %v230
    %v2182 = vmul.f32 %v2140, %v230
    %v2183 = vmul.f32 %v2143, %v230
    %v2184 = vmul.f32 %v2146, %v230
    %v2185 = vmul.f32 %v2149, %v230
    %v2186 = vmul.f32 %v2152, %v230
    %v2187 = vmul.f32 %v2155, %v230
    %v2188 = vmul.f32 %v2158, %v230
    %v2189 = vmul.f32 %v2161, %v230
    %v2190 = vmul.f32 %v2164, %v230
    %v2191 = vmul.f32 %v2167, %v230
    %v2192 = vmul.f32 %v2170, %v230
    %v2193 = vmul.f32 %v2173, %v230
    %v2194 = vmul.f32 %v2176, %v230
    %v2195 = vmul.f32 %v2179, %v230
    %v2196 = vsub.f32 %v2114, %v2180
    %v2197 = vsub.f32 %v2115, %v2181
    %v2198 = vsub.f32 %v2116, %v2182
    %v2199 = vsub.f32 %v2117, %v2183
    %v2200 = vsub.f32 %v2118, %v2184
    %v2201 = vsub.f32 %v2119, %v2185
    %v2202 = vsub.f32 %v2120, %v2186
    %v2203 = vsub.f32 %v2121, %v2187
    %v2204 = vsub.f32 %v2122, %v2188
    %v2205 = vsub.f32 %v2123, %v2189
    %v2206 = vsub.f32 %v2124, %v2190
    %v2207 = vsub.f32 %v2125, %v2191
    %v2208 = vsub.f32 %v2126, %v2192
    %v2209 = vsub.f32 %v2127, %v2193
    %v2210 = vsub.f32 %v2128, %v2194
    %v2211 = vsub.f32 %v2129, %v2195
    %v2212 = vmul.f32 %v2196, %v2196
    %v2213 = vmul.f32 %v2197, %v2197
    %v2214 = vmul.f32 %v2198, %v2198
    %v2215 = vmul.f32 %v2199, %v2199
    %v2216 = vmul.f32 %v2200, %v2200
    %v2217 = vmul.f32 %v2201, %v2201
    %v2218 = vmul.f32 %v2202, %v2202
    %v2219 = vmul.f32 %v2203, %v2203
    %v2220 = vmul.f32 %v2204, %v2204
    %v2221 = vmul.f32 %v2205, %v2205
    %v2222 = vmul.f32 %v2206, %v2206
    %v2223 = vmul.f32 %v2207, %v2207
    %v2224 = vmul.f32 %v2208, %v2208
    %v2225 = vmul.f32 %v2209, %v2209
    %v2226 = vmul.f32 %v2210, %v2210
    %v2227 = vmul.f32 %v2211, %v2211
    %v2228 = vsel %vm175, %v2212, 0.0
    %2229 = vadd.xlane.f32.xlu0 %v2228
    %v2230 = vpop.xlane.xlu0 %2229
    %v2231 = vsel %vm175, %v2213, 0.0
    %2232 = vadd.xlane.f32.xlu0 %v2231
    %v2233 = vpop.xlane.xlu0 %2232
    %v2234 = vsel %vm175, %v2214, 0.0
    %2235 = vadd.xlane.f32.xlu0 %v2234
    %v2236 = vpop.xlane.xlu0 %2235
    %v2237 = vsel %vm175, %v2215, 0.0
    %2238 = vadd.xlane.f32.xlu0 %v2237
    %v2239 = vpop.xlane.xlu0 %2238
    %v2240 = vsel %vm175, %v2216, 0.0
    %2241 = vadd.xlane.f32.xlu0 %v2240
    %v2242 = vpop.xlane.xlu0 %2241
    %v2243 = vsel %vm175, %v2217, 0.0
    %2244 = vadd.xlane.f32.xlu0 %v2243
    %v2245 = vpop.xlane.xlu0 %2244
    %v2246 = vsel %vm175, %v2218, 0.0
    %2247 = vadd.xlane.f32.xlu0 %v2246
    %v2248 = vpop.xlane.xlu0 %2247
    %v2249 = vsel %vm175, %v2219, 0.0
    %2250 = vadd.xlane.f32.xlu0 %v2249
    %v2251 = vpop.xlane.xlu0 %2250
    %v2252 = vsel %vm175, %v2220, 0.0
    %2253 = vadd.xlane.f32.xlu0 %v2252
    %v2254 = vpop.xlane.xlu0 %2253
    %v2255 = vsel %vm175, %v2221, 0.0
    %2256 = vadd.xlane.f32.xlu0 %v2255
    %v2257 = vpop.xlane.xlu0 %2256
    %v2258 = vsel %vm175, %v2222, 0.0
    %2259 = vadd.xlane.f32.xlu0 %v2258
    %v2260 = vpop.xlane.xlu0 %2259
    %v2261 = vsel %vm175, %v2223, 0.0
    %2262 = vadd.xlane.f32.xlu0 %v2261
    %v2263 = vpop.xlane.xlu0 %2262
    %v2264 = vsel %vm175, %v2224, 0.0
    %2265 = vadd.xlane.f32.xlu0 %v2264
    %v2266 = vpop.xlane.xlu0 %2265
    %v2267 = vsel %vm175, %v2225, 0.0
    %2268 = vadd.xlane.f32.xlu0 %v2267
    %v2269 = vpop.xlane.xlu0 %2268
    %v2270 = vsel %vm175, %v2226, 0.0
    %2271 = vadd.xlane.f32.xlu0 %v2270
    %v2272 = vpop.xlane.xlu0 %2271
    %v2273 = vsel %vm175, %v2227, 0.0
    %2274 = vadd.xlane.f32.xlu0 %v2273
    %v2275 = vpop.xlane.xlu0 %2274
    %v2276 = vmul.f32 %v2230, %v230
    %v2277 = vmul.f32 %v2233, %v230
    %v2278 = vmul.f32 %v2236, %v230
    %v2279 = vmul.f32 %v2239, %v230
    %v2280 = vmul.f32 %v2242, %v230
    %v2281 = vmul.f32 %v2245, %v230
    %v2282 = vmul.f32 %v2248, %v230
    %v2283 = vmul.f32 %v2251, %v230
    %v2284 = vmul.f32 %v2254, %v230
    %v2285 = vmul.f32 %v2257, %v230
    %v2286 = vmul.f32 %v2260, %v230
    %v2287 = vmul.f32 %v2263, %v230
    %v2288 = vmul.f32 %v2266, %v230
    %v2289 = vmul.f32 %v2269, %v230
    %v2290 = vmul.f32 %v2272, %v230
    %v2291 = vmul.f32 %v2275, %v230
    %v2292 = vadd.f32 %v2276, 1e-05
    %v2293 = vadd.f32 %v2277, 1e-05
    %v2294 = vadd.f32 %v2278, 1e-05
    %v2295 = vadd.f32 %v2279, 1e-05
    %v2296 = vadd.f32 %v2280, 1e-05
    %v2297 = vadd.f32 %v2281, 1e-05
    %v2298 = vadd.f32 %v2282, 1e-05
    %v2299 = vadd.f32 %v2283, 1e-05
    %v2300 = vadd.f32 %v2284, 1e-05
    %v2301 = vadd.f32 %v2285, 1e-05
    %v2302 = vadd.f32 %v2286, 1e-05
    %v2303 = vadd.f32 %v2287, 1e-05
    %v2304 = vadd.f32 %v2288, 1e-05
    %v2305 = vadd.f32 %v2289, 1e-05
    %v2306 = vadd.f32 %v2290, 1e-05
    %v2307 = vadd.f32 %v2291, 1e-05
    %v2308 = vrsqrt.pop %v2292
    %v2309 = vmul.f32 %v2308, %v2292
    %v2310 = vmul.f32 %v2309, %v2308
    %v2311 = vmul.f32 0.5, %v2310
    %v2312 = vsub.f32 1.5, %v2311
    %v2313 = vmul.f32 %v2308, %v2312
    %vm2314 = vweird.f32 %v2292
    %vm2315 = vweird.f32 %v2308
    %vm2316 = vmor %vm2314, %vm2315
    %v2317 = vsel %vm2316, %v2308, %v2313
    %v2318 = vrsqrt.pop %v2293
    %v2319 = vmul.f32 %v2318, %v2293
    %v2320 = vmul.f32 %v2319, %v2318
    %v2321 = vmul.f32 0.5, %v2320
    %v2322 = vsub.f32 1.5, %v2321
    %v2323 = vmul.f32 %v2318, %v2322
    %vm2324 = vweird.f32 %v2293
    %vm2325 = vweird.f32 %v2318
    %vm2326 = vmor %vm2324, %vm2325
    %v2327 = vsel %vm2326, %v2318, %v2323
    %v2328 = vrsqrt.pop %v2294
    %v2329 = vmul.f32 %v2328, %v2294
    %v2330 = vmul.f32 %v2329, %v2328
    %v2331 = vmul.f32 0.5, %v2330
    %v2332 = vsub.f32 1.5, %v2331
    %v2333 = vmul.f32 %v2328, %v2332
    %vm2334 = vweird.f32 %v2294
    %vm2335 = vweird.f32 %v2328
    %vm2336 = vmor %vm2334, %vm2335
    %v2337 = vsel %vm2336, %v2328, %v2333
    %v2338 = vrsqrt.pop %v2295
    %v2339 = vmul.f32 %v2338, %v2295
    %v2340 = vmul.f32 %v2339, %v2338
    %v2341 = vmul.f32 0.5, %v2340
    %v2342 = vsub.f32 1.5, %v2341
    %v2343 = vmul.f32 %v2338, %v2342
    %vm2344 = vweird.f32 %v2295
    %vm2345 = vweird.f32 %v2338
    %vm2346 = vmor %vm2344, %vm2345
    %v2347 = vsel %vm2346, %v2338, %v2343
    %v2348 = vrsqrt.pop %v2296
    %v2349 = vmul.f32 %v2348, %v2296
    %v2350 = vmul.f32 %v2349, %v2348
    %v2351 = vmul.f32 0.5, %v2350
    %v2352 = vsub.f32 1.5, %v2351
    %v2353 = vmul.f32 %v2348, %v2352
    %vm2354 = vweird.f32 %v2296
    %vm2355 = vweird.f32 %v2348
    %vm2356 = vmor %vm2354, %vm2355
    %v2357 = vsel %vm2356, %v2348, %v2353
    %v2358 = vrsqrt.pop %v2297
    %v2359 = vmul.f32 %v2358, %v2297
    %v2360 = vmul.f32 %v2359, %v2358
    %v2361 = vmul.f32 0.5, %v2360
    %v2362 = vsub.f32 1.5, %v2361
    %v2363 = vmul.f32 %v2358, %v2362
    %vm2364 = vweird.f32 %v2297
    %vm2365 = vweird.f32 %v2358
    %vm2366 = vmor %vm2364, %vm2365
    %v2367 = vsel %vm2366, %v2358, %v2363
    %v2368 = vrsqrt.pop %v2298
    %v2369 = vmul.f32 %v2368, %v2298
    %v2370 = vmul.f32 %v2369, %v2368
    %v2371 = vmul.f32 0.5, %v2370
    %v2372 = vsub.f32 1.5, %v2371
    %v2373 = vmul.f32 %v2368, %v2372
    %vm2374 = vweird.f32 %v2298
    %vm2375 = vweird.f32 %v2368
    %vm2376 = vmor %vm2374, %vm2375
    %v2377 = vsel %vm2376, %v2368, %v2373
    %v2378 = vrsqrt.pop %v2299
    %v2379 = vmul.f32 %v2378, %v2299
    %v2380 = vmul.f32 %v2379, %v2378
    %v2381 = vmul.f32 0.5, %v2380
    %v2382 = vsub.f32 1.5, %v2381
    %v2383 = vmul.f32 %v2378, %v2382
    %vm2384 = vweird.f32 %v2299
    %vm2385 = vweird.f32 %v2378
    %vm2386 = vmor %vm2384, %vm2385
    %v2387 = vsel %vm2386, %v2378, %v2383
    %v2388 = vrsqrt.pop %v2300
    %v2389 = vmul.f32 %v2388, %v2300
    %v2390 = vmul.f32 %v2389, %v2388
    %v2391 = vmul.f32 0.5, %v2390
    %v2392 = vsub.f32 1.5, %v2391
    %v2393 = vmul.f32 %v2388, %v2392
    %vm2394 = vweird.f32 %v2300
    %vm2395 = vweird.f32 %v2388
    %vm2396 = vmor %vm2394, %vm2395
    %v2397 = vsel %vm2396, %v2388, %v2393
    %v2398 = vrsqrt.pop %v2301
    %v2399 = vmul.f32 %v2398, %v2301
    %v2400 = vmul.f32 %v2399, %v2398
    %v2401 = vmul.f32 0.5, %v2400
    %v2402 = vsub.f32 1.5, %v2401
    %v2403 = vmul.f32 %v2398, %v2402
    %vm2404 = vweird.f32 %v2301
    %vm2405 = vweird.f32 %v2398
    %vm2406 = vmor %vm2404, %vm2405
    %v2407 = vsel %vm2406, %v2398, %v2403
    %v2408 = vrsqrt.pop %v2302
    %v2409 = vmul.f32 %v2408, %v2302
    %v2410 = vmul.f32 %v2409, %v2408
    %v2411 = vmul.f32 0.5, %v2410
    %v2412 = vsub.f32 1.5, %v2411
    %v2413 = vmul.f32 %v2408, %v2412
    %vm2414 = vweird.f32 %v2302
    %vm2415 = vweird.f32 %v2408
    %vm2416 = vmor %vm2414, %vm2415
    %v2417 = vsel %vm2416, %v2408, %v2413
    %v2418 = vrsqrt.pop %v2303
    %v2419 = vmul.f32 %v2418, %v2303
    %v2420 = vmul.f32 %v2419, %v2418
    %v2421 = vmul.f32 0.5, %v2420
    %v2422 = vsub.f32 1.5, %v2421
    %v2423 = vmul.f32 %v2418, %v2422
    %vm2424 = vweird.f32 %v2303
    %vm2425 = vweird.f32 %v2418
    %vm2426 = vmor %vm2424, %vm2425
    %v2427 = vsel %vm2426, %v2418, %v2423
    %v2428 = vrsqrt.pop %v2304
    %v2429 = vmul.f32 %v2428, %v2304
    %v2430 = vmul.f32 %v2429, %v2428
    %v2431 = vmul.f32 0.5, %v2430
    %v2432 = vsub.f32 1.5, %v2431
    %v2433 = vmul.f32 %v2428, %v2432
    %vm2434 = vweird.f32 %v2304
    %vm2435 = vweird.f32 %v2428
    %vm2436 = vmor %vm2434, %vm2435
    %v2437 = vsel %vm2436, %v2428, %v2433
    %v2438 = vrsqrt.pop %v2305
    %v2439 = vmul.f32 %v2438, %v2305
    %v2440 = vmul.f32 %v2439, %v2438
    %v2441 = vmul.f32 0.5, %v2440
    %v2442 = vsub.f32 1.5, %v2441
    %v2443 = vmul.f32 %v2438, %v2442
    %vm2444 = vweird.f32 %v2305
    %vm2445 = vweird.f32 %v2438
    %vm2446 = vmor %vm2444, %vm2445
    %v2447 = vsel %vm2446, %v2438, %v2443
    %v2448 = vrsqrt.pop %v2306
    %v2449 = vmul.f32 %v2448, %v2306
    %v2450 = vmul.f32 %v2449, %v2448
    %v2451 = vmul.f32 0.5, %v2450
    %v2452 = vsub.f32 1.5, %v2451
    %v2453 = vmul.f32 %v2448, %v2452
    %vm2454 = vweird.f32 %v2306
    %vm2455 = vweird.f32 %v2448
    %vm2456 = vmor %vm2454, %vm2455
    %v2457 = vsel %vm2456, %v2448, %v2453
    %v2458 = vrsqrt.pop %v2307
    %v2459 = vmul.f32 %v2458, %v2307
    %v2460 = vmul.f32 %v2459, %v2458
    %v2461 = vmul.f32 0.5, %v2460
    %v2462 = vsub.f32 1.5, %v2461
    %v2463 = vmul.f32 %v2458, %v2462
    %vm2464 = vweird.f32 %v2307
    %vm2465 = vweird.f32 %v2458
    %vm2466 = vmor %vm2464, %vm2465
    %v2467 = vsel %vm2466, %v2458, %v2463
    %v2468 = vmul.f32 %v2196, %v2317
    %v2469 = vmul.f32 %v2197, %v2327
    %v2470 = vmul.f32 %v2198, %v2337
    %v2471 = vmul.f32 %v2199, %v2347
    %v2472 = vmul.f32 %v2200, %v2357
    %v2473 = vmul.f32 %v2201, %v2367
    %v2474 = vmul.f32 %v2202, %v2377
    %v2475 = vmul.f32 %v2203, %v2387
    %v2476 = vmul.f32 %v2204, %v2397
    %v2477 = vmul.f32 %v2205, %v2407
    %v2478 = vmul.f32 %v2206, %v2417
    %v2479 = vmul.f32 %v2207, %v2427
    %v2480 = vmul.f32 %v2208, %v2437
    %v2481 = vmul.f32 %v2209, %v2447
    %v2482 = vmul.f32 %v2210, %v2457
    %v2483 = vmul.f32 %v2211, %v2467
    %v2485 = vperm.slane %v2130, 0
    %v2487 = vmul.f32 %v2468, %v2485
    %v2488 = vmul.f32 %v2469, %v2485
    %v2489 = vmul.f32 %v2470, %v2485
    %v2490 = vmul.f32 %v2471, %v2485
    %v2491 = vmul.f32 %v2472, %v2485
    %v2492 = vmul.f32 %v2473, %v2485
    %v2493 = vmul.f32 %v2474, %v2485
    %v2494 = vmul.f32 %v2475, %v2485
    %v2495 = vmul.f32 %v2476, %v2485
    %v2496 = vmul.f32 %v2477, %v2485
    %v2497 = vmul.f32 %v2478, %v2485
    %v2498 = vmul.f32 %v2479, %v2485
    %v2499 = vmul.f32 %v2480, %v2485
    %v2500 = vmul.f32 %v2481, %v2485
    %v2501 = vmul.f32 %v2482, %v2485
    %v2502 = vmul.f32 %v2483, %v2485
    %v2504 = vperm.slane %v2131, 0
    %v2506 = vadd.f32 %v2487, %v2504
    %v2507 = vadd.f32 %v2488, %v2504
    %v2508 = vadd.f32 %v2489, %v2504
    %v2509 = vadd.f32 %v2490, %v2504
    %v2510 = vadd.f32 %v2491, %v2504
    %v2511 = vadd.f32 %v2492, %v2504
    %v2512 = vadd.f32 %v2493, %v2504
    %v2513 = vadd.f32 %v2494, %v2504
    %v2514 = vadd.f32 %v2495, %v2504
    %v2515 = vadd.f32 %v2496, %v2504
    %v2516 = vadd.f32 %v2497, %v2504
    %v2517 = vadd.f32 %v2498, %v2504
    %v2518 = vadd.f32 %v2499, %v2504
    %v2519 = vadd.f32 %v2500, %v2504
    %v2520 = vadd.f32 %v2501, %v2504
    %v2521 = vadd.f32 %v2502, %v2504
    %v2522 = vld [vmem:[%s13] sm:$0xff]
    %v2523 = vld [vmem:[%s13 + $0x8] sm:$0xff]
    %v2524 = vld [vmem:[%s13 + $0x10] sm:$0xff]
    %v2525 = vld [vmem:[%s13 + $0x18] sm:$0xff]
    %v2526 = vld [vmem:[%s14] sm:$0x1]
    %v2528 = vperm.slane %v2526, 0
    %v2531 = vsel %vm175, %v2506, 0
    %v2534 = vsel %vm175, %v2507, 0
    %v2537 = vsel %vm175, %v2508, 0
    %v2540 = vsel %vm175, %v2509, 0
    %v2543 = vsel %vm175, %v2510, 0
    %v2546 = vsel %vm175, %v2511, 0
    %v2549 = vsel %vm175, %v2512, 0
    %v2552 = vsel %vm175, %v2513, 0
    %v2555 = vsel %vm175, %v2514, 0
    %v2558 = vsel %vm175, %v2515, 0
    %v2561 = vsel %vm175, %v2516, 0
    %v2564 = vsel %vm175, %v2517, 0
    %v2567 = vsel %vm175, %v2518, 0
    %v2570 = vsel %vm175, %v2519, 0
    %v2573 = vsel %vm175, %v2520, 0
    %v2576 = vsel %vm175, %v2521, 0
    %2578 = vmatpush.msra.mxu0 0.0
    %2579 = vmatpush.msra.mxu0 0.0
    %2580 = vmatpush.msra.mxu0 0.0
    %2581 = vmatpush.msra.mxu0 0.0
    %2582 = vmatpush.msra.mxu0 0.0
    %2583 = vmatpush.msra.mxu0 0.0
    %2584 = vmatpush.msra.mxu0 0.0
    %2585 = vmatpush.msra.mxu0 0.0
    %2586 = vmatpush.msra.mxu0 0.0
    %2587 = vmatpush.msra.mxu0 0.0
    %2588 = vmatpush.msra.mxu0 0.0
    %2589 = vmatpush.msra.mxu0 0.0
    %2590 = vmatpush.msra.mxu0 %v2525
    %2591 = vmatpush.msra.mxu0 %v2524
    %2592 = vmatpush.msra.mxu0 %v2523
    %2593 = vmatpush.msra.mxu0 %v2522
    %2594 = vmatmul.f32.gmra.mxu0 %v2531
    %v2595 = vpop.f32.mrf.mxu0
    %v2596 = vadd.f32 %v2528, %v2595
    %2597 = vmatmul.f32.gmra.mxu0 %v2534
    %v2598 = vpop.f32.mrf.mxu0
    %v2599 = vadd.f32 %v2528, %v2598
    %2600 = vmatmul.f32.gmra.mxu0 %v2537
    %v2601 = vpop.f32.mrf.mxu0
    %v2602 = vadd.f32 %v2528, %v2601
    %2603 = vmatmul.f32.gmra.mxu0 %v2540
    %v2604 = vpop.f32.mrf.mxu0
    %v2605 = vadd.f32 %v2528, %v2604
    %2606 = vmatmul.f32.gmra.mxu0 %v2543
    %v2607 = vpop.f32.mrf.mxu0
    %v2608 = vadd.f32 %v2528, %v2607
    %2609 = vmatmul.f32.gmra.mxu0 %v2546
    %v2610 = vpop.f32.mrf.mxu0
    %v2611 = vadd.f32 %v2528, %v2610
    %2612 = vmatmul.f32.gmra.mxu0 %v2549
    %v2613 = vpop.f32.mrf.mxu0
    %v2614 = vadd.f32 %v2528, %v2613
    %2615 = vmatmul.f32.gmra.mxu0 %v2552
    %v2616 = vpop.f32.mrf.mxu0
    %v2617 = vadd.f32 %v2528, %v2616
    %2618 = vmatmul.f32.gmra.mxu0 %v2555
    %v2619 = vpop.f32.mrf.mxu0
    %v2620 = vadd.f32 %v2528, %v2619
    %2621 = vmatmul.f32.gmra.mxu0 %v2558
    %v2622 = vpop.f32.mrf.mxu0
    %v2623 = vadd.f32 %v2528, %v2622
    %2624 = vmatmul.f32.gmra.mxu0 %v2561
    %v2625 = vpop.f32.mrf.mxu0
    %v2626 = vadd.f32 %v2528, %v2625
    %2627 = vmatmul.f32.gmra.mxu0 %v2564
    %v2628 = vpop.f32.mrf.mxu0
    %v2629 = vadd.f32 %v2528, %v2628
    %2630 = vmatmul.f32.gmra.mxu0 %v2567
    %v2631 = vpop.f32.mrf.mxu0
    %v2632 = vadd.f32 %v2528, %v2631
    %2633 = vmatmul.f32.gmra.mxu0 %v2570
    %v2634 = vpop.f32.mrf.mxu0
    %v2635 = vadd.f32 %v2528, %v2634
    %2636 = vmatmul.f32.gmra.mxu0 %v2573
    %v2637 = vpop.f32.mrf.mxu0
    %v2638 = vadd.f32 %v2528, %v2637
    %2639 = vmatmul.f32.gmra.mxu0 %v2576
    %v2640 = vpop.f32.mrf.mxu0
    %v2641 = vadd.f32 %v2528, %v2640
    %2642 = vdwg.mxu0
    %v2643 = vmul.f32 %v2596, 0.5
    %v2644 = vmul.f32 %v2599, 0.5
    %v2645 = vmul.f32 %v2602, 0.5
    %v2646 = vmul.f32 %v2605, 0.5
    %v2647 = vmul.f32 %v2608, 0.5
    %v2648 = vmul.f32 %v2611, 0.5
    %v2649 = vmul.f32 %v2614, 0.5
    %v2650 = vmul.f32 %v2617, 0.5
    %v2651 = vmul.f32 %v2620, 0.5
    %v2652 = vmul.f32 %v2623, 0.5
    %v2653 = vmul.f32 %v2626, 0.5
    %v2654 = vmul.f32 %v2629, 0.5
    %v2655 = vmul.f32 %v2632, 0.5
    %v2656 = vmul.f32 %v2635, 0.5
    %v2657 = vmul.f32 %v2638, 0.5
    %v2658 = vmul.f32 %v2641, 0.5
    %v2659 = vmul.f32 %v2596, 0.044715
    %v2660 = vmul.f32 %v2599, 0.044715
    %v2661 = vmul.f32 %v2602, 0.044715
    %v2662 = vmul.f32 %v2605, 0.044715
    %v2663 = vmul.f32 %v2608, 0.044715
    %v2664 = vmul.f32 %v2611, 0.044715
    %v2665 = vmul.f32 %v2614, 0.044715
    %v2666 = vmul.f32 %v2617, 0.044715
    %v2667 = vmul.f32 %v2620, 0.044715
    %v2668 = vmul.f32 %v2623, 0.044715
    %v2669 = vmul.f32 %v2626, 0.044715
    %v2670 = vmul.f32 %v2629, 0.044715
    %v2671 = vmul.f32 %v2632, 0.044715
    %v2672 = vmul.f32 %v2635, 0.044715
    %v2673 = vmul.f32 %v2638, 0.044715
    %v2674 = vmul.f32 %v2641, 0.044715
    %v2675 = vmul.f32 %v2659, %v2596
    %v2676 = vmul.f32 %v2660, %v2599
    %v2677 = vmul.f32 %v2661, %v2602
    %v2678 = vmul.f32 %v2662, %v2605
    %v2679 = vmul.f32 %v2663, %v2608
    %v2680 = vmul.f32 %v2664, %v2611
    %v2681 = vmul.f32 %v2665, %v2614
    %v2682 = vmul.f32 %v2666, %v2617
    %v2683 = vmul.f32 %v2667, %v2620
    %v2684 = vmul.f32 %v2668, %v2623
    %v2685 = vmul.f32 %v2669, %v2626
    %v2686 = vmul.f32 %v2670, %v2629
    %v2687 = vmul.f32 %v2671, %v2632
    %v2688 = vmul.f32 %v2672, %v2635
    %v2689 = vmul.f32 %v2673, %v2638
    %v2690 = vmul.f32 %v2674, %v2641
    %v2691 = vmul.f32 %v2675, %v2596
    %v2692 = vmul.f32 %v2676, %v2599
    %v2693 = vmul.f32 %v2677, %v2602
    %v2694 = vmul.f32 %v2678, %v2605
    %v2695 = vmul.f32 %v2679, %v2608
    %v2696 = vmul.f32 %v2680, %v2611
    %v2697 = vmul.f32 %v2681, %v2614
    %v2698 = vmul.f32 %v2682, %v2617
    %v2699 = vmul.f32 %v2683, %v2620
    %v2700 = vmul.f32 %v2684, %v2623
    %v2701 = vmul.f32 %v2685, %v2626
    %v2702 = vmul.f32 %v2686, %v2629
    %v2703 = vmul.f32 %v2687, %v2632
    %v2704 = vmul.f32 %v2688, %v2635
    %v2705 = vmul.f32 %v2689, %v2638
    %v2706 = vmul.f32 %v2690, %v2641
    %v2707 = vadd.f32 %v2596, %v2691
    %v2708 = vadd.f32 %v2599, %v2692
    %v2709 = vadd.f32 %v2602, %v2693
    %v2710 = vadd.f32 %v2605, %v2694
    %v2711 = vadd.f32 %v2608, %v2695
    %v2712 = vadd.f32 %v2611, %v2696
    %v2713 = vadd.f32 %v2614, %v2697
    %v2714 = vadd.f32 %v2617, %v2698
    %v2715 = vadd.f32 %v2620, %v2699
    %v2716 = vadd.f32 %v2623, %v2700
    %v2717 = vadd.f32 %v2626, %v2701
    %v2718 = vadd.f32 %v2629, %v2702
    %v2719 = vadd.f32 %v2632, %v2703
    %v2720 = vadd.f32 %v2635, %v2704
    %v2721 = vadd.f32 %v2638, %v2705
    %v2722 = vadd.f32 %v2641, %v2706
    %v2723 = vmul.f32 %v2707, 0.7978846
    %v2724 = vmul.f32 %v2708, 0.7978846
    %v2725 = vmul.f32 %v2709, 0.7978846
    %v2726 = vmul.f32 %v2710, 0.7978846
    %v2727 = vmul.f32 %v2711, 0.7978846
    %v2728 = vmul.f32 %v2712, 0.7978846
    %v2729 = vmul.f32 %v2713, 0.7978846
    %v2730 = vmul.f32 %v2714, 0.7978846
    %v2731 = vmul.f32 %v2715, 0.7978846
    %v2732 = vmul.f32 %v2716, 0.7978846
    %v2733 = vmul.f32 %v2717, 0.7978846
    %v2734 = vmul.f32 %v2718, 0.7978846
    %v2735 = vmul.f32 %v2719, 0.7978846
    %v2736 = vmul.f32 %v2720, 0.7978846
    %v2737 = vmul.f32 %v2721, 0.7978846
    %v2738 = vmul.f32 %v2722, 0.7978846
    %v2739 = vtanh.pop %v2723
    %v2740 = vtanh.pop %v2724
    %v2741 = vtanh.pop %v2725
    %v2742 = vtanh.pop %v2726
    %v2743 = vtanh.pop %v2727
    %v2744 = vtanh.pop %v2728
    %v2745 = vtanh.pop %v2729
    %v2746 = vtanh.pop %v2730
    %v2747 = vtanh.pop %v2731
    %v2748 = vtanh.pop %v2732
    %v2749 = vtanh.pop %v2733
    %v2750 = vtanh.pop %v2734
    %v2751 = vtanh.pop %v2735
    %v2752 = vtanh.pop %v2736
    %v2753 = vtanh.pop %v2737
    %v2754 = vtanh.pop %v2738
    %v2755 = vadd.f32 %v2739, 1.0
    %v2756 = vadd.f32 %v2740, 1.0
    %v2757 = vadd.f32 %v2741, 1.0
    %v2758 = vadd.f32 %v2742, 1.0
    %v2759 = vadd.f32 %v2743, 1.0
    %v2760 = vadd.f32 %v2744, 1.0
    %v2761 = vadd.f32 %v2745, 1.0
    %v2762 = vadd.f32 %v2746, 1.0
    %v2763 = vadd.f32 %v2747, 1.0
    %v2764 = vadd.f32 %v2748, 1.0
    %v2765 = vadd.f32 %v2749, 1.0
    %v2766 = vadd.f32 %v2750, 1.0
    %v2767 = vadd.f32 %v2751, 1.0
    %v2768 = vadd.f32 %v2752, 1.0
    %v2769 = vadd.f32 %v2753, 1.0
    %v2770 = vadd.f32 %v2754, 1.0
    %v2771 = vmul.f32 %v2643, %v2755
    %v2772 = vmul.f32 %v2644, %v2756
    %v2773 = vmul.f32 %v2645, %v2757
    %v2774 = vmul.f32 %v2646, %v2758
    %v2775 = vmul.f32 %v2647, %v2759
    %v2776 = vmul.f32 %v2648, %v2760
    %v2777 = vmul.f32 %v2649, %v2761
    %v2778 = vmul.f32 %v2650, %v2762
    %v2779 = vmul.f32 %v2651, %v2763
    %v2780 = vmul.f32 %v2652, %v2764
    %v2781 = vmul.f32 %v2653, %v2765
    %v2782 = vmul.f32 %v2654, %v2766
    %v2783 = vmul.f32 %v2655, %v2767
    %v2784 = vmul.f32 %v2656, %v2768
    %v2785 = vmul.f32 %v2657, %v2769
    %v2786 = vmul.f32 %v2658, %v2770
    %v2787 = vld [vmem:[%s15] sm:$0xff]
    %v2788 = vld [vmem:[%s15 + $0x8] sm:$0xff]
    %v2789 = vld [vmem:[%s15 + $0x10] sm:$0xff]
    %v2790 = vld [vmem:[%s15 + $0x18] sm:$0xff]
    %v2791 = vld [vmem:[%s15 + $0x20] sm:$0xff]
    %v2792 = vld [vmem:[%s15 + $0x28] sm:$0xff]
    %v2793 = vld [vmem:[%s15 + $0x30] sm:$0xff]
    %v2794 = vld [vmem:[%s15 + $0x38] sm:$0xff]
    %v2795 = vld [vmem:[%s15 + $0x40] sm:$0xff]
    %v2796 = vld [vmem:[%s15 + $0x48] sm:$0xff]
    %v2797 = vld [vmem:[%s15 + $0x50] sm:$0xff]
    %v2798 = vld [vmem:[%s15 + $0x58] sm:$0xff]
    %v2799 = vld [vmem:[%s15 + $0x60] sm:$0xff]
    %v2800 = vld [vmem:[%s15 + $0x68] sm:$0xff]
    %v2801 = vld [vmem:[%s15 + $0x70] sm:$0xff]
    %v2802 = vld [vmem:[%s15 + $0x78] sm:$0xff]
    %v2803 = vld [vmem:[%s16] sm:$0x1]
    %v2805 = vperm.slane %v2803, 0
    %2807 = vmatpush.msra.mxu0 %v2802
    %2808 = vmatpush.msra.mxu0 %v2801
    %2809 = vmatpush.msra.mxu0 %v2800
    %2810 = vmatpush.msra.mxu0 %v2799
    %2811 = vmatpush.msra.mxu0 %v2798
    %2812 = vmatpush.msra.mxu0 %v2797
    %2813 = vmatpush.msra.mxu0 %v2796
    %2814 = vmatpush.msra.mxu0 %v2795
    %2815 = vmatpush.msra.mxu0 %v2794
    %2816 = vmatpush.msra.mxu0 %v2793
    %2817 = vmatpush.msra.mxu0 %v2792
    %2818 = vmatpush.msra.mxu0 %v2791
    %2819 = vmatpush.msra.mxu0 %v2790
    %2820 = vmatpush.msra.mxu0 %v2789
    %2821 = vmatpush.msra.mxu0 %v2788
    %2822 = vmatpush.msra.mxu0 %v2787
    %2823 = vmatmul.f32.gmra.mxu0 %v2771
    %v2824 = vpop.f32.mrf.mxu0
    %v2825 = vadd.f32 %v2805, %v2824
    %2826 = vmatmul.f32.gmra.mxu0 %v2772
    %v2827 = vpop.f32.mrf.mxu0
    %v2828 = vadd.f32 %v2805, %v2827
    %2829 = vmatmul.f32.gmra.mxu0 %v2773
    %v2830 = vpop.f32.mrf.mxu0
    %v2831 = vadd.f32 %v2805, %v2830
    %2832 = vmatmul.f32.gmra.mxu0 %v2774
    %v2833 = vpop.f32.mrf.mxu0
    %v2834 = vadd.f32 %v2805, %v2833
    %2835 = vmatmul.f32.gmra.mxu0 %v2775
    %v2836 = vpop.f32.mrf.mxu0
    %v2837 = vadd.f32 %v2805, %v2836
    %2838 = vmatmul.f32.gmra.mxu0 %v2776
    %v2839 = vpop.f32.mrf.mxu0
    %v2840 = vadd.f32 %v2805, %v2839
    %2841 = vmatmul.f32.gmra.mxu0 %v2777
    %v2842 = vpop.f32.mrf.mxu0
    %v2843 = vadd.f32 %v2805, %v2842
    %2844 = vmatmul.f32.gmra.mxu0 %v2778
    %v2845 = vpop.f32.mrf.mxu0
    %v2846 = vadd.f32 %v2805, %v2845
    %2847 = vmatmul.f32.gmra.mxu0 %v2779
    %v2848 = vpop.f32.mrf.mxu0
    %v2849 = vadd.f32 %v2805, %v2848
    %2850 = vmatmul.f32.gmra.mxu0 %v2780
    %v2851 = vpop.f32.mrf.mxu0
    %v2852 = vadd.f32 %v2805, %v2851
    %2853 = vmatmul.f32.gmra.mxu0 %v2781
    %v2854 = vpop.f32.mrf.mxu0
    %v2855 = vadd.f32 %v2805, %v2854
    %2856 = vmatmul.f32.gmra.mxu0 %v2782
    %v2857 = vpop.f32.mrf.mxu0
    %v2858 = vadd.f32 %v2805, %v2857
    %2859 = vmatmul.f32.gmra.mxu0 %v2783
    %v2860 = vpop.f32.mrf.mxu0
    %v2861 = vadd.f32 %v2805, %v2860
    %2862 = vmatmul.f32.gmra.mxu0 %v2784
    %v2863 = vpop.f32.mrf.mxu0
    %v2864 = vadd.f32 %v2805, %v2863
    %2865 = vmatmul.f32.gmra.mxu0 %v2785
    %v2866 = vpop.f32.mrf.mxu0
    %v2867 = vadd.f32 %v2805, %v2866
    %2868 = vmatmul.f32.gmra.mxu0 %v2786
    %v2869 = vpop.f32.mrf.mxu0
    %v2870 = vadd.f32 %v2805, %v2869
    %2871 = vdwg.mxu0
    %v2872 = vadd.f32 %v2114, %v2825
    %v2873 = vadd.f32 %v2115, %v2828
    %v2874 = vadd.f32 %v2116, %v2831
    %v2875 = vadd.f32 %v2117, %v2834
    %v2876 = vadd.f32 %v2118, %v2837
    %v2877 = vadd.f32 %v2119, %v2840
    %v2878 = vadd.f32 %v2120, %v2843
    %v2879 = vadd.f32 %v2121, %v2846
    %v2880 = vadd.f32 %v2122, %v2849
    %v2881 = vadd.f32 %v2123, %v2852
    %v2882 = vadd.f32 %v2124, %v2855
    %v2883 = vadd.f32 %v2125, %v2858
    %v2884 = vadd.f32 %v2126, %v2861
    %v2885 = vadd.f32 %v2127, %v2864
    %v2886 = vadd.f32 %v2128, %v2867
    %v2887 = vadd.f32 %v2129, %v2870
    %s2888 = scalar_lea.vmem %s5, 1
    %v2889 = vld [vmem:[%s2888] sm:$0x1]
    %s2890 = scalar_lea.vmem %s6, 1
    %v2891 = vld [vmem:[%s2890] sm:$0x1]
    %v2892 = vsel %vm175, %v2872, 0.0
    %2893 = vadd.xlane.f32.xlu0 %v2892
    %v2894 = vpop.xlane.xlu0 %2893
    %v2895 = vsel %vm175, %v2873, 0.0
    %2896 = vadd.xlane.f32.xlu0 %v2895
    %v2897 = vpop.xlane.xlu0 %2896
    %v2898 = vsel %vm175, %v2874, 0.0
    %2899 = vadd.xlane.f32.xlu0 %v2898
    %v2900 = vpop.xlane.xlu0 %2899
    %v2901 = vsel %vm175, %v2875, 0.0
    %2902 = vadd.xlane.f32.xlu0 %v2901
    %v2903 = vpop.xlane.xlu0 %2902
    %v2904 = vsel %vm175, %v2876, 0.0
    %2905 = vadd.xlane.f32.xlu0 %v2904
    %v2906 = vpop.xlane.xlu0 %2905
    %v2907 = vsel %vm175, %v2877, 0.0
    %2908 = vadd.xlane.f32.xlu0 %v2907
    %v2909 = vpop.xlane.xlu0 %2908
    %v2910 = vsel %vm175, %v2878, 0.0
    %2911 = vadd.xlane.f32.xlu0 %v2910
    %v2912 = vpop.xlane.xlu0 %2911
    %v2913 = vsel %vm175, %v2879, 0.0
    %2914 = vadd.xlane.f32.xlu0 %v2913
    %v2915 = vpop.xlane.xlu0 %2914
    %v2916 = vsel %vm175, %v2880, 0.0
    %2917 = vadd.xlane.f32.xlu0 %v2916
    %v2918 = vpop.xlane.xlu0 %2917
    %v2919 = vsel %vm175, %v2881, 0.0
    %2920 = vadd.xlane.f32.xlu0 %v2919
    %v2921 = vpop.xlane.xlu0 %2920
    %v2922 = vsel %vm175, %v2882, 0.0
    %2923 = vadd.xlane.f32.xlu0 %v2922
    %v2924 = vpop.xlane.xlu0 %2923
    %v2925 = vsel %vm175, %v2883, 0.0
    %2926 = vadd.xlane.f32.xlu0 %v2925
    %v2927 = vpop.xlane.xlu0 %2926
    %v2928 = vsel %vm175, %v2884, 0.0
    %2929 = vadd.xlane.f32.xlu0 %v2928
    %v2930 = vpop.xlane.xlu0 %2929
    %v2931 = vsel %vm175, %v2885, 0.0
    %2932 = vadd.xlane.f32.xlu0 %v2931
    %v2933 = vpop.xlane.xlu0 %2932
    %v2934 = vsel %vm175, %v2886, 0.0
    %2935 = vadd.xlane.f32.xlu0 %v2934
    %v2936 = vpop.xlane.xlu0 %2935
    %v2937 = vsel %vm175, %v2887, 0.0
    %2938 = vadd.xlane.f32.xlu0 %v2937
    %v2939 = vpop.xlane.xlu0 %2938
    %v2940 = vmul.f32 %v2894, %v230
    %v2941 = vmul.f32 %v2897, %v230
    %v2942 = vmul.f32 %v2900, %v230
    %v2943 = vmul.f32 %v2903, %v230
    %v2944 = vmul.f32 %v2906, %v230
    %v2945 = vmul.f32 %v2909, %v230
    %v2946 = vmul.f32 %v2912, %v230
    %v2947 = vmul.f32 %v2915, %v230
    %v2948 = vmul.f32 %v2918, %v230
    %v2949 = vmul.f32 %v2921, %v230
    %v2950 = vmul.f32 %v2924, %v230
    %v2951 = vmul.f32 %v2927, %v230
    %v2952 = vmul.f32 %v2930, %v230
    %v2953 = vmul.f32 %v2933, %v230
    %v2954 = vmul.f32 %v2936, %v230
    %v2955 = vmul.f32 %v2939, %v230
    %v2956 = vsub.f32 %v2872, %v2940
    %v2957 = vsub.f32 %v2873, %v2941
    %v2958 = vsub.f32 %v2874, %v2942
    %v2959 = vsub.f32 %v2875, %v2943
    %v2960 = vsub.f32 %v2876, %v2944
    %v2961 = vsub.f32 %v2877, %v2945
    %v2962 = vsub.f32 %v2878, %v2946
    %v2963 = vsub.f32 %v2879, %v2947
    %v2964 = vsub.f32 %v2880, %v2948
    %v2965 = vsub.f32 %v2881, %v2949
    %v2966 = vsub.f32 %v2882, %v2950
    %v2967 = vsub.f32 %v2883, %v2951
    %v2968 = vsub.f32 %v2884, %v2952
    %v2969 = vsub.f32 %v2885, %v2953
    %v2970 = vsub.f32 %v2886, %v2954
    %v2971 = vsub.f32 %v2887, %v2955
    %v2972 = vmul.f32 %v2956, %v2956
    %v2973 = vmul.f32 %v2957, %v2957
    %v2974 = vmul.f32 %v2958, %v2958
    %v2975 = vmul.f32 %v2959, %v2959
    %v2976 = vmul.f32 %v2960, %v2960
    %v2977 = vmul.f32 %v2961, %v2961
    %v2978 = vmul.f32 %v2962, %v2962
    %v2979 = vmul.f32 %v2963, %v2963
    %v2980 = vmul.f32 %v2964, %v2964
    %v2981 = vmul.f32 %v2965, %v2965
    %v2982 = vmul.f32 %v2966, %v2966
    %v2983 = vmul.f32 %v2967, %v2967
    %v2984 = vmul.f32 %v2968, %v2968
    %v2985 = vmul.f32 %v2969, %v2969
    %v2986 = vmul.f32 %v2970, %v2970
    %v2987 = vmul.f32 %v2971, %v2971
    %v2988 = vsel %vm175, %v2972, 0.0
    %2989 = vadd.xlane.f32.xlu0 %v2988
    %v2990 = vpop.xlane.xlu0 %2989
    %v2991 = vsel %vm175, %v2973, 0.0
    %2992 = vadd.xlane.f32.xlu0 %v2991
    %v2993 = vpop.xlane.xlu0 %2992
    %v2994 = vsel %vm175, %v2974, 0.0
    %2995 = vadd.xlane.f32.xlu0 %v2994
    %v2996 = vpop.xlane.xlu0 %2995
    %v2997 = vsel %vm175, %v2975, 0.0
    %2998 = vadd.xlane.f32.xlu0 %v2997
    %v2999 = vpop.xlane.xlu0 %2998
    %v3000 = vsel %vm175, %v2976, 0.0
    %3001 = vadd.xlane.f32.xlu0 %v3000
    %v3002 = vpop.xlane.xlu0 %3001
    %v3003 = vsel %vm175, %v2977, 0.0
    %3004 = vadd.xlane.f32.xlu0 %v3003
    %v3005 = vpop.xlane.xlu0 %3004
    %v3006 = vsel %vm175, %v2978, 0.0
    %3007 = vadd.xlane.f32.xlu0 %v3006
    %v3008 = vpop.xlane.xlu0 %3007
    %v3009 = vsel %vm175, %v2979, 0.0
    %3010 = vadd.xlane.f32.xlu0 %v3009
    %v3011 = vpop.xlane.xlu0 %3010
    %v3012 = vsel %vm175, %v2980, 0.0
    %3013 = vadd.xlane.f32.xlu0 %v3012
    %v3014 = vpop.xlane.xlu0 %3013
    %v3015 = vsel %vm175, %v2981, 0.0
    %3016 = vadd.xlane.f32.xlu0 %v3015
    %v3017 = vpop.xlane.xlu0 %3016
    %v3018 = vsel %vm175, %v2982, 0.0
    %3019 = vadd.xlane.f32.xlu0 %v3018
    %v3020 = vpop.xlane.xlu0 %3019
    %v3021 = vsel %vm175, %v2983, 0.0
    %3022 = vadd.xlane.f32.xlu0 %v3021
    %v3023 = vpop.xlane.xlu0 %3022
    %v3024 = vsel %vm175, %v2984, 0.0
    %3025 = vadd.xlane.f32.xlu0 %v3024
    %v3026 = vpop.xlane.xlu0 %3025
    %v3027 = vsel %vm175, %v2985, 0.0
    %3028 = vadd.xlane.f32.xlu0 %v3027
    %v3029 = vpop.xlane.xlu0 %3028
    %v3030 = vsel %vm175, %v2986, 0.0
    %3031 = vadd.xlane.f32.xlu0 %v3030
    %v3032 = vpop.xlane.xlu0 %3031
    %v3033 = vsel %vm175, %v2987, 0.0
    %3034 = vadd.xlane.f32.xlu0 %v3033
    %v3035 = vpop.xlane.xlu0 %3034
    %v3036 = vmul.f32 %v2990, %v230
    %v3037 = vmul.f32 %v2993, %v230
    %v3038 = vmul.f32 %v2996, %v230
    %v3039 = vmul.f32 %v2999, %v230
    %v3040 = vmul.f32 %v3002, %v230
    %v3041 = vmul.f32 %v3005, %v230
    %v3042 = vmul.f32 %v3008, %v230
    %v3043 = vmul.f32 %v3011, %v230
    %v3044 = vmul.f32 %v3014, %v230
    %v3045 = vmul.f32 %v3017, %v230
    %v3046 = vmul.f32 %v3020, %v230
    %v3047 = vmul.f32 %v3023, %v230
    %v3048 = vmul.f32 %v3026, %v230
    %v3049 = vmul.f32 %v3029, %v230
    %v3050 = vmul.f32 %v3032, %v230
    %v3051 = vmul.f32 %v3035, %v230
    %v3052 = vadd.f32 %v3036, 1e-05
    %v3053 = vadd.f32 %v3037, 1e-05
    %v3054 = vadd.f32 %v3038, 1e-05
    %v3055 = vadd.f32 %v3039, 1e-05
    %v3056 = vadd.f32 %v3040, 1e-05
    %v3057 = vadd.f32 %v3041, 1e-05
    %v3058 = vadd.f32 %v3042, 1e-05
    %v3059 = vadd.f32 %v3043, 1e-05
    %v3060 = vadd.f32 %v3044, 1e-05
    %v3061 = vadd.f32 %v3045, 1e-05
    %v3062 = vadd.f32 %v3046, 1e-05
    %v3063 = vadd.f32 %v3047, 1e-05
    %v3064 = vadd.f32 %v3048, 1e-05
    %v3065 = vadd.f32 %v3049, 1e-05
    %v3066 = vadd.f32 %v3050, 1e-05
    %v3067 = vadd.f32 %v3051, 1e-05
    %v3068 = vrsqrt.pop %v3052
    %v3069 = vmul.f32 %v3068, %v3052
    %v3070 = vmul.f32 %v3069, %v3068
    %v3071 = vmul.f32 0.5, %v3070
    %v3072 = vsub.f32 1.5, %v3071
    %v3073 = vmul.f32 %v3068, %v3072
    %vm3074 = vweird.f32 %v3052
    %vm3075 = vweird.f32 %v3068
    %vm3076 = vmor %vm3074, %vm3075
    %v3077 = vsel %vm3076, %v3068, %v3073
    %v3078 = vrsqrt.pop %v3053
    %v3079 = vmul.f32 %v3078, %v3053
    %v3080 = vmul.f32 %v3079, %v3078
    %v3081 = vmul.f32 0.5, %v3080
    %v3082 = vsub.f32 1.5, %v3081
    %v3083 = vmul.f32 %v3078, %v3082
    %vm3084 = vweird.f32 %v3053
    %vm3085 = vweird.f32 %v3078
    %vm3086 = vmor %vm3084, %vm3085
    %v3087 = vsel %vm3086, %v3078, %v3083
    %v3088 = vrsqrt.pop %v3054
    %v3089 = vmul.f32 %v3088, %v3054
    %v3090 = vmul.f32 %v3089, %v3088
    %v3091 = vmul.f32 0.5, %v3090
    %v3092 = vsub.f32 1.5, %v3091
    %v3093 = vmul.f32 %v3088, %v3092
    %vm3094 = vweird.f32 %v3054
    %vm3095 = vweird.f32 %v3088
    %vm3096 = vmor %vm3094, %vm3095
    %v3097 = vsel %vm3096, %v3088, %v3093
    %v3098 = vrsqrt.pop %v3055
    %v3099 = vmul.f32 %v3098, %v3055
    %v3100 = vmul.f32 %v3099, %v3098
    %v3101 = vmul.f32 0.5, %v3100
    %v3102 = vsub.f32 1.5, %v3101
    %v3103 = vmul.f32 %v3098, %v3102
    %vm3104 = vweird.f32 %v3055
    %vm3105 = vweird.f32 %v3098
    %vm3106 = vmor %vm3104, %vm3105
    %v3107 = vsel %vm3106, %v3098, %v3103
    %v3108 = vrsqrt.pop %v3056
    %v3109 = vmul.f32 %v3108, %v3056
    %v3110 = vmul.f32 %v3109, %v3108
    %v3111 = vmul.f32 0.5, %v3110
    %v3112 = vsub.f32 1.5, %v3111
    %v3113 = vmul.f32 %v3108, %v3112
    %vm3114 = vweird.f32 %v3056
    %vm3115 = vweird.f32 %v3108
    %vm3116 = vmor %vm3114, %vm3115
    %v3117 = vsel %vm3116, %v3108, %v3113
    %v3118 = vrsqrt.pop %v3057
    %v3119 = vmul.f32 %v3118, %v3057
    %v3120 = vmul.f32 %v3119, %v3118
    %v3121 = vmul.f32 0.5, %v3120
    %v3122 = vsub.f32 1.5, %v3121
    %v3123 = vmul.f32 %v3118, %v3122
    %vm3124 = vweird.f32 %v3057
    %vm3125 = vweird.f32 %v3118
    %vm3126 = vmor %vm3124, %vm3125
    %v3127 = vsel %vm3126, %v3118, %v3123
    %v3128 = vrsqrt.pop %v3058
    %v3129 = vmul.f32 %v3128, %v3058
    %v3130 = vmul.f32 %v3129, %v3128
    %v3131 = vmul.f32 0.5, %v3130
    %v3132 = vsub.f32 1.5, %v3131
    %v3133 = vmul.f32 %v3128, %v3132
    %vm3134 = vweird.f32 %v3058
    %vm3135 = vweird.f32 %v3128
    %vm3136 = vmor %vm3134, %vm3135
    %v3137 = vsel %vm3136, %v3128, %v3133
    %v3138 = vrsqrt.pop %v3059
    %v3139 = vmul.f32 %v3138, %v3059
    %v3140 = vmul.f32 %v3139, %v3138
    %v3141 = vmul.f32 0.5, %v3140
    %v3142 = vsub.f32 1.5, %v3141
    %v3143 = vmul.f32 %v3138, %v3142
    %vm3144 = vweird.f32 %v3059
    %vm3145 = vweird.f32 %v3138
    %vm3146 = vmor %vm3144, %vm3145
    %v3147 = vsel %vm3146, %v3138, %v3143
    %v3148 = vrsqrt.pop %v3060
    %v3149 = vmul.f32 %v3148, %v3060
    %v3150 = vmul.f32 %v3149, %v3148
    %v3151 = vmul.f32 0.5, %v3150
    %v3152 = vsub.f32 1.5, %v3151
    %v3153 = vmul.f32 %v3148, %v3152
    %vm3154 = vweird.f32 %v3060
    %vm3155 = vweird.f32 %v3148
    %vm3156 = vmor %vm3154, %vm3155
    %v3157 = vsel %vm3156, %v3148, %v3153
    %v3158 = vrsqrt.pop %v3061
    %v3159 = vmul.f32 %v3158, %v3061
    %v3160 = vmul.f32 %v3159, %v3158
    %v3161 = vmul.f32 0.5, %v3160
    %v3162 = vsub.f32 1.5, %v3161
    %v3163 = vmul.f32 %v3158, %v3162
    %vm3164 = vweird.f32 %v3061
    %vm3165 = vweird.f32 %v3158
    %vm3166 = vmor %vm3164, %vm3165
    %v3167 = vsel %vm3166, %v3158, %v3163
    %v3168 = vrsqrt.pop %v3062
    %v3169 = vmul.f32 %v3168, %v3062
    %v3170 = vmul.f32 %v3169, %v3168
    %v3171 = vmul.f32 0.5, %v3170
    %v3172 = vsub.f32 1.5, %v3171
    %v3173 = vmul.f32 %v3168, %v3172
    %vm3174 = vweird.f32 %v3062
    %vm3175 = vweird.f32 %v3168
    %vm3176 = vmor %vm3174, %vm3175
    %v3177 = vsel %vm3176, %v3168, %v3173
    %v3178 = vrsqrt.pop %v3063
    %v3179 = vmul.f32 %v3178, %v3063
    %v3180 = vmul.f32 %v3179, %v3178
    %v3181 = vmul.f32 0.5, %v3180
    %v3182 = vsub.f32 1.5, %v3181
    %v3183 = vmul.f32 %v3178, %v3182
    %vm3184 = vweird.f32 %v3063
    %vm3185 = vweird.f32 %v3178
    %vm3186 = vmor %vm3184, %vm3185
    %v3187 = vsel %vm3186, %v3178, %v3183
    %v3188 = vrsqrt.pop %v3064
    %v3189 = vmul.f32 %v3188, %v3064
    %v3190 = vmul.f32 %v3189, %v3188
    %v3191 = vmul.f32 0.5, %v3190
    %v3192 = vsub.f32 1.5, %v3191
    %v3193 = vmul.f32 %v3188, %v3192
    %vm3194 = vweird.f32 %v3064
    %vm3195 = vweird.f32 %v3188
    %vm3196 = vmor %vm3194, %vm3195
    %v3197 = vsel %vm3196, %v3188, %v3193
    %v3198 = vrsqrt.pop %v3065
    %v3199 = vmul.f32 %v3198, %v3065
    %v3200 = vmul.f32 %v3199, %v3198
    %v3201 = vmul.f32 0.5, %v3200
    %v3202 = vsub.f32 1.5, %v3201
    %v3203 = vmul.f32 %v3198, %v3202
    %vm3204 = vweird.f32 %v3065
    %vm3205 = vweird.f32 %v3198
    %vm3206 = vmor %vm3204, %vm3205
    %v3207 = vsel %vm3206, %v3198, %v3203
    %v3208 = vrsqrt.pop %v3066
    %v3209 = vmul.f32 %v3208, %v3066
    %v3210 = vmul.f32 %v3209, %v3208
    %v3211 = vmul.f32 0.5, %v3210
    %v3212 = vsub.f32 1.5, %v3211
    %v3213 = vmul.f32 %v3208, %v3212
    %vm3214 = vweird.f32 %v3066
    %vm3215 = vweird.f32 %v3208
    %vm3216 = vmor %vm3214, %vm3215
    %v3217 = vsel %vm3216, %v3208, %v3213
    %v3218 = vrsqrt.pop %v3067
    %v3219 = vmul.f32 %v3218, %v3067
    %v3220 = vmul.f32 %v3219, %v3218
    %v3221 = vmul.f32 0.5, %v3220
    %v3222 = vsub.f32 1.5, %v3221
    %v3223 = vmul.f32 %v3218, %v3222
    %vm3224 = vweird.f32 %v3067
    %vm3225 = vweird.f32 %v3218
    %vm3226 = vmor %vm3224, %vm3225
    %v3227 = vsel %vm3226, %v3218, %v3223
    %v3228 = vmul.f32 %v2956, %v3077
    %v3229 = vmul.f32 %v2957, %v3087
    %v3230 = vmul.f32 %v2958, %v3097
    %v3231 = vmul.f32 %v2959, %v3107
    %v3232 = vmul.f32 %v2960, %v3117
    %v3233 = vmul.f32 %v2961, %v3127
    %v3234 = vmul.f32 %v2962, %v3137
    %v3235 = vmul.f32 %v2963, %v3147
    %v3236 = vmul.f32 %v2964, %v3157
    %v3237 = vmul.f32 %v2965, %v3167
    %v3238 = vmul.f32 %v2966, %v3177
    %v3239 = vmul.f32 %v2967, %v3187
    %v3240 = vmul.f32 %v2968, %v3197
    %v3241 = vmul.f32 %v2969, %v3207
    %v3242 = vmul.f32 %v2970, %v3217
    %v3243 = vmul.f32 %v2971, %v3227
    %v3245 = vperm.slane %v2889, 0
    %v3247 = vmul.f32 %v3228, %v3245
    %v3248 = vmul.f32 %v3229, %v3245
    %v3249 = vmul.f32 %v3230, %v3245
    %v3250 = vmul.f32 %v3231, %v3245
    %v3251 = vmul.f32 %v3232, %v3245
    %v3252 = vmul.f32 %v3233, %v3245
    %v3253 = vmul.f32 %v3234, %v3245
    %v3254 = vmul.f32 %v3235, %v3245
    %v3255 = vmul.f32 %v3236, %v3245
    %v3256 = vmul.f32 %v3237, %v3245
    %v3257 = vmul.f32 %v3238, %v3245
    %v3258 = vmul.f32 %v3239, %v3245
    %v3259 = vmul.f32 %v3240, %v3245
    %v3260 = vmul.f32 %v3241, %v3245
    %v3261 = vmul.f32 %v3242, %v3245
    %v3262 = vmul.f32 %v3243, %v3245
    %v3264 = vperm.slane %v2891, 0
    %v3266 = vadd.f32 %v3247, %v3264
    %v3267 = vadd.f32 %v3248, %v3264
    %v3268 = vadd.f32 %v3249, %v3264
    %v3269 = vadd.f32 %v3250, %v3264
    %v3270 = vadd.f32 %v3251, %v3264
    %v3271 = vadd.f32 %v3252, %v3264
    %v3272 = vadd.f32 %v3253, %v3264
    %v3273 = vadd.f32 %v3254, %v3264
    %v3274 = vadd.f32 %v3255, %v3264
    %v3275 = vadd.f32 %v3256, %v3264
    %v3276 = vadd.f32 %v3257, %v3264
    %v3277 = vadd.f32 %v3258, %v3264
    %v3278 = vadd.f32 %v3259, %v3264
    %v3279 = vadd.f32 %v3260, %v3264
    %v3280 = vadd.f32 %v3261, %v3264
    %v3281 = vadd.f32 %v3262, %v3264
    %3282 = vxpose.xlu0.b32.start [1/16] %v3266, 128
    %3283 = vxpose.xlu0.b32.cont [2/16] %v3267, 128
    %3284 = vxpose.xlu0.b32.cont [3/16] 0.0, 128
    %3285 = vxpose.xlu0.b32.cont [4/16] 0.0, 128
    %3286 = vxpose.xlu0.b32.cont [5/16] 0.0, 128
    %3287 = vxpose.xlu0.b32.cont [6/16] 0.0, 128
    %3288 = vxpose.xlu0.b32.cont [7/16] 0.0, 128
    %3289 = vxpose.xlu0.b32.cont [8/16] 0.0, 128
    %3290 = vxpose.xlu0.b32.cont [9/16] 0.0, 128
    %3291 = vxpose.xlu0.b32.cont [10/16] 0.0, 128
    %3292 = vxpose.xlu0.b32.cont [11/16] 0.0, 128
    %3293 = vxpose.xlu0.b32.cont [12/16] 0.0, 128
    %3294 = vxpose.xlu0.b32.cont [13/16] 0.0, 128
    %3295 = vxpose.xlu0.b32.cont [14/16] 0.0, 128
    %3296 = vxpose.xlu0.b32.cont [15/16] 0.0, 128
    %3297 = vxpose.xlu0.b32.end [16/16] 0.0, 128
    %v3298 = vpop.trf.xlu0
    %v3299 = vpop.trf.xlu0
    %v3300 = vpop.trf.xlu0
    %v3301 = vpop.trf.xlu0
    %v3302 = vpop.trf.xlu0
    %v3303 = vpop.trf.xlu0
    %v3304 = vpop.trf.xlu0
    %v3305 = vpop.trf.xlu0
    %v3306 = vpop.trf.xlu0
    %v3307 = vpop.trf.xlu0
    %v3308 = vpop.trf.xlu0
    %v3309 = vpop.trf.xlu0
    %v3310 = vpop.trf.xlu0
    %v3311 = vpop.trf.xlu0
    %v3312 = vpop.trf.xlu0
    %v3313 = vpop.trf.xlu0
    %3314 = vxpose.xlu0.b32.start [1/16] %v3268, 128
    %3315 = vxpose.xlu0.b32.cont [2/16] %v3269, 128
    %3316 = vxpose.xlu0.b32.cont [3/16] 0.0, 128
    %3317 = vxpose.xlu0.b32.cont [4/16] 0.0, 128
    %3318 = vxpose.xlu0.b32.cont [5/16] 0.0, 128
    %3319 = vxpose.xlu0.b32.cont [6/16] 0.0, 128
    %3320 = vxpose.xlu0.b32.cont [7/16] 0.0, 128
    %3321 = vxpose.xlu0.b32.cont [8/16] 0.0, 128
    %3322 = vxpose.xlu0.b32.cont [9/16] 0.0, 128
    %3323 = vxpose.xlu0.b32.cont [10/16] 0.0, 128
    %3324 = vxpose.xlu0.b32.cont [11/16] 0.0, 128
    %3325 = vxpose.xlu0.b32.cont [12/16] 0.0, 128
    %3326 = vxpose.xlu0.b32.cont [13/16] 0.0, 128
    %3327 = vxpose.xlu0.b32.cont [14/16] 0.0, 128
    %3328 = vxpose.xlu0.b32.cont [15/16] 0.0, 128
    %3329 = vxpose.xlu0.b32.end [16/16] 0.0, 128
    %v3330 = vpop.trf.xlu0
    %v3331 = vpop.trf.xlu0
    %v3332 = vpop.trf.xlu0
    %v3333 = vpop.trf.xlu0
    %v3334 = vpop.trf.xlu0
    %v3335 = vpop.trf.xlu0
    %v3336 = vpop.trf.xlu0
    %v3337 = vpop.trf.xlu0
    %v3338 = vpop.trf.xlu0
    %v3339 = vpop.trf.xlu0
    %v3340 = vpop.trf.xlu0
    %v3341 = vpop.trf.xlu0
    %v3342 = vpop.trf.xlu0
    %v3343 = vpop.trf.xlu0
    %v3344 = vpop.trf.xlu0
    %v3345 = vpop.trf.xlu0
    %3346 = vxpose.xlu0.b32.start [1/16] %v3270, 128
    %3347 = vxpose.xlu0.b32.cont [2/16] %v3271, 128
    %3348 = vxpose.xlu0.b32.cont [3/16] 0.0, 128
    %3349 = vxpose.xlu0.b32.cont [4/16] 0.0, 128
    %3350 = vxpose.xlu0.b32.cont [5/16] 0.0, 128
    %3351 = vxpose.xlu0.b32.cont [6/16] 0.0, 128
    %3352 = vxpose.xlu0.b32.cont [7/16] 0.0, 128
    %3353 = vxpose.xlu0.b32.cont [8/16] 0.0, 128
    %3354 = vxpose.xlu0.b32.cont [9/16] 0.0, 128
    %3355 = vxpose.xlu0.b32.cont [10/16] 0.0, 128
    %3356 = vxpose.xlu0.b32.cont [11/16] 0.0, 128
    %3357 = vxpose.xlu0.b32.cont [12/16] 0.0, 128
    %3358 = vxpose.xlu0.b32.cont [13/16] 0.0, 128
    %3359 = vxpose.xlu0.b32.cont [14/16] 0.0, 128
    %3360 = vxpose.xlu0.b32.cont [15/16] 0.0, 128
    %3361 = vxpose.xlu0.b32.end [16/16] 0.0, 128
    %v3362 = vpop.trf.xlu0
    %v3363 = vpop.trf.xlu0
    %v3364 = vpop.trf.xlu0
    %v3365 = vpop.trf.xlu0
    %v3366 = vpop.trf.xlu0
    %v3367 = vpop.trf.xlu0
    %v3368 = vpop.trf.xlu0
    %v3369 = vpop.trf.xlu0
    %v3370 = vpop.trf.xlu0
    %v3371 = vpop.trf.xlu0
    %v3372 = vpop.trf.xlu0
    %v3373 = vpop.trf.xlu0
    %v3374 = vpop.trf.xlu0
    %v3375 = vpop.trf.xlu0
    %v3376 = vpop.trf.xlu0
    %v3377 = vpop.trf.xlu0
    %3378 = vxpose.xlu0.b32.start [1/16] %v3272, 128
    %3379 = vxpose.xlu0.b32.cont [2/16] %v3273, 128
    %3380 = vxpose.xlu0.b32.cont [3/16] 0.0, 128
    %3381 = vxpose.xlu0.b32.cont [4/16] 0.0, 128
    %3382 = vxpose.xlu0.b32.cont [5/16] 0.0, 128
    %3383 = vxpose.xlu0.b32.cont [6/16] 0.0, 128
    %3384 = vxpose.xlu0.b32.cont [7/16] 0.0, 128
    %3385 = vxpose.xlu0.b32.cont [8/16] 0.0, 128
    %3386 = vxpose.xlu0.b32.cont [9/16] 0.0, 128
    %3387 = vxpose.xlu0.b32.cont [10/16] 0.0, 128
    %3388 = vxpose.xlu0.b32.cont [11/16] 0.0, 128
    %3389 = vxpose.xlu0.b32.cont [12/16] 0.0, 128
    %3390 = vxpose.xlu0.b32.cont [13/16] 0.0, 128
    %3391 = vxpose.xlu0.b32.cont [14/16] 0.0, 128
    %3392 = vxpose.xlu0.b32.cont [15/16] 0.0, 128
    %3393 = vxpose.xlu0.b32.end [16/16] 0.0, 128
    %v3394 = vpop.trf.xlu0
    %v3395 = vpop.trf.xlu0
    %v3396 = vpop.trf.xlu0
    %v3397 = vpop.trf.xlu0
    %v3398 = vpop.trf.xlu0
    %v3399 = vpop.trf.xlu0
    %v3400 = vpop.trf.xlu0
    %v3401 = vpop.trf.xlu0
    %v3402 = vpop.trf.xlu0
    %v3403 = vpop.trf.xlu0
    %v3404 = vpop.trf.xlu0
    %v3405 = vpop.trf.xlu0
    %v3406 = vpop.trf.xlu0
    %v3407 = vpop.trf.xlu0
    %v3408 = vpop.trf.xlu0
    %v3409 = vpop.trf.xlu0
    %3410 = vxpose.xlu0.b32.start [1/16] %v3274, 128
    %3411 = vxpose.xlu0.b32.cont [2/16] %v3275, 128
    %3412 = vxpose.xlu0.b32.cont [3/16] 0.0, 128
    %3413 = vxpose.xlu0.b32.cont [4/16] 0.0, 128
    %3414 = vxpose.xlu0.b32.cont [5/16] 0.0, 128
    %3415 = vxpose.xlu0.b32.cont [6/16] 0.0, 128
    %3416 = vxpose.xlu0.b32.cont [7/16] 0.0, 128
    %3417 = vxpose.xlu0.b32.cont [8/16] 0.0, 128
    %3418 = vxpose.xlu0.b32.cont [9/16] 0.0, 128
    %3419 = vxpose.xlu0.b32.cont [10/16] 0.0, 128
    %3420 = vxpose.xlu0.b32.cont [11/16] 0.0, 128
    %3421 = vxpose.xlu0.b32.cont [12/16] 0.0, 128
    %3422 = vxpose.xlu0.b32.cont [13/16] 0.0, 128
    %3423 = vxpose.xlu0.b32.cont [14/16] 0.0, 128
    %3424 = vxpose.xlu0.b32.cont [15/16] 0.0, 128
    %3425 = vxpose.xlu0.b32.end [16/16] 0.0, 128
    %v3426 = vpop.trf.xlu0
    %v3427 = vpop.trf.xlu0
    %v3428 = vpop.trf.xlu0
    %v3429 = vpop.trf.xlu0
    %v3430 = vpop.trf.xlu0
    %v3431 = vpop.trf.xlu0
    %v3432 = vpop.trf.xlu0
    %v3433 = vpop.trf.xlu0
    %v3434 = vpop.trf.xlu0
    %v3435 = vpop.trf.xlu0
    %v3436 = vpop.trf.xlu0
    %v3437 = vpop.trf.xlu0
    %v3438 = vpop.trf.xlu0
    %v3439 = vpop.trf.xlu0
    %v3440 = vpop.trf.xlu0
    %v3441 = vpop.trf.xlu0
    %3442 = vxpose.xlu0.b32.start [1/16] %v3276, 128
    %3443 = vxpose.xlu0.b32.cont [2/16] %v3277, 128
    %3444 = vxpose.xlu0.b32.cont [3/16] 0.0, 128
    %3445 = vxpose.xlu0.b32.cont [4/16] 0.0, 128
    %3446 = vxpose.xlu0.b32.cont [5/16] 0.0, 128
    %3447 = vxpose.xlu0.b32.cont [6/16] 0.0, 128
    %3448 = vxpose.xlu0.b32.cont [7/16] 0.0, 128
    %3449 = vxpose.xlu0.b32.cont [8/16] 0.0, 128
    %3450 = vxpose.xlu0.b32.cont [9/16] 0.0, 128
    %3451 = vxpose.xlu0.b32.cont [10/16] 0.0, 128
    %3452 = vxpose.xlu0.b32.cont [11/16] 0.0, 128
    %3453 = vxpose.xlu0.b32.cont [12/16] 0.0, 128
    %3454 = vxpose.xlu0.b32.cont [13/16] 0.0, 128
    %3455 = vxpose.xlu0.b32.cont [14/16] 0.0, 128
    %3456 = vxpose.xlu0.b32.cont [15/16] 0.0, 128
    %3457 = vxpose.xlu0.b32.end [16/16] 0.0, 128
    %v3458 = vpop.trf.xlu0
    %v3459 = vpop.trf.xlu0
    %v3460 = vpop.trf.xlu0
    %v3461 = vpop.trf.xlu0
    %v3462 = vpop.trf.xlu0
    %v3463 = vpop.trf.xlu0
    %v3464 = vpop.trf.xlu0
    %v3465 = vpop.trf.xlu0
    %v3466 = vpop.trf.xlu0
    %v3467 = vpop.trf.xlu0
    %v3468 = vpop.trf.xlu0
    %v3469 = vpop.trf.xlu0
    %v3470 = vpop.trf.xlu0
    %v3471 = vpop.trf.xlu0
    %v3472 = vpop.trf.xlu0
    %v3473 = vpop.trf.xlu0
    %3474 = vxpose.xlu0.b32.start [1/16] %v3278, 128
    %3475 = vxpose.xlu0.b32.cont [2/16] %v3279, 128
    %3476 = vxpose.xlu0.b32.cont [3/16] 0.0, 128
    %3477 = vxpose.xlu0.b32.cont [4/16] 0.0, 128
    %3478 = vxpose.xlu0.b32.cont [5/16] 0.0, 128
    %3479 = vxpose.xlu0.b32.cont [6/16] 0.0, 128
    %3480 = vxpose.xlu0.b32.cont [7/16] 0.0, 128
    %3481 = vxpose.xlu0.b32.cont [8/16] 0.0, 128
    %3482 = vxpose.xlu0.b32.cont [9/16] 0.0, 128
    %3483 = vxpose.xlu0.b32.cont [10/16] 0.0, 128
    %3484 = vxpose.xlu0.b32.cont [11/16] 0.0, 128
    %3485 = vxpose.xlu0.b32.cont [12/16] 0.0, 128
    %3486 = vxpose.xlu0.b32.cont [13/16] 0.0, 128
    %3487 = vxpose.xlu0.b32.cont [14/16] 0.0, 128
    %3488 = vxpose.xlu0.b32.cont [15/16] 0.0, 128
    %3489 = vxpose.xlu0.b32.end [16/16] 0.0, 128
    %v3490 = vpop.trf.xlu0
    %v3491 = vpop.trf.xlu0
    %v3492 = vpop.trf.xlu0
    %v3493 = vpop.trf.xlu0
    %v3494 = vpop.trf.xlu0
    %v3495 = vpop.trf.xlu0
    %v3496 = vpop.trf.xlu0
    %v3497 = vpop.trf.xlu0
    %v3498 = vpop.trf.xlu0
    %v3499 = vpop.trf.xlu0
    %v3500 = vpop.trf.xlu0
    %v3501 = vpop.trf.xlu0
    %v3502 = vpop.trf.xlu0
    %v3503 = vpop.trf.xlu0
    %v3504 = vpop.trf.xlu0
    %v3505 = vpop.trf.xlu0
    %3506 = vxpose.xlu0.b32.start [1/16] %v3280, 128
    %3507 = vxpose.xlu0.b32.cont [2/16] %v3281, 128
    %3508 = vxpose.xlu0.b32.cont [3/16] 0.0, 128
    %3509 = vxpose.xlu0.b32.cont [4/16] 0.0, 128
    %3510 = vxpose.xlu0.b32.cont [5/16] 0.0, 128
    %3511 = vxpose.xlu0.b32.cont [6/16] 0.0, 128
    %3512 = vxpose.xlu0.b32.cont [7/16] 0.0, 128
    %3513 = vxpose.xlu0.b32.cont [8/16] 0.0, 128
    %3514 = vxpose.xlu0.b32.cont [9/16] 0.0, 128
    %3515 = vxpose.xlu0.b32.cont [10/16] 0.0, 128
    %3516 = vxpose.xlu0.b32.cont [11/16] 0.0, 128
    %3517 = vxpose.xlu0.b32.cont [12/16] 0.0, 128
    %3518 = vxpose.xlu0.b32.cont [13/16] 0.0, 128
    %3519 = vxpose.xlu0.b32.cont [14/16] 0.0, 128
    %3520 = vxpose.xlu0.b32.cont [15/16] 0.0, 128
    %3521 = vxpose.xlu0.b32.end [16/16] 0.0, 128
    %v3522 = vpop.trf.xlu0
    %v3523 = vpop.trf.xlu0
    %v3524 = vpop.trf.xlu0
    %v3525 = vpop.trf.xlu0
    %v3526 = vpop.trf.xlu0
    %v3527 = vpop.trf.xlu0
    %v3528 = vpop.trf.xlu0
    %v3529 = vpop.trf.xlu0
    %v3530 = vpop.trf.xlu0
    %v3531 = vpop.trf.xlu0
    %v3532 = vpop.trf.xlu0
    %v3533 = vpop.trf.xlu0
    %v3534 = vpop.trf.xlu0
    %v3535 = vpop.trf.xlu0
    %v3536 = vpop.trf.xlu0
    %v3537 = vpop.trf.xlu0
    %s3538 = scalar_lea.vmem %s7, 16
    %v3539 = vld [vmem:[%s3538] sm:$0xff]
    %v3540 = vld [vmem:[%s3538 + $0x8] sm:$0xff]
    %s3541 = scalar_lea.vmem %s8, 1
    %v3542 = vld [vmem:[%s3541] sm:$0x1]
    %v3544 = vperm.slane %v3542, 0
    %v3547 = vsel %vm1227, %v3298, 0
    %v3550 = vsel %vm1227, %v3299, 0
    %v3553 = vsel %vm1227, %v3300, 0
    %v3556 = vsel %vm1227, %v3301, 0
    %v3559 = vsel %vm1227, %v3330, 0
    %v3562 = vsel %vm1227, %v3331, 0
    %v3565 = vsel %vm1227, %v3332, 0
    %v3568 = vsel %vm1227, %v3333, 0
    %v3571 = vsel %vm1227, %v3362, 0
    %v3574 = vsel %vm1227, %v3363, 0
    %v3577 = vsel %vm1227, %v3364, 0
    %v3580 = vsel %vm1227, %v3365, 0
    %v3583 = vsel %vm1227, %v3394, 0
    %v3586 = vsel %vm1227, %v3395, 0
    %v3589 = vsel %vm1227, %v3396, 0
    %v3592 = vsel %vm1227, %v3397, 0
    %v3595 = vsel %vm1227, %v3426, 0
    %v3598 = vsel %vm1227, %v3427, 0
    %v3601 = vsel %vm1227, %v3428, 0
    %v3604 = vsel %vm1227, %v3429, 0
    %v3607 = vsel %vm1227, %v3458, 0
    %v3610 = vsel %vm1227, %v3459, 0
    %v3613 = vsel %vm1227, %v3460, 0
    %v3616 = vsel %vm1227, %v3461, 0
    %v3619 = vsel %vm1227, %v3490, 0
    %v3622 = vsel %vm1227, %v3491, 0
    %v3625 = vsel %vm1227, %v3492, 0
    %v3628 = vsel %vm1227, %v3493, 0
    %v3631 = vsel %vm1227, %v3522, 0
    %v3634 = vsel %vm1227, %v3523, 0
    %v3637 = vsel %vm1227, %v3524, 0
    %v3640 = vsel %vm1227, %v3525, 0
    %3642 = vmatpush.msra.mxu0 0.0
    %3643 = vmatpush.msra.mxu0 0.0
    %3644 = vmatpush.msra.mxu0 0.0
    %3645 = vmatpush.msra.mxu0 0.0
    %3646 = vmatpush.msra.mxu0 0.0
    %3647 = vmatpush.msra.mxu0 0.0
    %3648 = vmatpush.msra.mxu0 0.0
    %3649 = vmatpush.msra.mxu0 0.0
    %3650 = vmatpush.msra.mxu0 0.0
    %3651 = vmatpush.msra.mxu0 0.0
    %3652 = vmatpush.msra.mxu0 0.0
    %3653 = vmatpush.msra.mxu0 0.0
    %3654 = vmatpush.msra.mxu0 0.0
    %3655 = vmatpush.msra.mxu0 0.0
    %3656 = vmatpush.msra.mxu0 %v3540
    %3657 = vmatpush.msra.mxu0 %v3539
    %3658 = vmatmul.f32.gmra.mxu0 %v3547
    %v3659 = vpop.f32.mrf.mxu0
    %v3660 = vadd.f32 %v3544, %v3659
    %3661 = vmatmul.f32.gmra.mxu0 %v3550
    %v3662 = vpop.f32.mrf.mxu0
    %v3663 = vadd.f32 %v3544, %v3662
    %3664 = vmatmul.f32.gmra.mxu0 %v3553
    %v3665 = vpop.f32.mrf.mxu0
    %v3666 = vadd.f32 %v3544, %v3665
    %3667 = vmatmul.f32.gmra.mxu0 %v3556
    %v3668 = vpop.f32.mrf.mxu0
    %v3669 = vadd.f32 %v3544, %v3668
    %3670 = vmatmul.f32.gmra.mxu0 %v3559
    %v3671 = vpop.f32.mrf.mxu0
    %v3672 = vadd.f32 %v3544, %v3671
    %3673 = vmatmul.f32.gmra.mxu0 %v3562
    %v3674 = vpop.f32.mrf.mxu0
    %v3675 = vadd.f32 %v3544, %v3674
    %3676 = vmatmul.f32.gmra.mxu0 %v3565
    %v3677 = vpop.f32.mrf.mxu0
    %v3678 = vadd.f32 %v3544, %v3677
    %3679 = vmatmul.f32.gmra.mxu0 %v3568
    %v3680 = vpop.f32.mrf.mxu0
    %v3681 = vadd.f32 %v3544, %v3680
    %3682 = vmatmul.f32.gmra.mxu0 %v3571
    %v3683 = vpop.f32.mrf.mxu0
    %v3684 = vadd.f32 %v3544, %v3683
    %3685 = vmatmul.f32.gmra.mxu0 %v3574
    %v3686 = vpop.f32.mrf.mxu0
    %v3687 = vadd.f32 %v3544, %v3686
    %3688 = vmatmul.f32.gmra.mxu0 %v3577
    %v3689 = vpop.f32.mrf.mxu0
    %v3690 = vadd.f32 %v3544, %v3689
    %3691 = vmatmul.f32.gmra.mxu0 %v3580
    %v3692 = vpop.f32.mrf.mxu0
    %v3693 = vadd.f32 %v3544, %v3692
    %3694 = vmatmul.f32.gmra.mxu0 %v3583
    %v3695 = vpop.f32.mrf.mxu0
    %v3696 = vadd.f32 %v3544, %v3695
    %3697 = vmatmul.f32.gmra.mxu0 %v3586
    %v3698 = vpop.f32.mrf.mxu0
    %v3699 = vadd.f32 %v3544, %v3698
    %3700 = vmatmul.f32.gmra.mxu0 %v3589
    %v3701 = vpop.f32.mrf.mxu0
    %v3702 = vadd.f32 %v3544, %v3701
    %3703 = vmatmul.f32.gmra.mxu0 %v3592
    %v3704 = vpop.f32.mrf.mxu0
    %v3705 = vadd.f32 %v3544, %v3704
    %3706 = vmatmul.f32.gmra.mxu0 %v3595
    %v3707 = vpop.f32.mrf.mxu0
    %v3708 = vadd.f32 %v3544, %v3707
    %3709 = vmatmul.f32.gmra.mxu0 %v3598
    %v3710 = vpop.f32.mrf.mxu0
    %v3711 = vadd.f32 %v3544, %v3710
    %3712 = vmatmul.f32.gmra.mxu0 %v3601
    %v3713 = vpop.f32.mrf.mxu0
    %v3714 = vadd.f32 %v3544, %v3713
    %3715 = vmatmul.f32.gmra.mxu0 %v3604
    %v3716 = vpop.f32.mrf.mxu0
    %v3717 = vadd.f32 %v3544, %v3716
    %3718 = vmatmul.f32.gmra.mxu0 %v3607
    %v3719 = vpop.f32.mrf.mxu0
    %v3720 = vadd.f32 %v3544, %v3719
    %3721 = vmatmul.f32.gmra.mxu0 %v3610
    %v3722 = vpop.f32.mrf.mxu0
    %v3723 = vadd.f32 %v3544, %v3722
    %3724 = vmatmul.f32.gmra.mxu0 %v3613
    %v3725 = vpop.f32.mrf.mxu0
    %v3726 = vadd.f32 %v3544, %v3725
    %3727 = vmatmul.f32.gmra.mxu0 %v3616
    %v3728 = vpop.f32.mrf.mxu0
    %v3729 = vadd.f32 %v3544, %v3728
    %3730 = vmatmul.f32.gmra.mxu0 %v3619
    %v3731 = vpop.f32.mrf.mxu0
    %v3732 = vadd.f32 %v3544, %v3731
    %3733 = vmatmul.f32.gmra.mxu0 %v3622
    %v3734 = vpop.f32.mrf.mxu0
    %v3735 = vadd.f32 %v3544, %v3734
    %3736 = vmatmul.f32.gmra.mxu0 %v3625
    %v3737 = vpop.f32.mrf.mxu0
    %v3738 = vadd.f32 %v3544, %v3737
    %3739 = vmatmul.f32.gmra.mxu0 %v3628
    %v3740 = vpop.f32.mrf.mxu0
    %v3741 = vadd.f32 %v3544, %v3740
    %3742 = vmatmul.f32.gmra.mxu0 %v3631
    %v3743 = vpop.f32.mrf.mxu0
    %v3744 = vadd.f32 %v3544, %v3743
    %3745 = vmatmul.f32.gmra.mxu0 %v3634
    %v3746 = vpop.f32.mrf.mxu0
    %v3747 = vadd.f32 %v3544, %v3746
    %3748 = vmatmul.f32.gmra.mxu0 %v3637
    %v3749 = vpop.f32.mrf.mxu0
    %v3750 = vadd.f32 %v3544, %v3749
    %3751 = vmatmul.f32.gmra.mxu0 %v3640
    %v3752 = vpop.f32.mrf.mxu0
    %v3753 = vadd.f32 %v3544, %v3752
    %3754 = vdwg.mxu0
    %v3755 = vmul.f32 %v3660, 0.5
    %v3756 = vmul.f32 %v3663, 0.5
    %v3757 = vmul.f32 %v3666, 0.5
    %v3758 = vmul.f32 %v3669, 0.5
    %v3759 = vmul.f32 %v3672, 0.5
    %v3760 = vmul.f32 %v3675, 0.5
    %v3761 = vmul.f32 %v3678, 0.5
    %v3762 = vmul.f32 %v3681, 0.5
    %v3763 = vmul.f32 %v3684, 0.5
    %v3764 = vmul.f32 %v3687, 0.5
    %v3765 = vmul.f32 %v3690, 0.5
    %v3766 = vmul.f32 %v3693, 0.5
    %v3767 = vmul.f32 %v3696, 0.5
    %v3768 = vmul.f32 %v3699, 0.5
    %v3769 = vmul.f32 %v3702, 0.5
    %v3770 = vmul.f32 %v3705, 0.5
    %v3771 = vmul.f32 %v3708, 0.5
    %v3772 = vmul.f32 %v3711, 0.5
    %v3773 = vmul.f32 %v3714, 0.5
    %v3774 = vmul.f32 %v3717, 0.5
    %v3775 = vmul.f32 %v3720, 0.5
    %v3776 = vmul.f32 %v3723, 0.5
    %v3777 = vmul.f32 %v3726, 0.5
    %v3778 = vmul.f32 %v3729, 0.5
    %v3779 = vmul.f32 %v3732, 0.5
    %v3780 = vmul.f32 %v3735, 0.5
    %v3781 = vmul.f32 %v3738, 0.5
    %v3782 = vmul.f32 %v3741, 0.5
    %v3783 = vmul.f32 %v3744, 0.5
    %v3784 = vmul.f32 %v3747, 0.5
    %v3785 = vmul.f32 %v3750, 0.5
    %v3786 = vmul.f32 %v3753, 0.5
    %v3787 = vmul.f32 %v3660, 0.044715
    %v3788 = vmul.f32 %v3663, 0.044715
    %v3789 = vmul.f32 %v3666, 0.044715
    %v3790 = vmul.f32 %v3669, 0.044715
    %v3791 = vmul.f32 %v3672, 0.044715
    %v3792 = vmul.f32 %v3675, 0.044715
    %v3793 = vmul.f32 %v3678, 0.044715
    %v3794 = vmul.f32 %v3681, 0.044715
    %v3795 = vmul.f32 %v3684, 0.044715
    %v3796 = vmul.f32 %v3687, 0.044715
    %v3797 = vmul.f32 %v3690, 0.044715
    %v3798 = vmul.f32 %v3693, 0.044715
    %v3799 = vmul.f32 %v3696, 0.044715
    %v3800 = vmul.f32 %v3699, 0.044715
    %v3801 = vmul.f32 %v3702, 0.044715
    %v3802 = vmul.f32 %v3705, 0.044715
    %v3803 = vmul.f32 %v3708, 0.044715
    %v3804 = vmul.f32 %v3711, 0.044715
    %v3805 = vmul.f32 %v3714, 0.044715
    %v3806 = vmul.f32 %v3717, 0.044715
    %v3807 = vmul.f32 %v3720, 0.044715
    %v3808 = vmul.f32 %v3723, 0.044715
    %v3809 = vmul.f32 %v3726, 0.044715
    %v3810 = vmul.f32 %v3729, 0.044715
    %v3811 = vmul.f32 %v3732, 0.044715
    %v3812 = vmul.f32 %v3735, 0.044715
    %v3813 = vmul.f32 %v3738, 0.044715
    %v3814 = vmul.f32 %v3741, 0.044715
    %v3815 = vmul.f32 %v3744, 0.044715
    %v3816 = vmul.f32 %v3747, 0.044715
    %v3817 = vmul.f32 %v3750, 0.044715
    %v3818 = vmul.f32 %v3753, 0.044715
    %v3819 = vmul.f32 %v3787, %v3660
    %v3820 = vmul.f32 %v3788, %v3663
    %v3821 = vmul.f32 %v3789, %v3666
    %v3822 = vmul.f32 %v3790, %v3669
    %v3823 = vmul.f32 %v3791, %v3672
    %v3824 = vmul.f32 %v3792, %v3675
    %v3825 = vmul.f32 %v3793, %v3678
    %v3826 = vmul.f32 %v3794, %v3681
    %v3827 = vmul.f32 %v3795, %v3684
    %v3828 = vmul.f32 %v3796, %v3687
    %v3829 = vmul.f32 %v3797, %v3690
    %v3830 = vmul.f32 %v3798, %v3693
    %v3831 = vmul.f32 %v3799, %v3696
    %v3832 = vmul.f32 %v3800, %v3699
    %v3833 = vmul.f32 %v3801, %v3702
    %v3834 = vmul.f32 %v3802, %v3705
    %v3835 = vmul.f32 %v3803, %v3708
    %v3836 = vmul.f32 %v3804, %v3711
    %v3837 = vmul.f32 %v3805, %v3714
    %v3838 = vmul.f32 %v3806, %v3717
    %v3839 = vmul.f32 %v3807, %v3720
    %v3840 = vmul.f32 %v3808, %v3723
    %v3841 = vmul.f32 %v3809, %v3726
    %v3842 = vmul.f32 %v3810, %v3729
    %v3843 = vmul.f32 %v3811, %v3732
    %v3844 = vmul.f32 %v3812, %v3735
    %v3845 = vmul.f32 %v3813, %v3738
    %v3846 = vmul.f32 %v3814, %v3741
    %v3847 = vmul.f32 %v3815, %v3744
    %v3848 = vmul.f32 %v3816, %v3747
    %v3849 = vmul.f32 %v3817, %v3750
    %v3850 = vmul.f32 %v3818, %v3753
    %v3851 = vmul.f32 %v3819, %v3660
    %v3852 = vmul.f32 %v3820, %v3663
    %v3853 = vmul.f32 %v3821, %v3666
    %v3854 = vmul.f32 %v3822, %v3669
    %v3855 = vmul.f32 %v3823, %v3672
    %v3856 = vmul.f32 %v3824, %v3675
    %v3857 = vmul.f32 %v3825, %v3678
    %v3858 = vmul.f32 %v3826, %v3681
    %v3859 = vmul.f32 %v3827, %v3684
    %v3860 = vmul.f32 %v3828, %v3687
    %v3861 = vmul.f32 %v3829, %v3690
    %v3862 = vmul.f32 %v3830, %v3693
    %v3863 = vmul.f32 %v3831, %v3696
    %v3864 = vmul.f32 %v3832, %v3699
    %v3865 = vmul.f32 %v3833, %v3702
    %v3866 = vmul.f32 %v3834, %v3705
    %v3867 = vmul.f32 %v3835, %v3708
    %v3868 = vmul.f32 %v3836, %v3711
    %v3869 = vmul.f32 %v3837, %v3714
    %v3870 = vmul.f32 %v3838, %v3717
    %v3871 = vmul.f32 %v3839, %v3720
    %v3872 = vmul.f32 %v3840, %v3723
    %v3873 = vmul.f32 %v3841, %v3726
    %v3874 = vmul.f32 %v3842, %v3729
    %v3875 = vmul.f32 %v3843, %v3732
    %v3876 = vmul.f32 %v3844, %v3735
    %v3877 = vmul.f32 %v3845, %v3738
    %v3878 = vmul.f32 %v3846, %v3741
    %v3879 = vmul.f32 %v3847, %v3744
    %v3880 = vmul.f32 %v3848, %v3747
    %v3881 = vmul.f32 %v3849, %v3750
    %v3882 = vmul.f32 %v3850, %v3753
    %v3883 = vadd.f32 %v3660, %v3851
    %v3884 = vadd.f32 %v3663, %v3852
    %v3885 = vadd.f32 %v3666, %v3853
    %v3886 = vadd.f32 %v3669, %v3854
    %v3887 = vadd.f32 %v3672, %v3855
    %v3888 = vadd.f32 %v3675, %v3856
    %v3889 = vadd.f32 %v3678, %v3857
    %v3890 = vadd.f32 %v3681, %v3858
    %v3891 = vadd.f32 %v3684, %v3859
    %v3892 = vadd.f32 %v3687, %v3860
    %v3893 = vadd.f32 %v3690, %v3861
    %v3894 = vadd.f32 %v3693, %v3862
    %v3895 = vadd.f32 %v3696, %v3863
    %v3896 = vadd.f32 %v3699, %v3864
    %v3897 = vadd.f32 %v3702, %v3865
    %v3898 = vadd.f32 %v3705, %v3866
    %v3899 = vadd.f32 %v3708, %v3867
    %v3900 = vadd.f32 %v3711, %v3868
    %v3901 = vadd.f32 %v3714, %v3869
    %v3902 = vadd.f32 %v3717, %v3870
    %v3903 = vadd.f32 %v3720, %v3871
    %v3904 = vadd.f32 %v3723, %v3872
    %v3905 = vadd.f32 %v3726, %v3873
    %v3906 = vadd.f32 %v3729, %v3874
    %v3907 = vadd.f32 %v3732, %v3875
    %v3908 = vadd.f32 %v3735, %v3876
    %v3909 = vadd.f32 %v3738, %v3877
    %v3910 = vadd.f32 %v3741, %v3878
    %v3911 = vadd.f32 %v3744, %v3879
    %v3912 = vadd.f32 %v3747, %v3880
    %v3913 = vadd.f32 %v3750, %v3881
    %v3914 = vadd.f32 %v3753, %v3882
    %v3915 = vmul.f32 %v3883, 0.7978846
    %v3916 = vmul.f32 %v3884, 0.7978846
    %v3917 = vmul.f32 %v3885, 0.7978846
    %v3918 = vmul.f32 %v3886, 0.7978846
    %v3919 = vmul.f32 %v3887, 0.7978846
    %v3920 = vmul.f32 %v3888, 0.7978846
    %v3921 = vmul.f32 %v3889, 0.7978846
    %v3922 = vmul.f32 %v3890, 0.7978846
    %v3923 = vmul.f32 %v3891, 0.7978846
    %v3924 = vmul.f32 %v3892, 0.7978846
    %v3925 = vmul.f32 %v3893, 0.7978846
    %v3926 = vmul.f32 %v3894, 0.7978846
    %v3927 = vmul.f32 %v3895, 0.7978846
    %v3928 = vmul.f32 %v3896, 0.7978846
    %v3929 = vmul.f32 %v3897, 0.7978846
    %v3930 = vmul.f32 %v3898, 0.7978846
    %v3931 = vmul.f32 %v3899, 0.7978846
    %v3932 = vmul.f32 %v3900, 0.7978846
    %v3933 = vmul.f32 %v3901, 0.7978846
    %v3934 = vmul.f32 %v3902, 0.7978846
    %v3935 = vmul.f32 %v3903, 0.7978846
    %v3936 = vmul.f32 %v3904, 0.7978846
    %v3937 = vmul.f32 %v3905, 0.7978846
    %v3938 = vmul.f32 %v3906, 0.7978846
    %v3939 = vmul.f32 %v3907, 0.7978846
    %v3940 = vmul.f32 %v3908, 0.7978846
    %v3941 = vmul.f32 %v3909, 0.7978846
    %v3942 = vmul.f32 %v3910, 0.7978846
    %v3943 = vmul.f32 %v3911, 0.7978846
    %v3944 = vmul.f32 %v3912, 0.7978846
    %v3945 = vmul.f32 %v3913, 0.7978846
    %v3946 = vmul.f32 %v3914, 0.7978846
    %v3947 = vtanh.pop %v3915
    %v3948 = vtanh.pop %v3916
    %v3949 = vtanh.pop %v3917
    %v3950 = vtanh.pop %v3918
    %v3951 = vtanh.pop %v3919
    %v3952 = vtanh.pop %v3920
    %v3953 = vtanh.pop %v3921
    %v3954 = vtanh.pop %v3922
    %v3955 = vtanh.pop %v3923
    %v3956 = vtanh.pop %v3924
    %v3957 = vtanh.pop %v3925
    %v3958 = vtanh.pop %v3926
    %v3959 = vtanh.pop %v3927
    %v3960 = vtanh.pop %v3928
    %v3961 = vtanh.pop %v3929
    %v3962 = vtanh.pop %v3930
    %v3963 = vtanh.pop %v3931
    %v3964 = vtanh.pop %v3932
    %v3965 = vtanh.pop %v3933
    %v3966 = vtanh.pop %v3934
    %v3967 = vtanh.pop %v3935
    %v3968 = vtanh.pop %v3936
    %v3969 = vtanh.pop %v3937
    %v3970 = vtanh.pop %v3938
    %v3971 = vtanh.pop %v3939
    %v3972 = vtanh.pop %v3940
    %v3973 = vtanh.pop %v3941
    %v3974 = vtanh.pop %v3942
    %v3975 = vtanh.pop %v3943
    %v3976 = vtanh.pop %v3944
    %v3977 = vtanh.pop %v3945
    %v3978 = vtanh.pop %v3946
    %v3979 = vadd.f32 %v3947, 1.0
    %v3980 = vadd.f32 %v3948, 1.0
    %v3981 = vadd.f32 %v3949, 1.0
    %v3982 = vadd.f32 %v3950, 1.0
    %v3983 = vadd.f32 %v3951, 1.0
    %v3984 = vadd.f32 %v3952, 1.0
    %v3985 = vadd.f32 %v3953, 1.0
    %v3986 = vadd.f32 %v3954, 1.0
    %v3987 = vadd.f32 %v3955, 1.0
    %v3988 = vadd.f32 %v3956, 1.0
    %v3989 = vadd.f32 %v3957, 1.0
    %v3990 = vadd.f32 %v3958, 1.0
    %v3991 = vadd.f32 %v3959, 1.0
    %v3992 = vadd.f32 %v3960, 1.0
    %v3993 = vadd.f32 %v3961, 1.0
    %v3994 = vadd.f32 %v3962, 1.0
    %v3995 = vadd.f32 %v3963, 1.0
    %v3996 = vadd.f32 %v3964, 1.0
    %v3997 = vadd.f32 %v3965, 1.0
    %v3998 = vadd.f32 %v3966, 1.0
    %v3999 = vadd.f32 %v3967, 1.0
    %v4000 = vadd.f32 %v3968, 1.0
    %v4001 = vadd.f32 %v3969, 1.0
    %v4002 = vadd.f32 %v3970, 1.0
    %v4003 = vadd.f32 %v3971, 1.0
    %v4004 = vadd.f32 %v3972, 1.0
    %v4005 = vadd.f32 %v3973, 1.0
    %v4006 = vadd.f32 %v3974, 1.0
    %v4007 = vadd.f32 %v3975, 1.0
    %v4008 = vadd.f32 %v3976, 1.0
    %v4009 = vadd.f32 %v3977, 1.0
    %v4010 = vadd.f32 %v3978, 1.0
    %v4011 = vmul.f32 %v3755, %v3979
    %v4012 = vmul.f32 %v3756, %v3980
    %v4013 = vmul.f32 %v3757, %v3981
    %v4014 = vmul.f32 %v3758, %v3982
    %v4015 = vmul.f32 %v3759, %v3983
    %v4016 = vmul.f32 %v3760, %v3984
    %v4017 = vmul.f32 %v3761, %v3985
    %v4018 = vmul.f32 %v3762, %v3986
    %v4019 = vmul.f32 %v3763, %v3987
    %v4020 = vmul.f32 %v3764, %v3988
    %v4021 = vmul.f32 %v3765, %v3989
    %v4022 = vmul.f32 %v3766, %v3990
    %v4023 = vmul.f32 %v3767, %v3991
    %v4024 = vmul.f32 %v3768, %v3992
    %v4025 = vmul.f32 %v3769, %v3993
    %v4026 = vmul.f32 %v3770, %v3994
    %v4027 = vmul.f32 %v3771, %v3995
    %v4028 = vmul.f32 %v3772, %v3996
    %v4029 = vmul.f32 %v3773, %v3997
    %v4030 = vmul.f32 %v3774, %v3998
    %v4031 = vmul.f32 %v3775, %v3999
    %v4032 = vmul.f32 %v3776, %v4000
    %v4033 = vmul.f32 %v3777, %v4001
    %v4034 = vmul.f32 %v3778, %v4002
    %v4035 = vmul.f32 %v3779, %v4003
    %v4036 = vmul.f32 %v3780, %v4004
    %v4037 = vmul.f32 %v3781, %v4005
    %v4038 = vmul.f32 %v3782, %v4006
    %v4039 = vmul.f32 %v3783, %v4007
    %v4040 = vmul.f32 %v3784, %v4008
    %v4041 = vmul.f32 %v3785, %v4009
    %v4042 = vmul.f32 %v3786, %v4010
    %s4043 = scalar_lea.vmem %s9, 128
    %v4044 = vld [vmem:[%s4043] sm:$0xff]
    %v4045 = vld [vmem:[%s4043 + $0x8] sm:$0xff]
    %v4046 = vld [vmem:[%s4043 + $0x10] sm:$0xff]
    %v4047 = vld [vmem:[%s4043 + $0x18] sm:$0xff]
    %v4048 = vld [vmem:[%s4043 + $0x20] sm:$0xff]
    %v4049 = vld [vmem:[%s4043 + $0x28] sm:$0xff]
    %v4050 = vld [vmem:[%s4043 + $0x30] sm:$0xff]
    %v4051 = vld [vmem:[%s4043 + $0x38] sm:$0xff]
    %v4052 = vld [vmem:[%s4043 + $0x40] sm:$0xff]
    %v4053 = vld [vmem:[%s4043 + $0x48] sm:$0xff]
    %v4054 = vld [vmem:[%s4043 + $0x50] sm:$0xff]
    %v4055 = vld [vmem:[%s4043 + $0x58] sm:$0xff]
    %v4056 = vld [vmem:[%s4043 + $0x60] sm:$0xff]
    %v4057 = vld [vmem:[%s4043 + $0x68] sm:$0xff]
    %v4058 = vld [vmem:[%s4043 + $0x70] sm:$0xff]
    %v4059 = vld [vmem:[%s4043 + $0x78] sm:$0xff]
    %s4060 = scalar_lea.vmem %s10, 1
    %v4061 = vld [vmem:[%s4060] sm:$0x1]
    %v4063 = vperm.slane %v4061, 0
    %4065 = vmatpush.msra.mxu0 %v4059
    %4066 = vmatpush.msra.mxu0 %v4058
    %4067 = vmatpush.msra.mxu0 %v4057
    %4068 = vmatpush.msra.mxu0 %v4056
    %4069 = vmatpush.msra.mxu0 %v4055
    %4070 = vmatpush.msra.mxu0 %v4054
    %4071 = vmatpush.msra.mxu0 %v4053
    %4072 = vmatpush.msra.mxu0 %v4052
    %4073 = vmatpush.msra.mxu0 %v4051
    %4074 = vmatpush.msra.mxu0 %v4050
    %4075 = vmatpush.msra.mxu0 %v4049
    %4076 = vmatpush.msra.mxu0 %v4048
    %4077 = vmatpush.msra.mxu0 %v4047
    %4078 = vmatpush.msra.mxu0 %v4046
    %4079 = vmatpush.msra.mxu0 %v4045
    %4080 = vmatpush.msra.mxu0 %v4044
    %4081 = vmatmul.f32.gmra.mxu0 %v4011
    %v4082 = vpop.f32.mrf.mxu0
    %v4083 = vadd.f32 %v4063, %v4082
    %4084 = vmatmul.f32.gmra.mxu0 %v4012
    %v4085 = vpop.f32.mrf.mxu0
    %v4086 = vadd.f32 %v4063, %v4085
    %4087 = vmatmul.f32.gmra.mxu0 %v4013
    %v4088 = vpop.f32.mrf.mxu0
    %v4089 = vadd.f32 %v4063, %v4088
    %4090 = vmatmul.f32.gmra.mxu0 %v4014
    %v4091 = vpop.f32.mrf.mxu0
    %v4092 = vadd.f32 %v4063, %v4091
    %4093 = vmatmul.f32.gmra.mxu0 %v4015
    %v4094 = vpop.f32.mrf.mxu0
    %v4095 = vadd.f32 %v4063, %v4094
    %4096 = vmatmul.f32.gmra.mxu0 %v4016
    %v4097 = vpop.f32.mrf.mxu0
    %v4098 = vadd.f32 %v4063, %v4097
    %4099 = vmatmul.f32.gmra.mxu0 %v4017
    %v4100 = vpop.f32.mrf.mxu0
    %v4101 = vadd.f32 %v4063, %v4100
    %4102 = vmatmul.f32.gmra.mxu0 %v4018
    %v4103 = vpop.f32.mrf.mxu0
    %v4104 = vadd.f32 %v4063, %v4103
    %4105 = vmatmul.f32.gmra.mxu0 %v4019
    %v4106 = vpop.f32.mrf.mxu0
    %v4107 = vadd.f32 %v4063, %v4106
    %4108 = vmatmul.f32.gmra.mxu0 %v4020
    %v4109 = vpop.f32.mrf.mxu0
    %v4110 = vadd.f32 %v4063, %v4109
    %4111 = vmatmul.f32.gmra.mxu0 %v4021
    %v4112 = vpop.f32.mrf.mxu0
    %v4113 = vadd.f32 %v4063, %v4112
    %4114 = vmatmul.f32.gmra.mxu0 %v4022
    %v4115 = vpop.f32.mrf.mxu0
    %v4116 = vadd.f32 %v4063, %v4115
    %4117 = vmatmul.f32.gmra.mxu0 %v4023
    %v4118 = vpop.f32.mrf.mxu0
    %v4119 = vadd.f32 %v4063, %v4118
    %4120 = vmatmul.f32.gmra.mxu0 %v4024
    %v4121 = vpop.f32.mrf.mxu0
    %v4122 = vadd.f32 %v4063, %v4121
    %4123 = vmatmul.f32.gmra.mxu0 %v4025
    %v4124 = vpop.f32.mrf.mxu0
    %v4125 = vadd.f32 %v4063, %v4124
    %4126 = vmatmul.f32.gmra.mxu0 %v4026
    %v4127 = vpop.f32.mrf.mxu0
    %v4128 = vadd.f32 %v4063, %v4127
    %4129 = vmatmul.f32.gmra.mxu0 %v4027
    %v4130 = vpop.f32.mrf.mxu0
    %v4131 = vadd.f32 %v4063, %v4130
    %4132 = vmatmul.f32.gmra.mxu0 %v4028
    %v4133 = vpop.f32.mrf.mxu0
    %v4134 = vadd.f32 %v4063, %v4133
    %4135 = vmatmul.f32.gmra.mxu0 %v4029
    %v4136 = vpop.f32.mrf.mxu0
    %v4137 = vadd.f32 %v4063, %v4136
    %4138 = vmatmul.f32.gmra.mxu0 %v4030
    %v4139 = vpop.f32.mrf.mxu0
    %v4140 = vadd.f32 %v4063, %v4139
    %4141 = vmatmul.f32.gmra.mxu0 %v4031
    %v4142 = vpop.f32.mrf.mxu0
    %v4143 = vadd.f32 %v4063, %v4142
    %4144 = vmatmul.f32.gmra.mxu0 %v4032
    %v4145 = vpop.f32.mrf.mxu0
    %v4146 = vadd.f32 %v4063, %v4145
    %4147 = vmatmul.f32.gmra.mxu0 %v4033
    %v4148 = vpop.f32.mrf.mxu0
    %v4149 = vadd.f32 %v4063, %v4148
    %4150 = vmatmul.f32.gmra.mxu0 %v4034
    %v4151 = vpop.f32.mrf.mxu0
    %v4152 = vadd.f32 %v4063, %v4151
    %4153 = vmatmul.f32.gmra.mxu0 %v4035
    %v4154 = vpop.f32.mrf.mxu0
    %v4155 = vadd.f32 %v4063, %v4154
    %4156 = vmatmul.f32.gmra.mxu0 %v4036
    %v4157 = vpop.f32.mrf.mxu0
    %v4158 = vadd.f32 %v4063, %v4157
    %4159 = vmatmul.f32.gmra.mxu0 %v4037
    %v4160 = vpop.f32.mrf.mxu0
    %v4161 = vadd.f32 %v4063, %v4160
    %4162 = vmatmul.f32.gmra.mxu0 %v4038
    %v4163 = vpop.f32.mrf.mxu0
    %v4164 = vadd.f32 %v4063, %v4163
    %4165 = vmatmul.f32.gmra.mxu0 %v4039
    %v4166 = vpop.f32.mrf.mxu0
    %v4167 = vadd.f32 %v4063, %v4166
    %4168 = vmatmul.f32.gmra.mxu0 %v4040
    %v4169 = vpop.f32.mrf.mxu0
    %v4170 = vadd.f32 %v4063, %v4169
    %4171 = vmatmul.f32.gmra.mxu0 %v4041
    %v4172 = vpop.f32.mrf.mxu0
    %v4173 = vadd.f32 %v4063, %v4172
    %4174 = vmatmul.f32.gmra.mxu0 %v4042
    %v4175 = vpop.f32.mrf.mxu0
    %v4176 = vadd.f32 %v4063, %v4175
    %4177 = vdwg.mxu0
    %4178 = vxpose.xlu0.b32.start [1/16] %v4083, 128
    %4179 = vxpose.xlu0.b32.cont [2/16] %v4086, 128
    %4180 = vxpose.xlu0.b32.cont [3/16] %v4089, 128
    %4181 = vxpose.xlu0.b32.cont [4/16] %v4092, 128
    %4182 = vxpose.xlu0.b32.cont [5/16] 0.0, 128
    %4183 = vxpose.xlu0.b32.cont [6/16] 0.0, 128
    %4184 = vxpose.xlu0.b32.cont [7/16] 0.0, 128
    %4185 = vxpose.xlu0.b32.cont [8/16] 0.0, 128
    %4186 = vxpose.xlu0.b32.cont [9/16] 0.0, 128
    %4187 = vxpose.xlu0.b32.cont [10/16] 0.0, 128
    %4188 = vxpose.xlu0.b32.cont [11/16] 0.0, 128
    %4189 = vxpose.xlu0.b32.cont [12/16] 0.0, 128
    %4190 = vxpose.xlu0.b32.cont [13/16] 0.0, 128
    %4191 = vxpose.xlu0.b32.cont [14/16] 0.0, 128
    %4192 = vxpose.xlu0.b32.cont [15/16] 0.0, 128
    %4193 = vxpose.xlu0.b32.end [16/16] 0.0, 128
    %v4194 = vpop.trf.xlu0
    %v4195 = vpop.trf.xlu0
    %v4196 = vpop.trf.xlu0
    %v4197 = vpop.trf.xlu0
    %v4198 = vpop.trf.xlu0
    %v4199 = vpop.trf.xlu0
    %v4200 = vpop.trf.xlu0
    %v4201 = vpop.trf.xlu0
    %v4202 = vpop.trf.xlu0
    %v4203 = vpop.trf.xlu0
    %v4204 = vpop.trf.xlu0
    %v4205 = vpop.trf.xlu0
    %v4206 = vpop.trf.xlu0
    %v4207 = vpop.trf.xlu0
    %v4208 = vpop.trf.xlu0
    %v4209 = vpop.trf.xlu0
    %4210 = vxpose.xlu0.b32.start [1/16] %v4095, 128
    %4211 = vxpose.xlu0.b32.cont [2/16] %v4098, 128
    %4212 = vxpose.xlu0.b32.cont [3/16] %v4101, 128
    %4213 = vxpose.xlu0.b32.cont [4/16] %v4104, 128
    %4214 = vxpose.xlu0.b32.cont [5/16] 0.0, 128
    %4215 = vxpose.xlu0.b32.cont [6/16] 0.0, 128
    %4216 = vxpose.xlu0.b32.cont [7/16] 0.0, 128
    %4217 = vxpose.xlu0.b32.cont [8/16] 0.0, 128
    %4218 = vxpose.xlu0.b32.cont [9/16] 0.0, 128
    %4219 = vxpose.xlu0.b32.cont [10/16] 0.0, 128
    %4220 = vxpose.xlu0.b32.cont [11/16] 0.0, 128
    %4221 = vxpose.xlu0.b32.cont [12/16] 0.0, 128
    %4222 = vxpose.xlu0.b32.cont [13/16] 0.0, 128
    %4223 = vxpose.xlu0.b32.cont [14/16] 0.0, 128
    %4224 = vxpose.xlu0.b32.cont [15/16] 0.0, 128
    %4225 = vxpose.xlu0.b32.end [16/16] 0.0, 128
    %v4226 = vpop.trf.xlu0
    %v4227 = vpop.trf.xlu0
    %v4228 = vpop.trf.xlu0
    %v4229 = vpop.trf.xlu0
    %v4230 = vpop.trf.xlu0
    %v4231 = vpop.trf.xlu0
    %v4232 = vpop.trf.xlu0
    %v4233 = vpop.trf.xlu0
    %v4234 = vpop.trf.xlu0
    %v4235 = vpop.trf.xlu0
    %v4236 = vpop.trf.xlu0
    %v4237 = vpop.trf.xlu0
    %v4238 = vpop.trf.xlu0
    %v4239 = vpop.trf.xlu0
    %v4240 = vpop.trf.xlu0
    %v4241 = vpop.trf.xlu0
    %4242 = vxpose.xlu0.b32.start [1/16] %v4107, 128
    %4243 = vxpose.xlu0.b32.cont [2/16] %v4110, 128
    %4244 = vxpose.xlu0.b32.cont [3/16] %v4113, 128
    %4245 = vxpose.xlu0.b32.cont [4/16] %v4116, 128
    %4246 = vxpose.xlu0.b32.cont [5/16] 0.0, 128
    %4247 = vxpose.xlu0.b32.cont [6/16] 0.0, 128
    %4248 = vxpose.xlu0.b32.cont [7/16] 0.0, 128
    %4249 = vxpose.xlu0.b32.cont [8/16] 0.0, 128
    %4250 = vxpose.xlu0.b32.cont [9/16] 0.0, 128
    %4251 = vxpose.xlu0.b32.cont [10/16] 0.0, 128
    %4252 = vxpose.xlu0.b32.cont [11/16] 0.0, 128
    %4253 = vxpose.xlu0.b32.cont [12/16] 0.0, 128
    %4254 = vxpose.xlu0.b32.cont [13/16] 0.0, 128
    %4255 = vxpose.xlu0.b32.cont [14/16] 0.0, 128
    %4256 = vxpose.xlu0.b32.cont [15/16] 0.0, 128
    %4257 = vxpose.xlu0.b32.end [16/16] 0.0, 128
    %v4258 = vpop.trf.xlu0
    %v4259 = vpop.trf.xlu0
    %v4260 = vpop.trf.xlu0
    %v4261 = vpop.trf.xlu0
    %v4262 = vpop.trf.xlu0
    %v4263 = vpop.trf.xlu0
    %v4264 = vpop.trf.xlu0
    %v4265 = vpop.trf.xlu0
    %v4266 = vpop.trf.xlu0
    %v4267 = vpop.trf.xlu0
    %v4268 = vpop.trf.xlu0
    %v4269 = vpop.trf.xlu0
    %v4270 = vpop.trf.xlu0
    %v4271 = vpop.trf.xlu0
    %v4272 = vpop.trf.xlu0
    %v4273 = vpop.trf.xlu0
    %4274 = vxpose.xlu0.b32.start [1/16] %v4119, 128
    %4275 = vxpose.xlu0.b32.cont [2/16] %v4122, 128
    %4276 = vxpose.xlu0.b32.cont [3/16] %v4125, 128
    %4277 = vxpose.xlu0.b32.cont [4/16] %v4128, 128
    %4278 = vxpose.xlu0.b32.cont [5/16] 0.0, 128
    %4279 = vxpose.xlu0.b32.cont [6/16] 0.0, 128
    %4280 = vxpose.xlu0.b32.cont [7/16] 0.0, 128
    %4281 = vxpose.xlu0.b32.cont [8/16] 0.0, 128
    %4282 = vxpose.xlu0.b32.cont [9/16] 0.0, 128
    %4283 = vxpose.xlu0.b32.cont [10/16] 0.0, 128
    %4284 = vxpose.xlu0.b32.cont [11/16] 0.0, 128
    %4285 = vxpose.xlu0.b32.cont [12/16] 0.0, 128
    %4286 = vxpose.xlu0.b32.cont [13/16] 0.0, 128
    %4287 = vxpose.xlu0.b32.cont [14/16] 0.0, 128
    %4288 = vxpose.xlu0.b32.cont [15/16] 0.0, 128
    %4289 = vxpose.xlu0.b32.end [16/16] 0.0, 128
    %v4290 = vpop.trf.xlu0
    %v4291 = vpop.trf.xlu0
    %v4292 = vpop.trf.xlu0
    %v4293 = vpop.trf.xlu0
    %v4294 = vpop.trf.xlu0
    %v4295 = vpop.trf.xlu0
    %v4296 = vpop.trf.xlu0
    %v4297 = vpop.trf.xlu0
    %v4298 = vpop.trf.xlu0
    %v4299 = vpop.trf.xlu0
    %v4300 = vpop.trf.xlu0
    %v4301 = vpop.trf.xlu0
    %v4302 = vpop.trf.xlu0
    %v4303 = vpop.trf.xlu0
    %v4304 = vpop.trf.xlu0
    %v4305 = vpop.trf.xlu0
    %4306 = vxpose.xlu0.b32.start [1/16] %v4131, 128
    %4307 = vxpose.xlu0.b32.cont [2/16] %v4134, 128
    %4308 = vxpose.xlu0.b32.cont [3/16] %v4137, 128
    %4309 = vxpose.xlu0.b32.cont [4/16] %v4140, 128
    %4310 = vxpose.xlu0.b32.cont [5/16] 0.0, 128
    %4311 = vxpose.xlu0.b32.cont [6/16] 0.0, 128
    %4312 = vxpose.xlu0.b32.cont [7/16] 0.0, 128
    %4313 = vxpose.xlu0.b32.cont [8/16] 0.0, 128
    %4314 = vxpose.xlu0.b32.cont [9/16] 0.0, 128
    %4315 = vxpose.xlu0.b32.cont [10/16] 0.0, 128
    %4316 = vxpose.xlu0.b32.cont [11/16] 0.0, 128
    %4317 = vxpose.xlu0.b32.cont [12/16] 0.0, 128
    %4318 = vxpose.xlu0.b32.cont [13/16] 0.0, 128
    %4319 = vxpose.xlu0.b32.cont [14/16] 0.0, 128
    %4320 = vxpose.xlu0.b32.cont [15/16] 0.0, 128
    %4321 = vxpose.xlu0.b32.end [16/16] 0.0, 128
    %v4322 = vpop.trf.xlu0
    %v4323 = vpop.trf.xlu0
    %v4324 = vpop.trf.xlu0
    %v4325 = vpop.trf.xlu0
    %v4326 = vpop.trf.xlu0
    %v4327 = vpop.trf.xlu0
    %v4328 = vpop.trf.xlu0
    %v4329 = vpop.trf.xlu0
    %v4330 = vpop.trf.xlu0
    %v4331 = vpop.trf.xlu0
    %v4332 = vpop.trf.xlu0
    %v4333 = vpop.trf.xlu0
    %v4334 = vpop.trf.xlu0
    %v4335 = vpop.trf.xlu0
    %v4336 = vpop.trf.xlu0
    %v4337 = vpop.trf.xlu0
    %4338 = vxpose.xlu0.b32.start [1/16] %v4143, 128
    %4339 = vxpose.xlu0.b32.cont [2/16] %v4146, 128
    %4340 = vxpose.xlu0.b32.cont [3/16] %v4149, 128
    %4341 = vxpose.xlu0.b32.cont [4/16] %v4152, 128
    %4342 = vxpose.xlu0.b32.cont [5/16] 0.0, 128
    %4343 = vxpose.xlu0.b32.cont [6/16] 0.0, 128
    %4344 = vxpose.xlu0.b32.cont [7/16] 0.0, 128
    %4345 = vxpose.xlu0.b32.cont [8/16] 0.0, 128
    %4346 = vxpose.xlu0.b32.cont [9/16] 0.0, 128
    %4347 = vxpose.xlu0.b32.cont [10/16] 0.0, 128
    %4348 = vxpose.xlu0.b32.cont [11/16] 0.0, 128
    %4349 = vxpose.xlu0.b32.cont [12/16] 0.0, 128
    %4350 = vxpose.xlu0.b32.cont [13/16] 0.0, 128
    %4351 = vxpose.xlu0.b32.cont [14/16] 0.0, 128
    %4352 = vxpose.xlu0.b32.cont [15/16] 0.0, 128
    %4353 = vxpose.xlu0.b32.end [16/16] 0.0, 128
    %v4354 = vpop.trf.xlu0
    %v4355 = vpop.trf.xlu0
    %v4356 = vpop.trf.xlu0
    %v4357 = vpop.trf.xlu0
    %v4358 = vpop.trf.xlu0
    %v4359 = vpop.trf.xlu0
    %v4360 = vpop.trf.xlu0
    %v4361 = vpop.trf.xlu0
    %v4362 = vpop.trf.xlu0
    %v4363 = vpop.trf.xlu0
    %v4364 = vpop.trf.xlu0
    %v4365 = vpop.trf.xlu0
    %v4366 = vpop.trf.xlu0
    %v4367 = vpop.trf.xlu0
    %v4368 = vpop.trf.xlu0
    %v4369 = vpop.trf.xlu0
    %4370 = vxpose.xlu0.b32.start [1/16] %v4155, 128
    %4371 = vxpose.xlu0.b32.cont [2/16] %v4158, 128
    %4372 = vxpose.xlu0.b32.cont [3/16] %v4161, 128
    %4373 = vxpose.xlu0.b32.cont [4/16] %v4164, 128
    %4374 = vxpose.xlu0.b32.cont [5/16] 0.0, 128
    %4375 = vxpose.xlu0.b32.cont [6/16] 0.0, 128
    %4376 = vxpose.xlu0.b32.cont [7/16] 0.0, 128
    %4377 = vxpose.xlu0.b32.cont [8/16] 0.0, 128
    %4378 = vxpose.xlu0.b32.cont [9/16] 0.0, 128
    %4379 = vxpose.xlu0.b32.cont [10/16] 0.0, 128
    %4380 = vxpose.xlu0.b32.cont [11/16] 0.0, 128
    %4381 = vxpose.xlu0.b32.cont [12/16] 0.0, 128
    %4382 = vxpose.xlu0.b32.cont [13/16] 0.0, 128
    %4383 = vxpose.xlu0.b32.cont [14/16] 0.0, 128
    %4384 = vxpose.xlu0.b32.cont [15/16] 0.0, 128
    %4385 = vxpose.xlu0.b32.end [16/16] 0.0, 128
    %v4386 = vpop.trf.xlu0
    %v4387 = vpop.trf.xlu0
    %v4388 = vpop.trf.xlu0
    %v4389 = vpop.trf.xlu0
    %v4390 = vpop.trf.xlu0
    %v4391 = vpop.trf.xlu0
    %v4392 = vpop.trf.xlu0
    %v4393 = vpop.trf.xlu0
    %v4394 = vpop.trf.xlu0
    %v4395 = vpop.trf.xlu0
    %v4396 = vpop.trf.xlu0
    %v4397 = vpop.trf.xlu0
    %v4398 = vpop.trf.xlu0
    %v4399 = vpop.trf.xlu0
    %v4400 = vpop.trf.xlu0
    %v4401 = vpop.trf.xlu0
    %4402 = vxpose.xlu0.b32.start [1/16] %v4167, 128
    %4403 = vxpose.xlu0.b32.cont [2/16] %v4170, 128
    %4404 = vxpose.xlu0.b32.cont [3/16] %v4173, 128
    %4405 = vxpose.xlu0.b32.cont [4/16] %v4176, 128
    %4406 = vxpose.xlu0.b32.cont [5/16] 0.0, 128
    %4407 = vxpose.xlu0.b32.cont [6/16] 0.0, 128
    %4408 = vxpose.xlu0.b32.cont [7/16] 0.0, 128
    %4409 = vxpose.xlu0.b32.cont [8/16] 0.0, 128
    %4410 = vxpose.xlu0.b32.cont [9/16] 0.0, 128
    %4411 = vxpose.xlu0.b32.cont [10/16] 0.0, 128
    %4412 = vxpose.xlu0.b32.cont [11/16] 0.0, 128
    %4413 = vxpose.xlu0.b32.cont [12/16] 0.0, 128
    %4414 = vxpose.xlu0.b32.cont [13/16] 0.0, 128
    %4415 = vxpose.xlu0.b32.cont [14/16] 0.0, 128
    %4416 = vxpose.xlu0.b32.cont [15/16] 0.0, 128
    %4417 = vxpose.xlu0.b32.end [16/16] 0.0, 128
    %v4418 = vpop.trf.xlu0
    %v4419 = vpop.trf.xlu0
    %v4420 = vpop.trf.xlu0
    %v4421 = vpop.trf.xlu0
    %v4422 = vpop.trf.xlu0
    %v4423 = vpop.trf.xlu0
    %v4424 = vpop.trf.xlu0
    %v4425 = vpop.trf.xlu0
    %v4426 = vpop.trf.xlu0
    %v4427 = vpop.trf.xlu0
    %v4428 = vpop.trf.xlu0
    %v4429 = vpop.trf.xlu0
    %v4430 = vpop.trf.xlu0
    %v4431 = vpop.trf.xlu0
    %v4432 = vpop.trf.xlu0
    %v4433 = vpop.trf.xlu0
    %v4434 = vadd.f32 %v2872, %v4194
    %v4435 = vadd.f32 %v2873, %v4195
    %v4436 = vadd.f32 %v2874, %v4226
    %v4437 = vadd.f32 %v2875, %v4227
    %v4438 = vadd.f32 %v2876, %v4258
    %v4439 = vadd.f32 %v2877, %v4259
    %v4440 = vadd.f32 %v2878, %v4290
    %v4441 = vadd.f32 %v2879, %v4291
    %v4442 = vadd.f32 %v2880, %v4322
    %v4443 = vadd.f32 %v2881, %v4323
    %v4444 = vadd.f32 %v2882, %v4354
    %v4445 = vadd.f32 %v2883, %v4355
    %v4446 = vadd.f32 %v2884, %v4386
    %v4447 = vadd.f32 %v2885, %v4387
    %v4448 = vadd.f32 %v2886, %v4418
    %v4449 = vadd.f32 %v2887, %v4419
    %s4450 = scalar_lea.vmem %s11, 1
    %v4451 = vld [vmem:[%s4450] sm:$0x1]
    %s4452 = scalar_lea.vmem %s12, 1
    %v4453 = vld [vmem:[%s4452] sm:$0x1]
    %v4454 = vsel %vm175, %v4434, 0.0
    %4455 = vadd.xlane.f32.xlu0 %v4454
    %v4456 = vpop.xlane.xlu0 %4455
    %v4457 = vsel %vm175, %v4435, 0.0
    %4458 = vadd.xlane.f32.xlu0 %v4457
    %v4459 = vpop.xlane.xlu0 %4458
    %v4460 = vsel %vm175, %v4436, 0.0
    %4461 = vadd.xlane.f32.xlu0 %v4460
    %v4462 = vpop.xlane.xlu0 %4461
    %v4463 = vsel %vm175, %v4437, 0.0
    %4464 = vadd.xlane.f32.xlu0 %v4463
    %v4465 = vpop.xlane.xlu0 %4464
    %v4466 = vsel %vm175, %v4438, 0.0
    %4467 = vadd.xlane.f32.xlu0 %v4466
    %v4468 = vpop.xlane.xlu0 %4467
    %v4469 = vsel %vm175, %v4439, 0.0
    %4470 = vadd.xlane.f32.xlu0 %v4469
    %v4471 = vpop.xlane.xlu0 %4470
    %v4472 = vsel %vm175, %v4440, 0.0
    %4473 = vadd.xlane.f32.xlu0 %v4472
    %v4474 = vpop.xlane.xlu0 %4473
    %v4475 = vsel %vm175, %v4441, 0.0
    %4476 = vadd.xlane.f32.xlu0 %v4475
    %v4477 = vpop.xlane.xlu0 %4476
    %v4478 = vsel %vm175, %v4442, 0.0
    %4479 = vadd.xlane.f32.xlu0 %v4478
    %v4480 = vpop.xlane.xlu0 %4479
    %v4481 = vsel %vm175, %v4443, 0.0
    %4482 = vadd.xlane.f32.xlu0 %v4481
    %v4483 = vpop.xlane.xlu0 %4482
    %v4484 = vsel %vm175, %v4444, 0.0
    %4485 = vadd.xlane.f32.xlu0 %v4484
    %v4486 = vpop.xlane.xlu0 %4485
    %v4487 = vsel %vm175, %v4445, 0.0
    %4488 = vadd.xlane.f32.xlu0 %v4487
    %v4489 = vpop.xlane.xlu0 %4488
    %v4490 = vsel %vm175, %v4446, 0.0
    %4491 = vadd.xlane.f32.xlu0 %v4490
    %v4492 = vpop.xlane.xlu0 %4491
    %v4493 = vsel %vm175, %v4447, 0.0
    %4494 = vadd.xlane.f32.xlu0 %v4493
    %v4495 = vpop.xlane.xlu0 %4494
    %v4496 = vsel %vm175, %v4448, 0.0
    %4497 = vadd.xlane.f32.xlu0 %v4496
    %v4498 = vpop.xlane.xlu0 %4497
    %v4499 = vsel %vm175, %v4449, 0.0
    %4500 = vadd.xlane.f32.xlu0 %v4499
    %v4501 = vpop.xlane.xlu0 %4500
    %v4502 = vmul.f32 %v4456, %v230
    %v4503 = vmul.f32 %v4459, %v230
    %v4504 = vmul.f32 %v4462, %v230
    %v4505 = vmul.f32 %v4465, %v230
    %v4506 = vmul.f32 %v4468, %v230
    %v4507 = vmul.f32 %v4471, %v230
    %v4508 = vmul.f32 %v4474, %v230
    %v4509 = vmul.f32 %v4477, %v230
    %v4510 = vmul.f32 %v4480, %v230
    %v4511 = vmul.f32 %v4483, %v230
    %v4512 = vmul.f32 %v4486, %v230
    %v4513 = vmul.f32 %v4489, %v230
    %v4514 = vmul.f32 %v4492, %v230
    %v4515 = vmul.f32 %v4495, %v230
    %v4516 = vmul.f32 %v4498, %v230
    %v4517 = vmul.f32 %v4501, %v230
    %v4518 = vsub.f32 %v4434, %v4502
    %v4519 = vsub.f32 %v4435, %v4503
    %v4520 = vsub.f32 %v4436, %v4504
    %v4521 = vsub.f32 %v4437, %v4505
    %v4522 = vsub.f32 %v4438, %v4506
    %v4523 = vsub.f32 %v4439, %v4507
    %v4524 = vsub.f32 %v4440, %v4508
    %v4525 = vsub.f32 %v4441, %v4509
    %v4526 = vsub.f32 %v4442, %v4510
    %v4527 = vsub.f32 %v4443, %v4511
    %v4528 = vsub.f32 %v4444, %v4512
    %v4529 = vsub.f32 %v4445, %v4513
    %v4530 = vsub.f32 %v4446, %v4514
    %v4531 = vsub.f32 %v4447, %v4515
    %v4532 = vsub.f32 %v4448, %v4516
    %v4533 = vsub.f32 %v4449, %v4517
    %v4534 = vmul.f32 %v4518, %v4518
    %v4535 = vmul.f32 %v4519, %v4519
    %v4536 = vmul.f32 %v4520, %v4520
    %v4537 = vmul.f32 %v4521, %v4521
    %v4538 = vmul.f32 %v4522, %v4522
    %v4539 = vmul.f32 %v4523, %v4523
    %v4540 = vmul.f32 %v4524, %v4524
    %v4541 = vmul.f32 %v4525, %v4525
    %v4542 = vmul.f32 %v4526, %v4526
    %v4543 = vmul.f32 %v4527, %v4527
    %v4544 = vmul.f32 %v4528, %v4528
    %v4545 = vmul.f32 %v4529, %v4529
    %v4546 = vmul.f32 %v4530, %v4530
    %v4547 = vmul.f32 %v4531, %v4531
    %v4548 = vmul.f32 %v4532, %v4532
    %v4549 = vmul.f32 %v4533, %v4533
    %v4550 = vsel %vm175, %v4534, 0.0
    %4551 = vadd.xlane.f32.xlu0 %v4550
    %v4552 = vpop.xlane.xlu0 %4551
    %v4553 = vsel %vm175, %v4535, 0.0
    %4554 = vadd.xlane.f32.xlu0 %v4553
    %v4555 = vpop.xlane.xlu0 %4554
    %v4556 = vsel %vm175, %v4536, 0.0
    %4557 = vadd.xlane.f32.xlu0 %v4556
    %v4558 = vpop.xlane.xlu0 %4557
    %v4559 = vsel %vm175, %v4537, 0.0
    %4560 = vadd.xlane.f32.xlu0 %v4559
    %v4561 = vpop.xlane.xlu0 %4560
    %v4562 = vsel %vm175, %v4538, 0.0
    %4563 = vadd.xlane.f32.xlu0 %v4562
    %v4564 = vpop.xlane.xlu0 %4563
    %v4565 = vsel %vm175, %v4539, 0.0
    %4566 = vadd.xlane.f32.xlu0 %v4565
    %v4567 = vpop.xlane.xlu0 %4566
    %v4568 = vsel %vm175, %v4540, 0.0
    %4569 = vadd.xlane.f32.xlu0 %v4568
    %v4570 = vpop.xlane.xlu0 %4569
    %v4571 = vsel %vm175, %v4541, 0.0
    %4572 = vadd.xlane.f32.xlu0 %v4571
    %v4573 = vpop.xlane.xlu0 %4572
    %v4574 = vsel %vm175, %v4542, 0.0
    %4575 = vadd.xlane.f32.xlu0 %v4574
    %v4576 = vpop.xlane.xlu0 %4575
    %v4577 = vsel %vm175, %v4543, 0.0
    %4578 = vadd.xlane.f32.xlu0 %v4577
    %v4579 = vpop.xlane.xlu0 %4578
    %v4580 = vsel %vm175, %v4544, 0.0
    %4581 = vadd.xlane.f32.xlu0 %v4580
    %v4582 = vpop.xlane.xlu0 %4581
    %v4583 = vsel %vm175, %v4545, 0.0
    %4584 = vadd.xlane.f32.xlu0 %v4583
    %v4585 = vpop.xlane.xlu0 %4584
    %v4586 = vsel %vm175, %v4546, 0.0
    %4587 = vadd.xlane.f32.xlu0 %v4586
    %v4588 = vpop.xlane.xlu0 %4587
    %v4589 = vsel %vm175, %v4547, 0.0
    %4590 = vadd.xlane.f32.xlu0 %v4589
    %v4591 = vpop.xlane.xlu0 %4590
    %v4592 = vsel %vm175, %v4548, 0.0
    %4593 = vadd.xlane.f32.xlu0 %v4592
    %v4594 = vpop.xlane.xlu0 %4593
    %v4595 = vsel %vm175, %v4549, 0.0
    %4596 = vadd.xlane.f32.xlu0 %v4595
    %v4597 = vpop.xlane.xlu0 %4596
    %v4598 = vmul.f32 %v4552, %v230
    %v4599 = vmul.f32 %v4555, %v230
    %v4600 = vmul.f32 %v4558, %v230
    %v4601 = vmul.f32 %v4561, %v230
    %v4602 = vmul.f32 %v4564, %v230
    %v4603 = vmul.f32 %v4567, %v230
    %v4604 = vmul.f32 %v4570, %v230
    %v4605 = vmul.f32 %v4573, %v230
    %v4606 = vmul.f32 %v4576, %v230
    %v4607 = vmul.f32 %v4579, %v230
    %v4608 = vmul.f32 %v4582, %v230
    %v4609 = vmul.f32 %v4585, %v230
    %v4610 = vmul.f32 %v4588, %v230
    %v4611 = vmul.f32 %v4591, %v230
    %v4612 = vmul.f32 %v4594, %v230
    %v4613 = vmul.f32 %v4597, %v230
    %v4614 = vadd.f32 %v4598, 1e-05
    %v4615 = vadd.f32 %v4599, 1e-05
    %v4616 = vadd.f32 %v4600, 1e-05
    %v4617 = vadd.f32 %v4601, 1e-05
    %v4618 = vadd.f32 %v4602, 1e-05
    %v4619 = vadd.f32 %v4603, 1e-05
    %v4620 = vadd.f32 %v4604, 1e-05
    %v4621 = vadd.f32 %v4605, 1e-05
    %v4622 = vadd.f32 %v4606, 1e-05
    %v4623 = vadd.f32 %v4607, 1e-05
    %v4624 = vadd.f32 %v4608, 1e-05
    %v4625 = vadd.f32 %v4609, 1e-05
    %v4626 = vadd.f32 %v4610, 1e-05
    %v4627 = vadd.f32 %v4611, 1e-05
    %v4628 = vadd.f32 %v4612, 1e-05
    %v4629 = vadd.f32 %v4613, 1e-05
    %v4630 = vrsqrt.pop %v4614
    %v4631 = vmul.f32 %v4630, %v4614
    %v4632 = vmul.f32 %v4631, %v4630
    %v4633 = vmul.f32 0.5, %v4632
    %v4634 = vsub.f32 1.5, %v4633
    %v4635 = vmul.f32 %v4630, %v4634
    %vm4636 = vweird.f32 %v4614
    %vm4637 = vweird.f32 %v4630
    %vm4638 = vmor %vm4636, %vm4637
    %v4639 = vsel %vm4638, %v4630, %v4635
    %v4640 = vrsqrt.pop %v4615
    %v4641 = vmul.f32 %v4640, %v4615
    %v4642 = vmul.f32 %v4641, %v4640
    %v4643 = vmul.f32 0.5, %v4642
    %v4644 = vsub.f32 1.5, %v4643
    %v4645 = vmul.f32 %v4640, %v4644
    %vm4646 = vweird.f32 %v4615
    %vm4647 = vweird.f32 %v4640
    %vm4648 = vmor %vm4646, %vm4647
    %v4649 = vsel %vm4648, %v4640, %v4645
    %v4650 = vrsqrt.pop %v4616
    %v4651 = vmul.f32 %v4650, %v4616
    %v4652 = vmul.f32 %v4651, %v4650
    %v4653 = vmul.f32 0.5, %v4652
    %v4654 = vsub.f32 1.5, %v4653
    %v4655 = vmul.f32 %v4650, %v4654
    %vm4656 = vweird.f32 %v4616
    %vm4657 = vweird.f32 %v4650
    %vm4658 = vmor %vm4656, %vm4657
    %v4659 = vsel %vm4658, %v4650, %v4655
    %v4660 = vrsqrt.pop %v4617
    %v4661 = vmul.f32 %v4660, %v4617
    %v4662 = vmul.f32 %v4661, %v4660
    %v4663 = vmul.f32 0.5, %v4662
    %v4664 = vsub.f32 1.5, %v4663
    %v4665 = vmul.f32 %v4660, %v4664
    %vm4666 = vweird.f32 %v4617
    %vm4667 = vweird.f32 %v4660
    %vm4668 = vmor %vm4666, %vm4667
    %v4669 = vsel %vm4668, %v4660, %v4665
    %v4670 = vrsqrt.pop %v4618
    %v4671 = vmul.f32 %v4670, %v4618
    %v4672 = vmul.f32 %v4671, %v4670
    %v4673 = vmul.f32 0.5, %v4672
    %v4674 = vsub.f32 1.5, %v4673
    %v4675 = vmul.f32 %v4670, %v4674
    %vm4676 = vweird.f32 %v4618
    %vm4677 = vweird.f32 %v4670
    %vm4678 = vmor %vm4676, %vm4677
    %v4679 = vsel %vm4678, %v4670, %v4675
    %v4680 = vrsqrt.pop %v4619
    %v4681 = vmul.f32 %v4680, %v4619
    %v4682 = vmul.f32 %v4681, %v4680
    %v4683 = vmul.f32 0.5, %v4682
    %v4684 = vsub.f32 1.5, %v4683
    %v4685 = vmul.f32 %v4680, %v4684
    %vm4686 = vweird.f32 %v4619
    %vm4687 = vweird.f32 %v4680
    %vm4688 = vmor %vm4686, %vm4687
    %v4689 = vsel %vm4688, %v4680, %v4685
    %v4690 = vrsqrt.pop %v4620
    %v4691 = vmul.f32 %v4690, %v4620
    %v4692 = vmul.f32 %v4691, %v4690
    %v4693 = vmul.f32 0.5, %v4692
    %v4694 = vsub.f32 1.5, %v4693
    %v4695 = vmul.f32 %v4690, %v4694
    %vm4696 = vweird.f32 %v4620
    %vm4697 = vweird.f32 %v4690
    %vm4698 = vmor %vm4696, %vm4697
    %v4699 = vsel %vm4698, %v4690, %v4695
    %v4700 = vrsqrt.pop %v4621
    %v4701 = vmul.f32 %v4700, %v4621
    %v4702 = vmul.f32 %v4701, %v4700
    %v4703 = vmul.f32 0.5, %v4702
    %v4704 = vsub.f32 1.5, %v4703
    %v4705 = vmul.f32 %v4700, %v4704
    %vm4706 = vweird.f32 %v4621
    %vm4707 = vweird.f32 %v4700
    %vm4708 = vmor %vm4706, %vm4707
    %v4709 = vsel %vm4708, %v4700, %v4705
    %v4710 = vrsqrt.pop %v4622
    %v4711 = vmul.f32 %v4710, %v4622
    %v4712 = vmul.f32 %v4711, %v4710
    %v4713 = vmul.f32 0.5, %v4712
    %v4714 = vsub.f32 1.5, %v4713
    %v4715 = vmul.f32 %v4710, %v4714
    %vm4716 = vweird.f32 %v4622
    %vm4717 = vweird.f32 %v4710
    %vm4718 = vmor %vm4716, %vm4717
    %v4719 = vsel %vm4718, %v4710, %v4715
    %v4720 = vrsqrt.pop %v4623
    %v4721 = vmul.f32 %v4720, %v4623
    %v4722 = vmul.f32 %v4721, %v4720
    %v4723 = vmul.f32 0.5, %v4722
    %v4724 = vsub.f32 1.5, %v4723
    %v4725 = vmul.f32 %v4720, %v4724
    %vm4726 = vweird.f32 %v4623
    %vm4727 = vweird.f32 %v4720
    %vm4728 = vmor %vm4726, %vm4727
    %v4729 = vsel %vm4728, %v4720, %v4725
    %v4730 = vrsqrt.pop %v4624
    %v4731 = vmul.f32 %v4730, %v4624
    %v4732 = vmul.f32 %v4731, %v4730
    %v4733 = vmul.f32 0.5, %v4732
    %v4734 = vsub.f32 1.5, %v4733
    %v4735 = vmul.f32 %v4730, %v4734
    %vm4736 = vweird.f32 %v4624
    %vm4737 = vweird.f32 %v4730
    %vm4738 = vmor %vm4736, %vm4737
    %v4739 = vsel %vm4738, %v4730, %v4735
    %v4740 = vrsqrt.pop %v4625
    %v4741 = vmul.f32 %v4740, %v4625
    %v4742 = vmul.f32 %v4741, %v4740
    %v4743 = vmul.f32 0.5, %v4742
    %v4744 = vsub.f32 1.5, %v4743
    %v4745 = vmul.f32 %v4740, %v4744
    %vm4746 = vweird.f32 %v4625
    %vm4747 = vweird.f32 %v4740
    %vm4748 = vmor %vm4746, %vm4747
    %v4749 = vsel %vm4748, %v4740, %v4745
    %v4750 = vrsqrt.pop %v4626
    %v4751 = vmul.f32 %v4750, %v4626
    %v4752 = vmul.f32 %v4751, %v4750
    %v4753 = vmul.f32 0.5, %v4752
    %v4754 = vsub.f32 1.5, %v4753
    %v4755 = vmul.f32 %v4750, %v4754
    %vm4756 = vweird.f32 %v4626
    %vm4757 = vweird.f32 %v4750
    %vm4758 = vmor %vm4756, %vm4757
    %v4759 = vsel %vm4758, %v4750, %v4755
    %v4760 = vrsqrt.pop %v4627
    %v4761 = vmul.f32 %v4760, %v4627
    %v4762 = vmul.f32 %v4761, %v4760
    %v4763 = vmul.f32 0.5, %v4762
    %v4764 = vsub.f32 1.5, %v4763
    %v4765 = vmul.f32 %v4760, %v4764
    %vm4766 = vweird.f32 %v4627
    %vm4767 = vweird.f32 %v4760
    %vm4768 = vmor %vm4766, %vm4767
    %v4769 = vsel %vm4768, %v4760, %v4765
    %v4770 = vrsqrt.pop %v4628
    %v4771 = vmul.f32 %v4770, %v4628
    %v4772 = vmul.f32 %v4771, %v4770
    %v4773 = vmul.f32 0.5, %v4772
    %v4774 = vsub.f32 1.5, %v4773
    %v4775 = vmul.f32 %v4770, %v4774
    %vm4776 = vweird.f32 %v4628
    %vm4777 = vweird.f32 %v4770
    %vm4778 = vmor %vm4776, %vm4777
    %v4779 = vsel %vm4778, %v4770, %v4775
    %v4780 = vrsqrt.pop %v4629
    %v4781 = vmul.f32 %v4780, %v4629
    %v4782 = vmul.f32 %v4781, %v4780
    %v4783 = vmul.f32 0.5, %v4782
    %v4784 = vsub.f32 1.5, %v4783
    %v4785 = vmul.f32 %v4780, %v4784
    %vm4786 = vweird.f32 %v4629
    %vm4787 = vweird.f32 %v4780
    %vm4788 = vmor %vm4786, %vm4787
    %v4789 = vsel %vm4788, %v4780, %v4785
    %v4790 = vmul.f32 %v4518, %v4639
    %v4791 = vmul.f32 %v4519, %v4649
    %v4792 = vmul.f32 %v4520, %v4659
    %v4793 = vmul.f32 %v4521, %v4669
    %v4794 = vmul.f32 %v4522, %v4679
    %v4795 = vmul.f32 %v4523, %v4689
    %v4796 = vmul.f32 %v4524, %v4699
    %v4797 = vmul.f32 %v4525, %v4709
    %v4798 = vmul.f32 %v4526, %v4719
    %v4799 = vmul.f32 %v4527, %v4729
    %v4800 = vmul.f32 %v4528, %v4739
    %v4801 = vmul.f32 %v4529, %v4749
    %v4802 = vmul.f32 %v4530, %v4759
    %v4803 = vmul.f32 %v4531, %v4769
    %v4804 = vmul.f32 %v4532, %v4779
    %v4805 = vmul.f32 %v4533, %v4789
    %v4807 = vperm.slane %v4451, 0
    %v4809 = vmul.f32 %v4790, %v4807
    %v4810 = vmul.f32 %v4791, %v4807
    %v4811 = vmul.f32 %v4792, %v4807
    %v4812 = vmul.f32 %v4793, %v4807
    %v4813 = vmul.f32 %v4794, %v4807
    %v4814 = vmul.f32 %v4795, %v4807
    %v4815 = vmul.f32 %v4796, %v4807
    %v4816 = vmul.f32 %v4797, %v4807
    %v4817 = vmul.f32 %v4798, %v4807
    %v4818 = vmul.f32 %v4799, %v4807
    %v4819 = vmul.f32 %v4800, %v4807
    %v4820 = vmul.f32 %v4801, %v4807
    %v4821 = vmul.f32 %v4802, %v4807
    %v4822 = vmul.f32 %v4803, %v4807
    %v4823 = vmul.f32 %v4804, %v4807
    %v4824 = vmul.f32 %v4805, %v4807
    %v4826 = vperm.slane %v4453, 0
    %v4828 = vadd.f32 %v4809, %v4826
    %v4829 = vadd.f32 %v4810, %v4826
    %v4830 = vadd.f32 %v4811, %v4826
    %v4831 = vadd.f32 %v4812, %v4826
    %v4832 = vadd.f32 %v4813, %v4826
    %v4833 = vadd.f32 %v4814, %v4826
    %v4834 = vadd.f32 %v4815, %v4826
    %v4835 = vadd.f32 %v4816, %v4826
    %v4836 = vadd.f32 %v4817, %v4826
    %v4837 = vadd.f32 %v4818, %v4826
    %v4838 = vadd.f32 %v4819, %v4826
    %v4839 = vadd.f32 %v4820, %v4826
    %v4840 = vadd.f32 %v4821, %v4826
    %v4841 = vadd.f32 %v4822, %v4826
    %v4842 = vadd.f32 %v4823, %v4826
    %v4843 = vadd.f32 %v4824, %v4826
    %s4844 = scalar_lea.vmem %s13, 32
    %v4845 = vld [vmem:[%s4844] sm:$0xff]
    %v4846 = vld [vmem:[%s4844 + $0x8] sm:$0xff]
    %v4847 = vld [vmem:[%s4844 + $0x10] sm:$0xff]
    %v4848 = vld [vmem:[%s4844 + $0x18] sm:$0xff]
    %s4849 = scalar_lea.vmem %s14, 1
    %v4850 = vld [vmem:[%s4849] sm:$0x1]
    %v4852 = vperm.slane %v4850, 0
    %v4855 = vsel %vm175, %v4828, 0
    %v4858 = vsel %vm175, %v4829, 0
    %v4861 = vsel %vm175, %v4830, 0
    %v4864 = vsel %vm175, %v4831, 0
    %v4867 = vsel %vm175, %v4832, 0
    %v4870 = vsel %vm175, %v4833, 0
    %v4873 = vsel %vm175, %v4834, 0
    %v4876 = vsel %vm175, %v4835, 0
    %v4879 = vsel %vm175, %v4836, 0
    %v4882 = vsel %vm175, %v4837, 0
    %v4885 = vsel %vm175, %v4838, 0
    %v4888 = vsel %vm175, %v4839, 0
    %v4891 = vsel %vm175, %v4840, 0
    %v4894 = vsel %vm175, %v4841, 0
    %v4897 = vsel %vm175, %v4842, 0
    %v4900 = vsel %vm175, %v4843, 0
    %4902 = vmatpush.msra.mxu0 0.0
    %4903 = vmatpush.msra.mxu0 0.0
    %4904 = vmatpush.msra.mxu0 0.0
    %4905 = vmatpush.msra.mxu0 0.0
    %4906 = vmatpush.msra.mxu0 0.0
    %4907 = vmatpush.msra.mxu0 0.0
    %4908 = vmatpush.msra.mxu0 0.0
    %4909 = vmatpush.msra.mxu0 0.0
    %4910 = vmatpush.msra.mxu0 0.0
    %4911 = vmatpush.msra.mxu0 0.0
    %4912 = vmatpush.msra.mxu0 0.0
    %4913 = vmatpush.msra.mxu0 0.0
    %4914 = vmatpush.msra.mxu0 %v4848
    %4915 = vmatpush.msra.mxu0 %v4847
    %4916 = vmatpush.msra.mxu0 %v4846
    %4917 = vmatpush.msra.mxu0 %v4845
    %4918 = vmatmul.f32.gmra.mxu0 %v4855
    %v4919 = vpop.f32.mrf.mxu0
    %v4920 = vadd.f32 %v4852, %v4919
    %4921 = vmatmul.f32.gmra.mxu0 %v4858
    %v4922 = vpop.f32.mrf.mxu0
    %v4923 = vadd.f32 %v4852, %v4922
    %4924 = vmatmul.f32.gmra.mxu0 %v4861
    %v4925 = vpop.f32.mrf.mxu0
    %v4926 = vadd.f32 %v4852, %v4925
    %4927 = vmatmul.f32.gmra.mxu0 %v4864
    %v4928 = vpop.f32.mrf.mxu0
    %v4929 = vadd.f32 %v4852, %v4928
    %4930 = vmatmul.f32.gmra.mxu0 %v4867
    %v4931 = vpop.f32.mrf.mxu0
    %v4932 = vadd.f32 %v4852, %v4931
    %4933 = vmatmul.f32.gmra.mxu0 %v4870
    %v4934 = vpop.f32.mrf.mxu0
    %v4935 = vadd.f32 %v4852, %v4934
    %4936 = vmatmul.f32.gmra.mxu0 %v4873
    %v4937 = vpop.f32.mrf.mxu0
    %v4938 = vadd.f32 %v4852, %v4937
    %4939 = vmatmul.f32.gmra.mxu0 %v4876
    %v4940 = vpop.f32.mrf.mxu0
    %v4941 = vadd.f32 %v4852, %v4940
    %4942 = vmatmul.f32.gmra.mxu0 %v4879
    %v4943 = vpop.f32.mrf.mxu0
    %v4944 = vadd.f32 %v4852, %v4943
    %4945 = vmatmul.f32.gmra.mxu0 %v4882
    %v4946 = vpop.f32.mrf.mxu0
    %v4947 = vadd.f32 %v4852, %v4946
    %4948 = vmatmul.f32.gmra.mxu0 %v4885
    %v4949 = vpop.f32.mrf.mxu0
    %v4950 = vadd.f32 %v4852, %v4949
    %4951 = vmatmul.f32.gmra.mxu0 %v4888
    %v4952 = vpop.f32.mrf.mxu0
    %v4953 = vadd.f32 %v4852, %v4952
    %4954 = vmatmul.f32.gmra.mxu0 %v4891
    %v4955 = vpop.f32.mrf.mxu0
    %v4956 = vadd.f32 %v4852, %v4955
    %4957 = vmatmul.f32.gmra.mxu0 %v4894
    %v4958 = vpop.f32.mrf.mxu0
    %v4959 = vadd.f32 %v4852, %v4958
    %4960 = vmatmul.f32.gmra.mxu0 %v4897
    %v4961 = vpop.f32.mrf.mxu0
    %v4962 = vadd.f32 %v4852, %v4961
    %4963 = vmatmul.f32.gmra.mxu0 %v4900
    %v4964 = vpop.f32.mrf.mxu0
    %v4965 = vadd.f32 %v4852, %v4964
    %4966 = vdwg.mxu0
    %v4967 = vmul.f32 %v4920, 0.5
    %v4968 = vmul.f32 %v4923, 0.5
    %v4969 = vmul.f32 %v4926, 0.5
    %v4970 = vmul.f32 %v4929, 0.5
    %v4971 = vmul.f32 %v4932, 0.5
    %v4972 = vmul.f32 %v4935, 0.5
    %v4973 = vmul.f32 %v4938, 0.5
    %v4974 = vmul.f32 %v4941, 0.5
    %v4975 = vmul.f32 %v4944, 0.5
    %v4976 = vmul.f32 %v4947, 0.5
    %v4977 = vmul.f32 %v4950, 0.5
    %v4978 = vmul.f32 %v4953, 0.5
    %v4979 = vmul.f32 %v4956, 0.5
    %v4980 = vmul.f32 %v4959, 0.5
    %v4981 = vmul.f32 %v4962, 0.5
    %v4982 = vmul.f32 %v4965, 0.5
    %v4983 = vmul.f32 %v4920, 0.044715
    %v4984 = vmul.f32 %v4923, 0.044715
    %v4985 = vmul.f32 %v4926, 0.044715
    %v4986 = vmul.f32 %v4929, 0.044715
    %v4987 = vmul.f32 %v4932, 0.044715
    %v4988 = vmul.f32 %v4935, 0.044715
    %v4989 = vmul.f32 %v4938, 0.044715
    %v4990 = vmul.f32 %v4941, 0.044715
    %v4991 = vmul.f32 %v4944, 0.044715
    %v4992 = vmul.f32 %v4947, 0.044715
    %v4993 = vmul.f32 %v4950, 0.044715
    %v4994 = vmul.f32 %v4953, 0.044715
    %v4995 = vmul.f32 %v4956, 0.044715
    %v4996 = vmul.f32 %v4959, 0.044715
    %v4997 = vmul.f32 %v4962, 0.044715
    %v4998 = vmul.f32 %v4965, 0.044715
    %v4999 = vmul.f32 %v4983, %v4920
    %v5000 = vmul.f32 %v4984, %v4923
    %v5001 = vmul.f32 %v4985, %v4926
    %v5002 = vmul.f32 %v4986, %v4929
    %v5003 = vmul.f32 %v4987, %v4932
    %v5004 = vmul.f32 %v4988, %v4935
    %v5005 = vmul.f32 %v4989, %v4938
    %v5006 = vmul.f32 %v4990, %v4941
    %v5007 = vmul.f32 %v4991, %v4944
    %v5008 = vmul.f32 %v4992, %v4947
    %v5009 = vmul.f32 %v4993, %v4950
    %v5010 = vmul.f32 %v4994, %v4953
    %v5011 = vmul.f32 %v4995, %v4956
    %v5012 = vmul.f32 %v4996, %v4959
    %v5013 = vmul.f32 %v4997, %v4962
    %v5014 = vmul.f32 %v4998, %v4965
    %v5015 = vmul.f32 %v4999, %v4920
    %v5016 = vmul.f32 %v5000, %v4923
    %v5017 = vmul.f32 %v5001, %v4926
    %v5018 = vmul.f32 %v5002, %v4929
    %v5019 = vmul.f32 %v5003, %v4932
    %v5020 = vmul.f32 %v5004, %v4935
    %v5021 = vmul.f32 %v5005, %v4938
    %v5022 = vmul.f32 %v5006, %v4941
    %v5023 = vmul.f32 %v5007, %v4944
    %v5024 = vmul.f32 %v5008, %v4947
    %v5025 = vmul.f32 %v5009, %v4950
    %v5026 = vmul.f32 %v5010, %v4953
    %v5027 = vmul.f32 %v5011, %v4956
    %v5028 = vmul.f32 %v5012, %v4959
    %v5029 = vmul.f32 %v5013, %v4962
    %v5030 = vmul.f32 %v5014, %v4965
    %v5031 = vadd.f32 %v4920, %v5015
    %v5032 = vadd.f32 %v4923, %v5016
    %v5033 = vadd.f32 %v4926, %v5017
    %v5034 = vadd.f32 %v4929, %v5018
    %v5035 = vadd.f32 %v4932, %v5019
    %v5036 = vadd.f32 %v4935, %v5020
    %v5037 = vadd.f32 %v4938, %v5021
    %v5038 = vadd.f32 %v4941, %v5022
    %v5039 = vadd.f32 %v4944, %v5023
    %v5040 = vadd.f32 %v4947, %v5024
    %v5041 = vadd.f32 %v4950, %v5025
    %v5042 = vadd.f32 %v4953, %v5026
    %v5043 = vadd.f32 %v4956, %v5027
    %v5044 = vadd.f32 %v4959, %v5028
    %v5045 = vadd.f32 %v4962, %v5029
    %v5046 = vadd.f32 %v4965, %v5030
    %v5047 = vmul.f32 %v5031, 0.7978846
    %v5048 = vmul.f32 %v5032, 0.7978846
    %v5049 = vmul.f32 %v5033, 0.7978846
    %v5050 = vmul.f32 %v5034, 0.7978846
    %v5051 = vmul.f32 %v5035, 0.7978846
    %v5052 = vmul.f32 %v5036, 0.7978846
    %v5053 = vmul.f32 %v5037, 0.7978846
    %v5054 = vmul.f32 %v5038, 0.7978846
    %v5055 = vmul.f32 %v5039, 0.7978846
    %v5056 = vmul.f32 %v5040, 0.7978846
    %v5057 = vmul.f32 %v5041, 0.7978846
    %v5058 = vmul.f32 %v5042, 0.7978846
    %v5059 = vmul.f32 %v5043, 0.7978846
    %v5060 = vmul.f32 %v5044, 0.7978846
    %v5061 = vmul.f32 %v5045, 0.7978846
    %v5062 = vmul.f32 %v5046, 0.7978846
    %v5063 = vtanh.pop %v5047
    %v5064 = vtanh.pop %v5048
    %v5065 = vtanh.pop %v5049
    %v5066 = vtanh.pop %v5050
    %v5067 = vtanh.pop %v5051
    %v5068 = vtanh.pop %v5052
    %v5069 = vtanh.pop %v5053
    %v5070 = vtanh.pop %v5054
    %v5071 = vtanh.pop %v5055
    %v5072 = vtanh.pop %v5056
    %v5073 = vtanh.pop %v5057
    %v5074 = vtanh.pop %v5058
    %v5075 = vtanh.pop %v5059
    %v5076 = vtanh.pop %v5060
    %v5077 = vtanh.pop %v5061
    %v5078 = vtanh.pop %v5062
    %v5079 = vadd.f32 %v5063, 1.0
    %v5080 = vadd.f32 %v5064, 1.0
    %v5081 = vadd.f32 %v5065, 1.0
    %v5082 = vadd.f32 %v5066, 1.0
    %v5083 = vadd.f32 %v5067, 1.0
    %v5084 = vadd.f32 %v5068, 1.0
    %v5085 = vadd.f32 %v5069, 1.0
    %v5086 = vadd.f32 %v5070, 1.0
    %v5087 = vadd.f32 %v5071, 1.0
    %v5088 = vadd.f32 %v5072, 1.0
    %v5089 = vadd.f32 %v5073, 1.0
    %v5090 = vadd.f32 %v5074, 1.0
    %v5091 = vadd.f32 %v5075, 1.0
    %v5092 = vadd.f32 %v5076, 1.0
    %v5093 = vadd.f32 %v5077, 1.0
    %v5094 = vadd.f32 %v5078, 1.0
    %v5095 = vmul.f32 %v4967, %v5079
    %v5096 = vmul.f32 %v4968, %v5080
    %v5097 = vmul.f32 %v4969, %v5081
    %v5098 = vmul.f32 %v4970, %v5082
    %v5099 = vmul.f32 %v4971, %v5083
    %v5100 = vmul.f32 %v4972, %v5084
    %v5101 = vmul.f32 %v4973, %v5085
    %v5102 = vmul.f32 %v4974, %v5086
    %v5103 = vmul.f32 %v4975, %v5087
    %v5104 = vmul.f32 %v4976, %v5088
    %v5105 = vmul.f32 %v4977, %v5089
    %v5106 = vmul.f32 %v4978, %v5090
    %v5107 = vmul.f32 %v4979, %v5091
    %v5108 = vmul.f32 %v4980, %v5092
    %v5109 = vmul.f32 %v4981, %v5093
    %v5110 = vmul.f32 %v4982, %v5094
    %s5111 = scalar_lea.vmem %s15, 128
    %v5112 = vld [vmem:[%s5111] sm:$0xff]
    %v5113 = vld [vmem:[%s5111 + $0x8] sm:$0xff]
    %v5114 = vld [vmem:[%s5111 + $0x10] sm:$0xff]
    %v5115 = vld [vmem:[%s5111 + $0x18] sm:$0xff]
    %v5116 = vld [vmem:[%s5111 + $0x20] sm:$0xff]
    %v5117 = vld [vmem:[%s5111 + $0x28] sm:$0xff]
    %v5118 = vld [vmem:[%s5111 + $0x30] sm:$0xff]
    %v5119 = vld [vmem:[%s5111 + $0x38] sm:$0xff]
    %v5120 = vld [vmem:[%s5111 + $0x40] sm:$0xff]
    %v5121 = vld [vmem:[%s5111 + $0x48] sm:$0xff]
    %v5122 = vld [vmem:[%s5111 + $0x50] sm:$0xff]
    %v5123 = vld [vmem:[%s5111 + $0x58] sm:$0xff]
    %v5124 = vld [vmem:[%s5111 + $0x60] sm:$0xff]
    %v5125 = vld [vmem:[%s5111 + $0x68] sm:$0xff]
    %v5126 = vld [vmem:[%s5111 + $0x70] sm:$0xff]
    %v5127 = vld [vmem:[%s5111 + $0x78] sm:$0xff]
    %s5128 = scalar_lea.vmem %s16, 1
    %v5129 = vld [vmem:[%s5128] sm:$0x1]
    %v5131 = vperm.slane %v5129, 0
    %5133 = vmatpush.msra.mxu0 %v5127
    %5134 = vmatpush.msra.mxu0 %v5126
    %5135 = vmatpush.msra.mxu0 %v5125
    %5136 = vmatpush.msra.mxu0 %v5124
    %5137 = vmatpush.msra.mxu0 %v5123
    %5138 = vmatpush.msra.mxu0 %v5122
    %5139 = vmatpush.msra.mxu0 %v5121
    %5140 = vmatpush.msra.mxu0 %v5120
    %5141 = vmatpush.msra.mxu0 %v5119
    %5142 = vmatpush.msra.mxu0 %v5118
    %5143 = vmatpush.msra.mxu0 %v5117
    %5144 = vmatpush.msra.mxu0 %v5116
    %5145 = vmatpush.msra.mxu0 %v5115
    %5146 = vmatpush.msra.mxu0 %v5114
    %5147 = vmatpush.msra.mxu0 %v5113
    %5148 = vmatpush.msra.mxu0 %v5112
    %5149 = vmatmul.f32.gmra.mxu0 %v5095
    %v5150 = vpop.f32.mrf.mxu0
    %v5151 = vadd.f32 %v5131, %v5150
    %5152 = vmatmul.f32.gmra.mxu0 %v5096
    %v5153 = vpop.f32.mrf.mxu0
    %v5154 = vadd.f32 %v5131, %v5153
    %5155 = vmatmul.f32.gmra.mxu0 %v5097
    %v5156 = vpop.f32.mrf.mxu0
    %v5157 = vadd.f32 %v5131, %v5156
    %5158 = vmatmul.f32.gmra.mxu0 %v5098
    %v5159 = vpop.f32.mrf.mxu0
    %v5160 = vadd.f32 %v5131, %v5159
    %5161 = vmatmul.f32.gmra.mxu0 %v5099
    %v5162 = vpop.f32.mrf.mxu0
    %v5163 = vadd.f32 %v5131, %v5162
    %5164 = vmatmul.f32.gmra.mxu0 %v5100
    %v5165 = vpop.f32.mrf.mxu0
    %v5166 = vadd.f32 %v5131, %v5165
    %5167 = vmatmul.f32.gmra.mxu0 %v5101
    %v5168 = vpop.f32.mrf.mxu0
    %v5169 = vadd.f32 %v5131, %v5168
    %5170 = vmatmul.f32.gmra.mxu0 %v5102
    %v5171 = vpop.f32.mrf.mxu0
    %v5172 = vadd.f32 %v5131, %v5171
    %5173 = vmatmul.f32.gmra.mxu0 %v5103
    %v5174 = vpop.f32.mrf.mxu0
    %v5175 = vadd.f32 %v5131, %v5174
    %5176 = vmatmul.f32.gmra.mxu0 %v5104
    %v5177 = vpop.f32.mrf.mxu0
    %v5178 = vadd.f32 %v5131, %v5177
    %5179 = vmatmul.f32.gmra.mxu0 %v5105
    %v5180 = vpop.f32.mrf.mxu0
    %v5181 = vadd.f32 %v5131, %v5180
    %5182 = vmatmul.f32.gmra.mxu0 %v5106
    %v5183 = vpop.f32.mrf.mxu0
    %v5184 = vadd.f32 %v5131, %v5183
    %5185 = vmatmul.f32.gmra.mxu0 %v5107
    %v5186 = vpop.f32.mrf.mxu0
    %v5187 = vadd.f32 %v5131, %v5186
    %5188 = vmatmul.f32.gmra.mxu0 %v5108
    %v5189 = vpop.f32.mrf.mxu0
    %v5190 = vadd.f32 %v5131, %v5189
    %5191 = vmatmul.f32.gmra.mxu0 %v5109
    %v5192 = vpop.f32.mrf.mxu0
    %v5193 = vadd.f32 %v5131, %v5192
    %5194 = vmatmul.f32.gmra.mxu0 %v5110
    %v5195 = vpop.f32.mrf.mxu0
    %v5196 = vadd.f32 %v5131, %v5195
    %5197 = vdwg.mxu0
    %v5198 = vadd.f32 %v4434, %v5151
    %v5199 = vadd.f32 %v4435, %v5154
    %v5200 = vadd.f32 %v4436, %v5157
    %v5201 = vadd.f32 %v4437, %v5160
    %v5202 = vadd.f32 %v4438, %v5163
    %v5203 = vadd.f32 %v4439, %v5166
    %v5204 = vadd.f32 %v4440, %v5169
    %v5205 = vadd.f32 %v4441, %v5172
    %v5206 = vadd.f32 %v4442, %v5175
    %v5207 = vadd.f32 %v4443, %v5178
    %v5208 = vadd.f32 %v4444, %v5181
    %v5209 = vadd.f32 %v4445, %v5184
    %v5210 = vadd.f32 %v4446, %v5187
    %v5211 = vadd.f32 %v4447, %v5190
    %v5212 = vadd.f32 %v4448, %v5193
    %v5213 = vadd.f32 %v4449, %v5196
    %v5214 = vld [vmem:[%s17] sm:$0x1]
    %v5215 = vld [vmem:[%s18] sm:$0x1]
    %v5216 = vsel %vm175, %v5198, 0.0
    %5217 = vadd.xlane.f32.xlu0 %v5216
    %v5218 = vpop.xlane.xlu0 %5217
    %v5219 = vsel %vm175, %v5199, 0.0
    %5220 = vadd.xlane.f32.xlu0 %v5219
    %v5221 = vpop.xlane.xlu0 %5220
    %v5222 = vsel %vm175, %v5200, 0.0
    %5223 = vadd.xlane.f32.xlu0 %v5222
    %v5224 = vpop.xlane.xlu0 %5223
    %v5225 = vsel %vm175, %v5201, 0.0
    %5226 = vadd.xlane.f32.xlu0 %v5225
    %v5227 = vpop.xlane.xlu0 %5226
    %v5228 = vsel %vm175, %v5202, 0.0
    %5229 = vadd.xlane.f32.xlu0 %v5228
    %v5230 = vpop.xlane.xlu0 %5229
    %v5231 = vsel %vm175, %v5203, 0.0
    %5232 = vadd.xlane.f32.xlu0 %v5231
    %v5233 = vpop.xlane.xlu0 %5232
    %v5234 = vsel %vm175, %v5204, 0.0
    %5235 = vadd.xlane.f32.xlu0 %v5234
    %v5236 = vpop.xlane.xlu0 %5235
    %v5237 = vsel %vm175, %v5205, 0.0
    %5238 = vadd.xlane.f32.xlu0 %v5237
    %v5239 = vpop.xlane.xlu0 %5238
    %v5240 = vsel %vm175, %v5206, 0.0
    %5241 = vadd.xlane.f32.xlu0 %v5240
    %v5242 = vpop.xlane.xlu0 %5241
    %v5243 = vsel %vm175, %v5207, 0.0
    %5244 = vadd.xlane.f32.xlu0 %v5243
    %v5245 = vpop.xlane.xlu0 %5244
    %v5246 = vsel %vm175, %v5208, 0.0
    %5247 = vadd.xlane.f32.xlu0 %v5246
    %v5248 = vpop.xlane.xlu0 %5247
    %v5249 = vsel %vm175, %v5209, 0.0
    %5250 = vadd.xlane.f32.xlu0 %v5249
    %v5251 = vpop.xlane.xlu0 %5250
    %v5252 = vsel %vm175, %v5210, 0.0
    %5253 = vadd.xlane.f32.xlu0 %v5252
    %v5254 = vpop.xlane.xlu0 %5253
    %v5255 = vsel %vm175, %v5211, 0.0
    %5256 = vadd.xlane.f32.xlu0 %v5255
    %v5257 = vpop.xlane.xlu0 %5256
    %v5258 = vsel %vm175, %v5212, 0.0
    %5259 = vadd.xlane.f32.xlu0 %v5258
    %v5260 = vpop.xlane.xlu0 %5259
    %v5261 = vsel %vm175, %v5213, 0.0
    %5262 = vadd.xlane.f32.xlu0 %v5261
    %v5263 = vpop.xlane.xlu0 %5262
    %v5264 = vmul.f32 %v5218, %v230
    %v5265 = vmul.f32 %v5221, %v230
    %v5266 = vmul.f32 %v5224, %v230
    %v5267 = vmul.f32 %v5227, %v230
    %v5268 = vmul.f32 %v5230, %v230
    %v5269 = vmul.f32 %v5233, %v230
    %v5270 = vmul.f32 %v5236, %v230
    %v5271 = vmul.f32 %v5239, %v230
    %v5272 = vmul.f32 %v5242, %v230
    %v5273 = vmul.f32 %v5245, %v230
    %v5274 = vmul.f32 %v5248, %v230
    %v5275 = vmul.f32 %v5251, %v230
    %v5276 = vmul.f32 %v5254, %v230
    %v5277 = vmul.f32 %v5257, %v230
    %v5278 = vmul.f32 %v5260, %v230
    %v5279 = vmul.f32 %v5263, %v230
    %v5280 = vsub.f32 %v5198, %v5264
    %v5281 = vsub.f32 %v5199, %v5265
    %v5282 = vsub.f32 %v5200, %v5266
    %v5283 = vsub.f32 %v5201, %v5267
    %v5284 = vsub.f32 %v5202, %v5268
    %v5285 = vsub.f32 %v5203, %v5269
    %v5286 = vsub.f32 %v5204, %v5270
    %v5287 = vsub.f32 %v5205, %v5271
    %v5288 = vsub.f32 %v5206, %v5272
    %v5289 = vsub.f32 %v5207, %v5273
    %v5290 = vsub.f32 %v5208, %v5274
    %v5291 = vsub.f32 %v5209, %v5275
    %v5292 = vsub.f32 %v5210, %v5276
    %v5293 = vsub.f32 %v5211, %v5277
    %v5294 = vsub.f32 %v5212, %v5278
    %v5295 = vsub.f32 %v5213, %v5279
    %v5296 = vmul.f32 %v5280, %v5280
    %v5297 = vmul.f32 %v5281, %v5281
    %v5298 = vmul.f32 %v5282, %v5282
    %v5299 = vmul.f32 %v5283, %v5283
    %v5300 = vmul.f32 %v5284, %v5284
    %v5301 = vmul.f32 %v5285, %v5285
    %v5302 = vmul.f32 %v5286, %v5286
    %v5303 = vmul.f32 %v5287, %v5287
    %v5304 = vmul.f32 %v5288, %v5288
    %v5305 = vmul.f32 %v5289, %v5289
    %v5306 = vmul.f32 %v5290, %v5290
    %v5307 = vmul.f32 %v5291, %v5291
    %v5308 = vmul.f32 %v5292, %v5292
    %v5309 = vmul.f32 %v5293, %v5293
    %v5310 = vmul.f32 %v5294, %v5294
    %v5311 = vmul.f32 %v5295, %v5295
    %v5312 = vsel %vm175, %v5296, 0.0
    %5313 = vadd.xlane.f32.xlu0 %v5312
    %v5314 = vpop.xlane.xlu0 %5313
    %v5315 = vsel %vm175, %v5297, 0.0
    %5316 = vadd.xlane.f32.xlu0 %v5315
    %v5317 = vpop.xlane.xlu0 %5316
    %v5318 = vsel %vm175, %v5298, 0.0
    %5319 = vadd.xlane.f32.xlu0 %v5318
    %v5320 = vpop.xlane.xlu0 %5319
    %v5321 = vsel %vm175, %v5299, 0.0
    %5322 = vadd.xlane.f32.xlu0 %v5321
    %v5323 = vpop.xlane.xlu0 %5322
    %v5324 = vsel %vm175, %v5300, 0.0
    %5325 = vadd.xlane.f32.xlu0 %v5324
    %v5326 = vpop.xlane.xlu0 %5325
    %v5327 = vsel %vm175, %v5301, 0.0
    %5328 = vadd.xlane.f32.xlu0 %v5327
    %v5329 = vpop.xlane.xlu0 %5328
    %v5330 = vsel %vm175, %v5302, 0.0
    %5331 = vadd.xlane.f32.xlu0 %v5330
    %v5332 = vpop.xlane.xlu0 %5331
    %v5333 = vsel %vm175, %v5303, 0.0
    %5334 = vadd.xlane.f32.xlu0 %v5333
    %v5335 = vpop.xlane.xlu0 %5334
    %v5336 = vsel %vm175, %v5304, 0.0
    %5337 = vadd.xlane.f32.xlu0 %v5336
    %v5338 = vpop.xlane.xlu0 %5337
    %v5339 = vsel %vm175, %v5305, 0.0
    %5340 = vadd.xlane.f32.xlu0 %v5339
    %v5341 = vpop.xlane.xlu0 %5340
    %v5342 = vsel %vm175, %v5306, 0.0
    %5343 = vadd.xlane.f32.xlu0 %v5342
    %v5344 = vpop.xlane.xlu0 %5343
    %v5345 = vsel %vm175, %v5307, 0.0
    %5346 = vadd.xlane.f32.xlu0 %v5345
    %v5347 = vpop.xlane.xlu0 %5346
    %v5348 = vsel %vm175, %v5308, 0.0
    %5349 = vadd.xlane.f32.xlu0 %v5348
    %v5350 = vpop.xlane.xlu0 %5349
    %v5351 = vsel %vm175, %v5309, 0.0
    %5352 = vadd.xlane.f32.xlu0 %v5351
    %v5353 = vpop.xlane.xlu0 %5352
    %v5354 = vsel %vm175, %v5310, 0.0
    %5355 = vadd.xlane.f32.xlu0 %v5354
    %v5356 = vpop.xlane.xlu0 %5355
    %v5357 = vsel %vm175, %v5311, 0.0
    %5358 = vadd.xlane.f32.xlu0 %v5357
    %v5359 = vpop.xlane.xlu0 %5358
    %v5360 = vmul.f32 %v5314, %v230
    %v5361 = vmul.f32 %v5317, %v230
    %v5362 = vmul.f32 %v5320, %v230
    %v5363 = vmul.f32 %v5323, %v230
    %v5364 = vmul.f32 %v5326, %v230
    %v5365 = vmul.f32 %v5329, %v230
    %v5366 = vmul.f32 %v5332, %v230
    %v5367 = vmul.f32 %v5335, %v230
    %v5368 = vmul.f32 %v5338, %v230
    %v5369 = vmul.f32 %v5341, %v230
    %v5370 = vmul.f32 %v5344, %v230
    %v5371 = vmul.f32 %v5347, %v230
    %v5372 = vmul.f32 %v5350, %v230
    %v5373 = vmul.f32 %v5353, %v230
    %v5374 = vmul.f32 %v5356, %v230
    %v5375 = vmul.f32 %v5359, %v230
    %v5376 = vadd.f32 %v5360, 1e-05
    %v5377 = vadd.f32 %v5361, 1e-05
    %v5378 = vadd.f32 %v5362, 1e-05
    %v5379 = vadd.f32 %v5363, 1e-05
    %v5380 = vadd.f32 %v5364, 1e-05
    %v5381 = vadd.f32 %v5365, 1e-05
    %v5382 = vadd.f32 %v5366, 1e-05
    %v5383 = vadd.f32 %v5367, 1e-05
    %v5384 = vadd.f32 %v5368, 1e-05
    %v5385 = vadd.f32 %v5369, 1e-05
    %v5386 = vadd.f32 %v5370, 1e-05
    %v5387 = vadd.f32 %v5371, 1e-05
    %v5388 = vadd.f32 %v5372, 1e-05
    %v5389 = vadd.f32 %v5373, 1e-05
    %v5390 = vadd.f32 %v5374, 1e-05
    %v5391 = vadd.f32 %v5375, 1e-05
    %v5392 = vrsqrt.pop %v5376
    %v5393 = vmul.f32 %v5392, %v5376
    %v5394 = vmul.f32 %v5393, %v5392
    %v5395 = vmul.f32 0.5, %v5394
    %v5396 = vsub.f32 1.5, %v5395
    %v5397 = vmul.f32 %v5392, %v5396
    %vm5398 = vweird.f32 %v5376
    %vm5399 = vweird.f32 %v5392
    %vm5400 = vmor %vm5398, %vm5399
    %v5401 = vsel %vm5400, %v5392, %v5397
    %v5402 = vrsqrt.pop %v5377
    %v5403 = vmul.f32 %v5402, %v5377
    %v5404 = vmul.f32 %v5403, %v5402
    %v5405 = vmul.f32 0.5, %v5404
    %v5406 = vsub.f32 1.5, %v5405
    %v5407 = vmul.f32 %v5402, %v5406
    %vm5408 = vweird.f32 %v5377
    %vm5409 = vweird.f32 %v5402
    %vm5410 = vmor %vm5408, %vm5409
    %v5411 = vsel %vm5410, %v5402, %v5407
    %v5412 = vrsqrt.pop %v5378
    %v5413 = vmul.f32 %v5412, %v5378
    %v5414 = vmul.f32 %v5413, %v5412
    %v5415 = vmul.f32 0.5, %v5414
    %v5416 = vsub.f32 1.5, %v5415
    %v5417 = vmul.f32 %v5412, %v5416
    %vm5418 = vweird.f32 %v5378
    %vm5419 = vweird.f32 %v5412
    %vm5420 = vmor %vm5418, %vm5419
    %v5421 = vsel %vm5420, %v5412, %v5417
    %v5422 = vrsqrt.pop %v5379
    %v5423 = vmul.f32 %v5422, %v5379
    %v5424 = vmul.f32 %v5423, %v5422
    %v5425 = vmul.f32 0.5, %v5424
    %v5426 = vsub.f32 1.5, %v5425
    %v5427 = vmul.f32 %v5422, %v5426
    %vm5428 = vweird.f32 %v5379
    %vm5429 = vweird.f32 %v5422
    %vm5430 = vmor %vm5428, %vm5429
    %v5431 = vsel %vm5430, %v5422, %v5427
    %v5432 = vrsqrt.pop %v5380
    %v5433 = vmul.f32 %v5432, %v5380
    %v5434 = vmul.f32 %v5433, %v5432
    %v5435 = vmul.f32 0.5, %v5434
    %v5436 = vsub.f32 1.5, %v5435
    %v5437 = vmul.f32 %v5432, %v5436
    %vm5438 = vweird.f32 %v5380
    %vm5439 = vweird.f32 %v5432
    %vm5440 = vmor %vm5438, %vm5439
    %v5441 = vsel %vm5440, %v5432, %v5437
    %v5442 = vrsqrt.pop %v5381
    %v5443 = vmul.f32 %v5442, %v5381
    %v5444 = vmul.f32 %v5443, %v5442
    %v5445 = vmul.f32 0.5, %v5444
    %v5446 = vsub.f32 1.5, %v5445
    %v5447 = vmul.f32 %v5442, %v5446
    %vm5448 = vweird.f32 %v5381
    %vm5449 = vweird.f32 %v5442
    %vm5450 = vmor %vm5448, %vm5449
    %v5451 = vsel %vm5450, %v5442, %v5447
    %v5452 = vrsqrt.pop %v5382
    %v5453 = vmul.f32 %v5452, %v5382
    %v5454 = vmul.f32 %v5453, %v5452
    %v5455 = vmul.f32 0.5, %v5454
    %v5456 = vsub.f32 1.5, %v5455
    %v5457 = vmul.f32 %v5452, %v5456
    %vm5458 = vweird.f32 %v5382
    %vm5459 = vweird.f32 %v5452
    %vm5460 = vmor %vm5458, %vm5459
    %v5461 = vsel %vm5460, %v5452, %v5457
    %v5462 = vrsqrt.pop %v5383
    %v5463 = vmul.f32 %v5462, %v5383
    %v5464 = vmul.f32 %v5463, %v5462
    %v5465 = vmul.f32 0.5, %v5464
    %v5466 = vsub.f32 1.5, %v5465
    %v5467 = vmul.f32 %v5462, %v5466
    %vm5468 = vweird.f32 %v5383
    %vm5469 = vweird.f32 %v5462
    %vm5470 = vmor %vm5468, %vm5469
    %v5471 = vsel %vm5470, %v5462, %v5467
    %v5472 = vrsqrt.pop %v5384
    %v5473 = vmul.f32 %v5472, %v5384
    %v5474 = vmul.f32 %v5473, %v5472
    %v5475 = vmul.f32 0.5, %v5474
    %v5476 = vsub.f32 1.5, %v5475
    %v5477 = vmul.f32 %v5472, %v5476
    %vm5478 = vweird.f32 %v5384
    %vm5479 = vweird.f32 %v5472
    %vm5480 = vmor %vm5478, %vm5479
    %v5481 = vsel %vm5480, %v5472, %v5477
    %v5482 = vrsqrt.pop %v5385
    %v5483 = vmul.f32 %v5482, %v5385
    %v5484 = vmul.f32 %v5483, %v5482
    %v5485 = vmul.f32 0.5, %v5484
    %v5486 = vsub.f32 1.5, %v5485
    %v5487 = vmul.f32 %v5482, %v5486
    %vm5488 = vweird.f32 %v5385
    %vm5489 = vweird.f32 %v5482
    %vm5490 = vmor %vm5488, %vm5489
    %v5491 = vsel %vm5490, %v5482, %v5487
    %v5492 = vrsqrt.pop %v5386
    %v5493 = vmul.f32 %v5492, %v5386
    %v5494 = vmul.f32 %v5493, %v5492
    %v5495 = vmul.f32 0.5, %v5494
    %v5496 = vsub.f32 1.5, %v5495
    %v5497 = vmul.f32 %v5492, %v5496
    %vm5498 = vweird.f32 %v5386
    %vm5499 = vweird.f32 %v5492
    %vm5500 = vmor %vm5498, %vm5499
    %v5501 = vsel %vm5500, %v5492, %v5497
    %v5502 = vrsqrt.pop %v5387
    %v5503 = vmul.f32 %v5502, %v5387
    %v5504 = vmul.f32 %v5503, %v5502
    %v5505 = vmul.f32 0.5, %v5504
    %v5506 = vsub.f32 1.5, %v5505
    %v5507 = vmul.f32 %v5502, %v5506
    %vm5508 = vweird.f32 %v5387
    %vm5509 = vweird.f32 %v5502
    %vm5510 = vmor %vm5508, %vm5509
    %v5511 = vsel %vm5510, %v5502, %v5507
    %v5512 = vrsqrt.pop %v5388
    %v5513 = vmul.f32 %v5512, %v5388
    %v5514 = vmul.f32 %v5513, %v5512
    %v5515 = vmul.f32 0.5, %v5514
    %v5516 = vsub.f32 1.5, %v5515
    %v5517 = vmul.f32 %v5512, %v5516
    %vm5518 = vweird.f32 %v5388
    %vm5519 = vweird.f32 %v5512
    %vm5520 = vmor %vm5518, %vm5519
    %v5521 = vsel %vm5520, %v5512, %v5517
    %v5522 = vrsqrt.pop %v5389
    %v5523 = vmul.f32 %v5522, %v5389
    %v5524 = vmul.f32 %v5523, %v5522
    %v5525 = vmul.f32 0.5, %v5524
    %v5526 = vsub.f32 1.5, %v5525
    %v5527 = vmul.f32 %v5522, %v5526
    %vm5528 = vweird.f32 %v5389
    %vm5529 = vweird.f32 %v5522
    %vm5530 = vmor %vm5528, %vm5529
    %v5531 = vsel %vm5530, %v5522, %v5527
    %v5532 = vrsqrt.pop %v5390
    %v5533 = vmul.f32 %v5532, %v5390
    %v5534 = vmul.f32 %v5533, %v5532
    %v5535 = vmul.f32 0.5, %v5534
    %v5536 = vsub.f32 1.5, %v5535
    %v5537 = vmul.f32 %v5532, %v5536
    %vm5538 = vweird.f32 %v5390
    %vm5539 = vweird.f32 %v5532
    %vm5540 = vmor %vm5538, %vm5539
    %v5541 = vsel %vm5540, %v5532, %v5537
    %v5542 = vrsqrt.pop %v5391
    %v5543 = vmul.f32 %v5542, %v5391
    %v5544 = vmul.f32 %v5543, %v5542
    %v5545 = vmul.f32 0.5, %v5544
    %v5546 = vsub.f32 1.5, %v5545
    %v5547 = vmul.f32 %v5542, %v5546
    %vm5548 = vweird.f32 %v5391
    %vm5549 = vweird.f32 %v5542
    %vm5550 = vmor %vm5548, %vm5549
    %v5551 = vsel %vm5550, %v5542, %v5547
    %v5552 = vmul.f32 %v5280, %v5401
    %v5553 = vmul.f32 %v5281, %v5411
    %v5554 = vmul.f32 %v5282, %v5421
    %v5555 = vmul.f32 %v5283, %v5431
    %v5556 = vmul.f32 %v5284, %v5441
    %v5557 = vmul.f32 %v5285, %v5451
    %v5558 = vmul.f32 %v5286, %v5461
    %v5559 = vmul.f32 %v5287, %v5471
    %v5560 = vmul.f32 %v5288, %v5481
    %v5561 = vmul.f32 %v5289, %v5491
    %v5562 = vmul.f32 %v5290, %v5501
    %v5563 = vmul.f32 %v5291, %v5511
    %v5564 = vmul.f32 %v5292, %v5521
    %v5565 = vmul.f32 %v5293, %v5531
    %v5566 = vmul.f32 %v5294, %v5541
    %v5567 = vmul.f32 %v5295, %v5551
    %v5569 = vperm.slane %v5214, 0
    %v5571 = vmul.f32 %v5552, %v5569
    %v5572 = vmul.f32 %v5553, %v5569
    %v5573 = vmul.f32 %v5554, %v5569
    %v5574 = vmul.f32 %v5555, %v5569
    %v5575 = vmul.f32 %v5556, %v5569
    %v5576 = vmul.f32 %v5557, %v5569
    %v5577 = vmul.f32 %v5558, %v5569
    %v5578 = vmul.f32 %v5559, %v5569
    %v5579 = vmul.f32 %v5560, %v5569
    %v5580 = vmul.f32 %v5561, %v5569
    %v5581 = vmul.f32 %v5562, %v5569
    %v5582 = vmul.f32 %v5563, %v5569
    %v5583 = vmul.f32 %v5564, %v5569
    %v5584 = vmul.f32 %v5565, %v5569
    %v5585 = vmul.f32 %v5566, %v5569
    %v5586 = vmul.f32 %v5567, %v5569
    %v5588 = vperm.slane %v5215, 0
    %v5590 = vadd.f32 %v5571, %v5588
    %v5591 = vadd.f32 %v5572, %v5588
    %v5592 = vadd.f32 %v5573, %v5588
    %v5593 = vadd.f32 %v5574, %v5588
    %v5594 = vadd.f32 %v5575, %v5588
    %v5595 = vadd.f32 %v5576, %v5588
    %v5596 = vadd.f32 %v5577, %v5588
    %v5597 = vadd.f32 %v5578, %v5588
    %v5598 = vadd.f32 %v5579, %v5588
    %v5599 = vadd.f32 %v5580, %v5588
    %v5600 = vadd.f32 %v5581, %v5588
    %v5601 = vadd.f32 %v5582, %v5588
    %v5602 = vadd.f32 %v5583, %v5588
    %v5603 = vadd.f32 %v5584, %v5588
    %v5604 = vadd.f32 %v5585, %v5588
    %v5605 = vadd.f32 %v5586, %v5588
    %v5606 = vld [vmem:[%s21] sm:$0xff]
    %5607 = vmatpush.msra.mxu0 %v5605
    %5608 = vmatpush.msra.mxu0 %v5604
    %5609 = vmatpush.msra.mxu0 %v5603
    %5610 = vmatpush.msra.mxu0 %v5602
    %5611 = vmatpush.msra.mxu0 %v5601
    %5612 = vmatpush.msra.mxu0 %v5600
    %5613 = vmatpush.msra.mxu0 %v5599
    %5614 = vmatpush.msra.mxu0 %v5598
    %5615 = vmatpush.msra.mxu0 %v5597
    %5616 = vmatpush.msra.mxu0 %v5596
    %5617 = vmatpush.msra.mxu0 %v5595
    %5618 = vmatpush.msra.mxu0 %v5594
    %5619 = vmatpush.msra.mxu0 %v5593
    %5620 = vmatpush.msra.mxu0 %v5592
    %5621 = vmatpush.msra.mxu0 %v5591
    %5622 = vmatpush.msra.mxu0 %v5590
    %5623 = vmatmul.f32.gmra.mxu0 %v5606
    %v5624 = vpop.f32.mrf.mxu0
    %v5625 = vadd.f32 0.0, %v5624
    %5626 = vdwg.mxu0
    %v5627 = vld [vmem:[%s19] sm:$0xff]
    %v5628 = vld [vmem:[%s19 + $0x8] sm:$0xff]
    %v5629 = vld [vmem:[%s19 + $0x10] sm:$0xff]
    %v5630 = vld [vmem:[%s19 + $0x18] sm:$0xff]
    %v5631 = vld [vmem:[%s20] sm:$0x1]
    %v5633 = vperm.slane %v5631, 0
    %v5636 = vsel %vm175, %v5625, 0
    %5638 = vmatpush.msra.mxu0 0.0
    %5639 = vmatpush.msra.mxu0 0.0
    %5640 = vmatpush.msra.mxu0 0.0
    %5641 = vmatpush.msra.mxu0 0.0
    %5642 = vmatpush.msra.mxu0 0.0
    %5643 = vmatpush.msra.mxu0 0.0
    %5644 = vmatpush.msra.mxu0 0.0
    %5645 = vmatpush.msra.mxu0 0.0
    %5646 = vmatpush.msra.mxu0 0.0
    %5647 = vmatpush.msra.mxu0 0.0
    %5648 = vmatpush.msra.mxu0 0.0
    %5649 = vmatpush.msra.mxu0 0.0
    %5650 = vmatpush.msra.mxu0 %v5630
    %5651 = vmatpush.msra.mxu0 %v5629
    %5652 = vmatpush.msra.mxu0 %v5628
    %5653 = vmatpush.msra.mxu0 %v5627
    %5654 = vmatmul.f32.gmra.mxu0 %v5636
    %v5655 = vpop.f32.mrf.mxu0
    %v5656 = vadd.f32 %v5633, %v5655
    %5657 = vdwg.mxu0
    %v5658 = vxor.u32 %v5656, 2147483648
    %v5659 = vmul.f32 %v5658, 1.442695
    %v5660 = vpow.pop %v5659
    %v5661 = vadd.f32 %v5660, 1.0
    %v5662 = vrcp.pop %v5661
    %v5663 = vmul.f32 %v5661, %v5662
    %v5664 = vsub.f32 1.0, %v5663
    %v5665 = vmul.f32 %v5662, %v5664
    %v5666 = vadd.f32 %v5662, %v5665
    %vm5667 = vweird.f32 %v5661
    %vm5668 = vweird.f32 %v5662
    %vm5669 = vmor %vm5667, %vm5668
    %v5670 = vsel %vm5669, %v5662, %v5666
    %v5671 = vand.u32 2147483647, %v5661
    %vm5672 = vcmp.eq.f32.partialorder %v5671, 8.507059e+37
    %v5673 = vand.u32 %v5661, 2147483648
    %v5674 = vor.u32 1.1754944e-38, %v5673
    %v5675 = vsel %vm5672, %v5674, %v5670
    %v5676 = vmul.f32 1.0, %v5675
    %5677 = vst [vmem:[#allocation2] sm:$0xff] %v5676
    // Predicated region
    $region90: #{tpu_custom_call.1} parent=1 // pred_check
      _
    $region91: #{tpu_custom_call.1} parent=1 // pred_check_branch
      %5679 = sbr.rel (0) target = $region93
    $region92: #{tpu_custom_call.1} parent=1 // pred_region
      %5681 = vsyncadd [#allocation3], 0
      %s5683 = sshll.u32 [#allocation2], 4
      %s5684 = int_to_ptr.vmem [resolvable:$true] %s5683
      %s5685 = sshll.u32 %s22, 4
      %s5686 = int_to_ptr.hbm [resolvable:$true] %s5685
      %5688 = dma.vmem_to_hbm [thread:$0]  %s5684, 128, %s5686, [#allocation3]
    $region93: #{tpu_custom_call.1} parent=1 // pred_fallthru
      _
    // Predicated region
    $region94: #{tpu_custom_call.1} parent=1 // pred_check
      _
    $region95: #{tpu_custom_call.1} parent=1 // pred_check_branch
      %5690 = sbr.rel (0) target = $region97
    $region96: #{tpu_custom_call.1} parent=1 // pred_region
      %5692 = dma.done [#allocation3], 128
    $region97: #{tpu_custom_call.1} parent=1 // pred_fallthru
      _
    %5693 = vsyncpa [#allocation3], 1

</llo_original>
